<compile_context>
chip_gen: v7x
topology: tpu7x:2x2x1
jax: 0.10.0
libtpu: 0.0.40
codegen_flags: <defaults>
</compile_context>

<pallas_src>
import jax
import jax.numpy as jnp
from jax.experimental import pallas as pl
from jax.experimental.pallas import tpu as pltpu


def _gates_to_hc(gates, c_prev):
    """LSTM gate nonlinearities, PyTorch gate order (i, f, g, o).

    sigmoid/tanh are applied once over the full (B, 4H) vreg (fewer EUP pushes on the
    serial critical path); the 32-lane gate fields are sliced from the results.
    """
    H = c_prev.shape[-1]
    sig = jax.nn.sigmoid(gates)
    th = jnp.tanh(gates)
    i = sig[:, 0 * H:1 * H]
    f = sig[:, 1 * H:2 * H]
    g = th[:, 2 * H:3 * H]
    o = sig[:, 3 * H:4 * H]
    c_new = f * c_prev + i * g
    h_new = o * jnp.tanh(c_new)
    return h_new, c_new


def seq2seq_kernel(x_enc_ref, mask_ref, x_dec_ref,
                   enc_wih_ref, enc_whh_ref, enc_b_ref,
                   dec_wih_ref, dec_whh_ref, dec_b_ref,
                   wout_ref, bout_ref,
                   out_ref,
                   gx_enc_s, gx_dec_s, h_all_s):
    T, B, E = x_enc_ref.shape
    S = x_dec_ref.shape[0]
    H = enc_whh_ref.shape[0]
    V = wout_ref.shape[1]

    # ---- hoisted input-to-hidden matmuls (bf16 operands, f32 accumulate) ----
    gx_enc_s[...] = (
        jnp.dot(x_enc_ref[...].reshape(T * B, E), enc_wih_ref[...],
                preferred_element_type=jnp.float32)
        + enc_b_ref[...]).reshape(T, B, 4 * H)
    gx_dec_s[...] = (
        jnp.dot(x_dec_ref[...].reshape(S * B, E), dec_wih_ref[...],
                preferred_element_type=jnp.float32)
        + dec_b_ref[...]).reshape(S, B, 4 * H)

    # Hidden-to-hidden weights (bf16) stay resident in vregs across the loops.
    enc_whh = enc_whh_ref[...]
    dec_whh = dec_whh_ref[...]

    # ---- encoder recurrence (pack_padded: freeze state once t >= length[b]) ----
    def enc_step(t, carry):
        h, c = carry
        gates = gx_enc_s[t] + jnp.dot(h.astype(jnp.bfloat16), enc_whh,
                                      preferred_element_type=jnp.float32)
        h_new, c_new = _gates_to_hc(gates, c)
        m = mask_ref[t]                      # (B, H) pre-broadcast f32 valid mask
        h = h + m * (h_new - h)
        c = c + m * (c_new - c)
        return h, c

    zeros = jnp.zeros((B, H), jnp.float32)
    h_enc, c_enc = jax.lax.fori_loop(0, T, enc_step, (zeros, zeros), unroll=True)

    # ---- decoder recurrence (always teacher forced); stash h_t for deferred proj ----
    def dec_step(t, carry):
        h, c = carry
        gates = gx_dec_s[t] + jnp.dot(h.astype(jnp.bfloat16), dec_whh,
                                      preferred_element_type=jnp.float32)
        h_new, c_new = _gates_to_hc(gates, c)
        h_all_s[t] = h_new
        return h_new, c_new

    # Final carry is intentionally discarded; hiddens live in h_all_s scratch.
    jax.lax.fori_loop(0, S, dec_step, (h_enc, c_enc), unroll=True)

    # ---- deferred vocab projection: transpose H-wide hiddens once, one matmul,
    #      single lane-dense bulk store in the final (B, S, V) layout ----
    h_bsh = jnp.transpose(h_all_s[...], (1, 0, 2))           # (B, S, H)
    logits = (jnp.dot(h_bsh.reshape(B * S, H).astype(jnp.bfloat16), wout_ref[...],
                      preferred_element_type=jnp.float32)
              + bout_ref[...]).reshape(B, S, V)
    out_ref[...] = logits


def run_seq2seq_fused(x_enc, mask, x_dec,
                      enc_wih, enc_whh, enc_b,
                      dec_wih, dec_whh, dec_b,
                      wout, bout):
    T, B, E = x_enc.shape
    S = x_dec.shape[0]
    H = enc_whh.shape[0]
    V = wout.shape[1]

    # bf16 operands for every MXU call site; biases / mask stay f32.
    bf16 = jnp.bfloat16
    x_enc = x_enc.astype(bf16)
    x_dec = x_dec.astype(bf16)
    enc_wih = enc_wih.astype(bf16)
    enc_whh = enc_whh.astype(bf16)
    dec_wih = dec_wih.astype(bf16)
    dec_whh = dec_whh.astype(bf16)
    wout = wout.astype(bf16)
    mask = mask.astype(jnp.float32)
    enc_b = enc_b.astype(jnp.float32)
    dec_b = dec_b.astype(jnp.float32)
    bout = bout.astype(jnp.float32)

    in_specs = [
        pl.BlockSpec((T, B, E), lambda i: (0, 0, 0)),       # x_enc (time-major, bf16)
        pl.BlockSpec((T, B, H), lambda i: (0, 0, 0)),       # pre-broadcast valid mask
        pl.BlockSpec((S, B, E), lambda i: (0, 0, 0)),       # x_dec (time-major, bf16)
        pl.BlockSpec((E, 4 * H), lambda i: (0, 0)),         # enc_wih
        pl.BlockSpec((H, 4 * H), lambda i: (0, 0)),         # enc_whh
        pl.BlockSpec((1, 4 * H), lambda i: (0, 0)),         # enc_b (= b_ih + b_hh)
        pl.BlockSpec((E, 4 * H), lambda i: (0, 0)),         # dec_wih
        pl.BlockSpec((H, 4 * H), lambda i: (0, 0)),         # dec_whh
        pl.BlockSpec((1, 4 * H), lambda i: (0, 0)),         # dec_b (= b_ih + b_hh)
        pl.BlockSpec((H, V), lambda i: (0, 0)),             # dec_wout
        pl.BlockSpec((1, V), lambda i: (0, 0)),             # dec_bout
    ]

    return pl.pallas_call(
        seq2seq_kernel,
        out_shape=jax.ShapeDtypeStruct((B, S, V), jnp.float32),
        grid_spec=pltpu.PrefetchScalarGridSpec(
            num_scalar_prefetch=0,
            grid=(1,),
            in_specs=in_specs,
            out_specs=pl.BlockSpec((B, S, V), lambda i: (0, 0, 0)),
            scratch_shapes=[pltpu.VMEM((T, B, 4 * H), jnp.float32),   # hoisted enc gates_x
                            pltpu.VMEM((S, B, 4 * H), jnp.float32),   # hoisted dec gates_x
                            pltpu.VMEM((S, B, H), jnp.float32)]),     # decoder hiddens
        compiler_params=pltpu.CompilerParams(
            dimension_semantics=("arbitrary",),
            vmem_limit_bytes=32 * 1024 * 1024),
    )(x_enc, mask, x_dec, enc_wih, enc_whh, enc_b,
      dec_wih, dec_whh, dec_b, wout, bout)


def init_params(key, vocab, emb_dim, hidden):
    ks = jax.random.split(key, 9)
    s = 0.1
    return dict(
        emb_enc=s * jax.random.normal(ks[0], (vocab, emb_dim), jnp.float32),
        emb_dec=s * jax.random.normal(ks[1], (vocab, emb_dim), jnp.float32),
        enc_wih=s * jax.random.normal(ks[2], (emb_dim, 4 * hidden), jnp.float32),
        enc_whh=s * jax.random.normal(ks[3], (hidden, 4 * hidden), jnp.float32),
        enc_b=s * jax.random.normal(ks[4], (1, 4 * hidden), jnp.float32),
        dec_wih=s * jax.random.normal(ks[5], (emb_dim, 4 * hidden), jnp.float32),
        dec_whh=s * jax.random.normal(ks[6], (hidden, 4 * hidden), jnp.float32),
        dec_b=s * jax.random.normal(ks[7], (1, 4 * hidden), jnp.float32),
        dec_wout=s * jax.random.normal(ks[8], (hidden, vocab), jnp.float32),
        dec_bout=jnp.zeros((1, vocab), jnp.float32),
    )


def seq2seq_forward_training(params, old, len_old, new, len_new):
    """Equivalent of Seq2Seq.forward_training with teacher_ratio=0.5 (always teacher-forced)."""
    B, T_new = new.shape
    H = params["enc_whh"].shape[0]
    len_predict = int(max(len_old))            # max(len_old) in the reference
    S = len_predict - 1                        # ret[:, 1:] -> S emitted steps

    # Embedding gathers stay in the wrapper (tiny at these sizes); token ids are
    # transposed (cheap int32) so the embedded sequences come out time-major directly.
    # TODO(synk): at production E, move the gather in-kernel via scalar-prefetched ids.
    x_enc = jnp.take(params["emb_enc"], new.T, axis=0)        # (T_new, B, E)

    # Encoder valid-mask, pre-broadcast to lane width (T, B, H) so the in-kernel blend
    # needs no per-step XLU broadcast.
    mask = (jnp.arange(T_new)[:, None] < jnp.asarray(len_new)[None, :])
    mask = jnp.broadcast_to(mask.astype(jnp.float32)[..., None], (T_new, B, H))

    dec_tokens = old[:, :S]                                   # teacher-forced inputs
    x_dec = jnp.take(params["emb_dec"], dec_tokens.T, axis=0)  # (S, B, E)

    # TODO(synk): the unused torch.rand(1) teacher-forcing coin flip has no effect
    # when teacher_ratio != 0, so it is intentionally omitted.
    return run_seq2seq_fused(
        x_enc, mask, x_dec,
        params["enc_wih"], params["enc_whh"], params["enc_b"],
        params["dec_wih"], params["dec_whh"], params["dec_b"],
        params["dec_wout"], params["dec_bout"])               # (B, len_predict-1, V)


if __name__ == "__main__":
    VOCAB, EMB, HID = 128, 32, 32
    B, T_NEW, T_OLD = 8, 10, 8

    key = jax.random.PRNGKey(0)
    kp, k_old, k_new = jax.random.split(key, 3)
    params = init_params(kp, VOCAB, EMB, HID)

    old = jax.random.randint(k_old, (B, T_OLD), 0, VOCAB, dtype=jnp.int32)
    new = jax.random.randint(k_new, (B, T_NEW), 0, VOCAB, dtype=jnp.int32)
    len_old = [T_OLD] * B                                     # len_predict = 8
    len_new = [T_NEW, 7, 9, 6, T_NEW, 8, 5, T_NEW]

    out = seq2seq_forward_training(params, old, len_old, new, jnp.asarray(len_new))
    out = jax.block_until_ready(out)
    assert out.shape == (B, T_OLD - 1, VOCAB), out.shape
    assert jnp.all(jnp.isfinite(out))
    print("KERNEL_OK")
</pallas_src>

<mosaic_0001>
module attributes {stable_mosaic.version = 11 : i64} {
  func.func @seq2seq_kernel(%arg0: i32, %arg1: memref<10x8x32xbf16, #tpu.memory_space<vmem>>, %arg2: memref<10x8x32xf32, #tpu.memory_space<vmem>>, %arg3: memref<7x8x32xbf16, #tpu.memory_space<vmem>>, %arg4: memref<32x128xbf16, #tpu.memory_space<vmem>>, %arg5: memref<32x128xbf16, #tpu.memory_space<vmem>>, %arg6: memref<1x128xf32, #tpu.memory_space<vmem>>, %arg7: memref<32x128xbf16, #tpu.memory_space<vmem>>, %arg8: memref<32x128xbf16, #tpu.memory_space<vmem>>, %arg9: memref<1x128xf32, #tpu.memory_space<vmem>>, %arg10: memref<32x128xbf16, #tpu.memory_space<vmem>>, %arg11: memref<1x128xf32, #tpu.memory_space<vmem>>, %arg12: memref<8x7x128xf32, #tpu.memory_space<vmem>>, %arg13: memref<10x8x128xf32, #tpu.memory_space<vmem>>, %arg14: memref<7x8x128xf32, #tpu.memory_space<vmem>>, %arg15: memref<7x8x32xf32, #tpu.memory_space<vmem>>) attributes {dimension_semantics = [#tpu.dimension_semantics<arbitrary>], iteration_bounds = array<i64: 1>, scalar_prefetch = 0 : i64, scratch_operands = 3 : i64, tpu.core_type = #tpu.core_type<tc>, window_params = [{pipeline_mode = #tpu.pipeline_mode<synchronous>, transform_indices = @transform_0, window_bounds = array<i64: 10, 8, 32>}, {pipeline_mode = #tpu.pipeline_mode<synchronous>, transform_indices = @transform_1, window_bounds = array<i64: 10, 8, 32>}, {pipeline_mode = #tpu.pipeline_mode<synchronous>, transform_indices = @transform_2, window_bounds = array<i64: 7, 8, 32>}, {pipeline_mode = #tpu.pipeline_mode<synchronous>, transform_indices = @transform_3, window_bounds = array<i64: 32, 128>}, {pipeline_mode = #tpu.pipeline_mode<synchronous>, transform_indices = @transform_4, window_bounds = array<i64: 32, 128>}, {pipeline_mode = #tpu.pipeline_mode<synchronous>, transform_indices = @transform_5, window_bounds = array<i64: 1, 128>}, {pipeline_mode = #tpu.pipeline_mode<synchronous>, transform_indices = @transform_6, window_bounds = array<i64: 32, 128>}, {pipeline_mode = #tpu.pipeline_mode<synchronous>, transform_indices = @transform_7, window_bounds = array<i64: 32, 128>}, {pipeline_mode = #tpu.pipeline_mode<synchronous>, transform_indices = @transform_8, window_bounds = array<i64: 1, 128>}, {pipeline_mode = #tpu.pipeline_mode<synchronous>, transform_indices = @transform_9, window_bounds = array<i64: 32, 128>}, {pipeline_mode = #tpu.pipeline_mode<synchronous>, transform_indices = @transform_10, window_bounds = array<i64: 1, 128>}, {pipeline_mode = #tpu.pipeline_mode<synchronous>, transform_indices = @transform_11, window_bounds = array<i64: 8, 7, 128>}]} {
    %c0 = arith.constant 0 : index
    %c0_0 = arith.constant 0 : index
    %c0_1 = arith.constant 0 : index
    %0 = vector.load %arg1[%c0, %c0_0, %c0_1] : memref<10x8x32xbf16, #tpu.memory_space<vmem>>, vector<10x8x32xbf16>
    %1 = vector.shape_cast %0 : vector<10x8x32xbf16> to vector<80x32xbf16>
    %c0_2 = arith.constant 0 : index
    %c0_3 = arith.constant 0 : index
    %2 = vector.load %arg4[%c0_2, %c0_3] : memref<32x128xbf16, #tpu.memory_space<vmem>>, vector<32x128xbf16>
    %cst = arith.constant dense<0.000000e+00> : vector<80x128xf32>
    %3 = tpu.matmul %1, %2, %cst {dimension_numbers = #tpu.dot_dimension_numbers<[1], [0], [0], [1], [0, 0, 1, 1], [], []>} : vector<80x32xbf16>, vector<32x128xbf16>, vector<80x128xf32> -> vector<80x128xf32>
    %c0_4 = arith.constant 0 : index
    %c0_5 = arith.constant 0 : index
    %4 = vector.load %arg6[%c0_4, %c0_5] : memref<1x128xf32, #tpu.memory_space<vmem>>, vector<1x128xf32>
    %5 = vector.broadcast %4 : vector<1x128xf32> to vector<80x128xf32>
    %6 = arith.addf %3, %5 : vector<80x128xf32>
    %7 = vector.shape_cast %6 : vector<80x128xf32> to vector<10x8x128xf32>
    %c0_6 = arith.constant 0 : index
    %c0_7 = arith.constant 0 : index
    %c0_8 = arith.constant 0 : index
    %8 = vector.load %arg13[%c0_6, %c0_7, %c0_8] : memref<10x8x128xf32, #tpu.memory_space<vmem>>, vector<10x8x128xf32>
    tpu.vector_store %arg13[%c0_6, %c0_7, %c0_8], %7 {strides = array<i32>} : memref<10x8x128xf32, #tpu.memory_space<vmem>>, vector<10x8x128xf32>,
    %c0_9 = arith.constant 0 : index
    %c0_10 = arith.constant 0 : index
    %c0_11 = arith.constant 0 : index
    %9 = vector.load %arg3[%c0_9, %c0_10, %c0_11] : memref<7x8x32xbf16, #tpu.memory_space<vmem>>, vector<7x8x32xbf16>
    %10 = vector.shape_cast %9 : vector<7x8x32xbf16> to vector<56x32xbf16>
    %c0_12 = arith.constant 0 : index
    %c0_13 = arith.constant 0 : index
    %11 = vector.load %arg7[%c0_12, %c0_13] : memref<32x128xbf16, #tpu.memory_space<vmem>>, vector<32x128xbf16>
    %cst_14 = arith.constant dense<0.000000e+00> : vector<56x128xf32>
    %12 = tpu.matmul %10, %11, %cst_14 {dimension_numbers = #tpu.dot_dimension_numbers<[1], [0], [0], [1], [0, 0, 1, 1], [], []>} : vector<56x32xbf16>, vector<32x128xbf16>, vector<56x128xf32> -> vector<56x128xf32>
    %c0_15 = arith.constant 0 : index
    %c0_16 = arith.constant 0 : index
    %13 = vector.load %arg9[%c0_15, %c0_16] : memref<1x128xf32, #tpu.memory_space<vmem>>, vector<1x128xf32>
    %14 = vector.broadcast %13 : vector<1x128xf32> to vector<56x128xf32>
    %15 = arith.addf %12, %14 : vector<56x128xf32>
    %16 = vector.shape_cast %15 : vector<56x128xf32> to vector<7x8x128xf32>
    %c0_17 = arith.constant 0 : index
    %c0_18 = arith.constant 0 : index
    %c0_19 = arith.constant 0 : index
    %17 = vector.load %arg14[%c0_17, %c0_18, %c0_19] : memref<7x8x128xf32, #tpu.memory_space<vmem>>, vector<7x8x128xf32>
    tpu.vector_store %arg14[%c0_17, %c0_18, %c0_19], %16 {strides = array<i32>} : memref<7x8x128xf32, #tpu.memory_space<vmem>>, vector<7x8x128xf32>,
    %c0_20 = arith.constant 0 : index
    %c0_21 = arith.constant 0 : index
    %18 = vector.load %arg5[%c0_20, %c0_21] : memref<32x128xbf16, #tpu.memory_space<vmem>>, vector<32x128xbf16>
    %c0_22 = arith.constant 0 : index
    %c0_23 = arith.constant 0 : index
    %19 = vector.load %arg8[%c0_22, %c0_23] : memref<32x128xbf16, #tpu.memory_space<vmem>>, vector<32x128xbf16>
    %cst_24 = arith.constant 0.000000e+00 : f32
    %20 = vector.broadcast %cst_24 : f32 to vector<8x32xf32>
    %c0_i32 = arith.constant 0 : i32
    %21 = arith.index_cast %c0_i32 : i32 to index
    %c0_25 = arith.constant 0 : index
    %c0_26 = arith.constant 0 : index
    %22 = vector.load %arg13[%21, %c0_25, %c0_26] : memref<10x8x128xf32, #tpu.memory_space<vmem>>, vector<1x8x128xf32>
    %23 = vector.shape_cast %22 : vector<1x8x128xf32> to vector<8x128xf32>
    %24 = arith.truncf %20 : vector<8x32xf32> to vector<8x32xbf16>
    %cst_27 = arith.constant dense<0.000000e+00> : vector<8x128xf32>
    %25 = tpu.matmul %24, %18, %cst_27 {dimension_numbers = #tpu.dot_dimension_numbers<[1], [0], [0], [1], [0, 0, 1, 1], [], []>} : vector<8x32xbf16>, vector<32x128xbf16>, vector<8x128xf32> -> vector<8x128xf32>
    %26 = arith.addf %23, %25 : vector<8x128xf32>
    %27 = arith.negf %26 : vector<8x128xf32>
    %28 = math.exp %27 : vector<8x128xf32>
    %cst_28 = arith.constant 1.000000e+00 : f32
    %29 = vector.broadcast %cst_28 : f32 to vector<8x128xf32>
    %30 = arith.addf %29, %28 : vector<8x128xf32>
    %31 = arith.divf %29, %30 : vector<8x128xf32>
    %32 = math.tanh %26 : vector<8x128xf32>
    %33 = vector.extract_strided_slice %31 {offsets = [0, 0], sizes = [8, 32], strides = [1, 1]} : vector<8x128xf32> to vector<8x32xf32>
    %34 = vector.extract_strided_slice %31 {offsets = [0, 32], sizes = [8, 32], strides = [1, 1]} : vector<8x128xf32> to vector<8x32xf32>
    %35 = vector.extract_strided_slice %32 {offsets = [0, 64], sizes = [8, 32], strides = [1, 1]} : vector<8x128xf32> to vector<8x32xf32>
    %36 = vector.extract_strided_slice %31 {offsets = [0, 96], sizes = [8, 32], strides = [1, 1]} : vector<8x128xf32> to vector<8x32xf32>
    %37 = arith.mulf %34, %20 : vector<8x32xf32>
    %38 = arith.mulf %33, %35 : vector<8x32xf32>
    %39 = arith.addf %37, %38 : vector<8x32xf32>
    %40 = math.tanh %39 : vector<8x32xf32>
    %41 = arith.mulf %36, %40 : vector<8x32xf32>
    %42 = arith.index_cast %c0_i32 : i32 to index
    %c0_29 = arith.constant 0 : index
    %c0_30 = arith.constant 0 : index
    %43 = vector.load %arg2[%42, %c0_29, %c0_30] : memref<10x8x32xf32, #tpu.memory_space<vmem>>, vector<1x8x32xf32>
    %44 = vector.shape_cast %43 : vector<1x8x32xf32> to vector<8x32xf32>
    %45 = arith.subf %41, %20 : vector<8x32xf32>
    %46 = arith.mulf %44, %45 : vector<8x32xf32>
    %47 = arith.addf %20, %46 : vector<8x32xf32>
    %48 = arith.subf %39, %20 : vector<8x32xf32>
    %49 = arith.mulf %44, %48 : vector<8x32xf32>
    %50 = arith.addf %20, %49 : vector<8x32xf32>
    %c1_i32 = arith.constant 1 : i32
    %51 = arith.index_cast %c1_i32 : i32 to index
    %c0_31 = arith.constant 0 : index
    %c0_32 = arith.constant 0 : index
    %52 = vector.load %arg13[%51, %c0_31, %c0_32] : memref<10x8x128xf32, #tpu.memory_space<vmem>>, vector<1x8x128xf32>
    %53 = vector.shape_cast %52 : vector<1x8x128xf32> to vector<8x128xf32>
    %54 = arith.truncf %47 : vector<8x32xf32> to vector<8x32xbf16>
    %cst_33 = arith.constant dense<0.000000e+00> : vector<8x128xf32>
    %55 = tpu.matmul %54, %18, %cst_33 {dimension_numbers = #tpu.dot_dimension_numbers<[1], [0], [0], [1], [0, 0, 1, 1], [], []>} : vector<8x32xbf16>, vector<32x128xbf16>, vector<8x128xf32> -> vector<8x128xf32>
    %56 = arith.addf %53, %55 : vector<8x128xf32>
    %57 = arith.negf %56 : vector<8x128xf32>
    %58 = math.exp %57 : vector<8x128xf32>
    %cst_34 = arith.constant 1.000000e+00 : f32
    %59 = vector.broadcast %cst_34 : f32 to vector<8x128xf32>
    %60 = arith.addf %59, %58 : vector<8x128xf32>
    %61 = arith.divf %59, %60 : vector<8x128xf32>
    %62 = math.tanh %56 : vector<8x128xf32>
    %63 = vector.extract_strided_slice %61 {offsets = [0, 0], sizes = [8, 32], strides = [1, 1]} : vector<8x128xf32> to vector<8x32xf32>
    %64 = vector.extract_strided_slice %61 {offsets = [0, 32], sizes = [8, 32], strides = [1, 1]} : vector<8x128xf32> to vector<8x32xf32>
    %65 = vector.extract_strided_slice %62 {offsets = [0, 64], sizes = [8, 32], strides = [1, 1]} : vector<8x128xf32> to vector<8x32xf32>
    %66 = vector.extract_strided_slice %61 {offsets = [0, 96], sizes = [8, 32], strides = [1, 1]} : vector<8x128xf32> to vector<8x32xf32>
    %67 = arith.mulf %64, %50 : vector<8x32xf32>
    %68 = arith.mulf %63, %65 : vector<8x32xf32>
    %69 = arith.addf %67, %68 : vector<8x32xf32>
    %70 = math.tanh %69 : vector<8x32xf32>
    %71 = arith.mulf %66, %70 : vector<8x32xf32>
    %72 = arith.index_cast %c1_i32 : i32 to index
    %c0_35 = arith.constant 0 : index
    %c0_36 = arith.constant 0 : index
    %73 = vector.load %arg2[%72, %c0_35, %c0_36] : memref<10x8x32xf32, #tpu.memory_space<vmem>>, vector<1x8x32xf32>
    %74 = vector.shape_cast %73 : vector<1x8x32xf32> to vector<8x32xf32>
    %75 = arith.subf %71, %47 : vector<8x32xf32>
    %76 = arith.mulf %74, %75 : vector<8x32xf32>
    %77 = arith.addf %47, %76 : vector<8x32xf32>
    %78 = arith.subf %69, %50 : vector<8x32xf32>
    %79 = arith.mulf %74, %78 : vector<8x32xf32>
    %80 = arith.addf %50, %79 : vector<8x32xf32>
    %c2_i32 = arith.constant 2 : i32
    %81 = arith.index_cast %c2_i32 : i32 to index
    %c0_37 = arith.constant 0 : index
    %c0_38 = arith.constant 0 : index
    %82 = vector.load %arg13[%81, %c0_37, %c0_38] : memref<10x8x128xf32, #tpu.memory_space<vmem>>, vector<1x8x128xf32>
    %83 = vector.shape_cast %82 : vector<1x8x128xf32> to vector<8x128xf32>
    %84 = arith.truncf %77 : vector<8x32xf32> to vector<8x32xbf16>
    %cst_39 = arith.constant dense<0.000000e+00> : vector<8x128xf32>
    %85 = tpu.matmul %84, %18, %cst_39 {dimension_numbers = #tpu.dot_dimension_numbers<[1], [0], [0], [1], [0, 0, 1, 1], [], []>} : vector<8x32xbf16>, vector<32x128xbf16>, vector<8x128xf32> -> vector<8x128xf32>
    %86 = arith.addf %83, %85 : vector<8x128xf32>
    %87 = arith.negf %86 : vector<8x128xf32>
    %88 = math.exp %87 : vector<8x128xf32>
    %cst_40 = arith.constant 1.000000e+00 : f32
    %89 = vector.broadcast %cst_40 : f32 to vector<8x128xf32>
    %90 = arith.addf %89, %88 : vector<8x128xf32>
    %91 = arith.divf %89, %90 : vector<8x128xf32>
    %92 = math.tanh %86 : vector<8x128xf32>
    %93 = vector.extract_strided_slice %91 {offsets = [0, 0], sizes = [8, 32], strides = [1, 1]} : vector<8x128xf32> to vector<8x32xf32>
    %94 = vector.extract_strided_slice %91 {offsets = [0, 32], sizes = [8, 32], strides = [1, 1]} : vector<8x128xf32> to vector<8x32xf32>
    %95 = vector.extract_strided_slice %92 {offsets = [0, 64], sizes = [8, 32], strides = [1, 1]} : vector<8x128xf32> to vector<8x32xf32>
    %96 = vector.extract_strided_slice %91 {offsets = [0, 96], sizes = [8, 32], strides = [1, 1]} : vector<8x128xf32> to vector<8x32xf32>
    %97 = arith.mulf %94, %80 : vector<8x32xf32>
    %98 = arith.mulf %93, %95 : vector<8x32xf32>
    %99 = arith.addf %97, %98 : vector<8x32xf32>
    %100 = math.tanh %99 : vector<8x32xf32>
    %101 = arith.mulf %96, %100 : vector<8x32xf32>
    %102 = arith.index_cast %c2_i32 : i32 to index
    %c0_41 = arith.constant 0 : index
    %c0_42 = arith.constant 0 : index
    %103 = vector.load %arg2[%102, %c0_41, %c0_42] : memref<10x8x32xf32, #tpu.memory_space<vmem>>, vector<1x8x32xf32>
    %104 = vector.shape_cast %103 : vector<1x8x32xf32> to vector<8x32xf32>
    %105 = arith.subf %101, %77 : vector<8x32xf32>
    %106 = arith.mulf %104, %105 : vector<8x32xf32>
    %107 = arith.addf %77, %106 : vector<8x32xf32>
    %108 = arith.subf %99, %80 : vector<8x32xf32>
    %109 = arith.mulf %104, %108 : vector<8x32xf32>
    %110 = arith.addf %80, %109 : vector<8x32xf32>
    %c3_i32 = arith.constant 3 : i32
    %111 = arith.index_cast %c3_i32 : i32 to index
    %c0_43 = arith.constant 0 : index
    %c0_44 = arith.constant 0 : index
    %112 = vector.load %arg13[%111, %c0_43, %c0_44] : memref<10x8x128xf32, #tpu.memory_space<vmem>>, vector<1x8x128xf32>
    %113 = vector.shape_cast %112 : vector<1x8x128xf32> to vector<8x128xf32>
    %114 = arith.truncf %107 : vector<8x32xf32> to vector<8x32xbf16>
    %cst_45 = arith.constant dense<0.000000e+00> : vector<8x128xf32>
    %115 = tpu.matmul %114, %18, %cst_45 {dimension_numbers = #tpu.dot_dimension_numbers<[1], [0], [0], [1], [0, 0, 1, 1], [], []>} : vector<8x32xbf16>, vector<32x128xbf16>, vector<8x128xf32> -> vector<8x128xf32>
    %116 = arith.addf %113, %115 : vector<8x128xf32>
    %117 = arith.negf %116 : vector<8x128xf32>
    %118 = math.exp %117 : vector<8x128xf32>
    %cst_46 = arith.constant 1.000000e+00 : f32
    %119 = vector.broadcast %cst_46 : f32 to vector<8x128xf32>
    %120 = arith.addf %119, %118 : vector<8x128xf32>
    %121 = arith.divf %119, %120 : vector<8x128xf32>
    %122 = math.tanh %116 : vector<8x128xf32>
    %123 = vector.extract_strided_slice %121 {offsets = [0, 0], sizes = [8, 32], strides = [1, 1]} : vector<8x128xf32> to vector<8x32xf32>
    %124 = vector.extract_strided_slice %121 {offsets = [0, 32], sizes = [8, 32], strides = [1, 1]} : vector<8x128xf32> to vector<8x32xf32>
    %125 = vector.extract_strided_slice %122 {offsets = [0, 64], sizes = [8, 32], strides = [1, 1]} : vector<8x128xf32> to vector<8x32xf32>
    %126 = vector.extract_strided_slice %121 {offsets = [0, 96], sizes = [8, 32], strides = [1, 1]} : vector<8x128xf32> to vector<8x32xf32>
    %127 = arith.mulf %124, %110 : vector<8x32xf32>
    %128 = arith.mulf %123, %125 : vector<8x32xf32>
    %129 = arith.addf %127, %128 : vector<8x32xf32>
    %130 = math.tanh %129 : vector<8x32xf32>
    %131 = arith.mulf %126, %130 : vector<8x32xf32>
    %132 = arith.index_cast %c3_i32 : i32 to index
    %c0_47 = arith.constant 0 : index
    %c0_48 = arith.constant 0 : index
    %133 = vector.load %arg2[%132, %c0_47, %c0_48] : memref<10x8x32xf32, #tpu.memory_space<vmem>>, vector<1x8x32xf32>
    %134 = vector.shape_cast %133 : vector<1x8x32xf32> to vector<8x32xf32>
    %135 = arith.subf %131, %107 : vector<8x32xf32>
    %136 = arith.mulf %134, %135 : vector<8x32xf32>
    %137 = arith.addf %107, %136 : vector<8x32xf32>
    %138 = arith.subf %129, %110 : vector<8x32xf32>
    %139 = arith.mulf %134, %138 : vector<8x32xf32>
    %140 = arith.addf %110, %139 : vector<8x32xf32>
    %c4_i32 = arith.constant 4 : i32
    %141 = arith.index_cast %c4_i32 : i32 to index
    %c0_49 = arith.constant 0 : index
    %c0_50 = arith.constant 0 : index
    %142 = vector.load %arg13[%141, %c0_49, %c0_50] : memref<10x8x128xf32, #tpu.memory_space<vmem>>, vector<1x8x128xf32>
    %143 = vector.shape_cast %142 : vector<1x8x128xf32> to vector<8x128xf32>
    %144 = arith.truncf %137 : vector<8x32xf32> to vector<8x32xbf16>
    %cst_51 = arith.constant dense<0.000000e+00> : vector<8x128xf32>
    %145 = tpu.matmul %144, %18, %cst_51 {dimension_numbers = #tpu.dot_dimension_numbers<[1], [0], [0], [1], [0, 0, 1, 1], [], []>} : vector<8x32xbf16>, vector<32x128xbf16>, vector<8x128xf32> -> vector<8x128xf32>
    %146 = arith.addf %143, %145 : vector<8x128xf32>
    %147 = arith.negf %146 : vector<8x128xf32>
    %148 = math.exp %147 : vector<8x128xf32>
    %cst_52 = arith.constant 1.000000e+00 : f32
    %149 = vector.broadcast %cst_52 : f32 to vector<8x128xf32>
    %150 = arith.addf %149, %148 : vector<8x128xf32>
    %151 = arith.divf %149, %150 : vector<8x128xf32>
    %152 = math.tanh %146 : vector<8x128xf32>
    %153 = vector.extract_strided_slice %151 {offsets = [0, 0], sizes = [8, 32], strides = [1, 1]} : vector<8x128xf32> to vector<8x32xf32>
    %154 = vector.extract_strided_slice %151 {offsets = [0, 32], sizes = [8, 32], strides = [1, 1]} : vector<8x128xf32> to vector<8x32xf32>
    %155 = vector.extract_strided_slice %152 {offsets = [0, 64], sizes = [8, 32], strides = [1, 1]} : vector<8x128xf32> to vector<8x32xf32>
    %156 = vector.extract_strided_slice %151 {offsets = [0, 96], sizes = [8, 32], strides = [1, 1]} : vector<8x128xf32> to vector<8x32xf32>
    %157 = arith.mulf %154, %140 : vector<8x32xf32>
    %158 = arith.mulf %153, %155 : vector<8x32xf32>
    %159 = arith.addf %157, %158 : vector<8x32xf32>
    %160 = math.tanh %159 : vector<8x32xf32>
    %161 = arith.mulf %156, %160 : vector<8x32xf32>
    %162 = arith.index_cast %c4_i32 : i32 to index
    %c0_53 = arith.constant 0 : index
    %c0_54 = arith.constant 0 : index
    %163 = vector.load %arg2[%162, %c0_53, %c0_54] : memref<10x8x32xf32, #tpu.memory_space<vmem>>, vector<1x8x32xf32>
    %164 = vector.shape_cast %163 : vector<1x8x32xf32> to vector<8x32xf32>
    %165 = arith.subf %161, %137 : vector<8x32xf32>
    %166 = arith.mulf %164, %165 : vector<8x32xf32>
    %167 = arith.addf %137, %166 : vector<8x32xf32>
    %168 = arith.subf %159, %140 : vector<8x32xf32>
    %169 = arith.mulf %164, %168 : vector<8x32xf32>
    %170 = arith.addf %140, %169 : vector<8x32xf32>
    %c5_i32 = arith.constant 5 : i32
    %171 = arith.index_cast %c5_i32 : i32 to index
    %c0_55 = arith.constant 0 : index
    %c0_56 = arith.constant 0 : index
    %172 = vector.load %arg13[%171, %c0_55, %c0_56] : memref<10x8x128xf32, #tpu.memory_space<vmem>>, vector<1x8x128xf32>
    %173 = vector.shape_cast %172 : vector<1x8x128xf32> to vector<8x128xf32>
    %174 = arith.truncf %167 : vector<8x32xf32> to vector<8x32xbf16>
    %cst_57 = arith.constant dense<0.000000e+00> : vector<8x128xf32>
    %175 = tpu.matmul %174, %18, %cst_57 {dimension_numbers = #tpu.dot_dimension_numbers<[1], [0], [0], [1], [0, 0, 1, 1], [], []>} : vector<8x32xbf16>, vector<32x128xbf16>, vector<8x128xf32> -> vector<8x128xf32>
    %176 = arith.addf %173, %175 : vector<8x128xf32>
    %177 = arith.negf %176 : vector<8x128xf32>
    %178 = math.exp %177 : vector<8x128xf32>
    %cst_58 = arith.constant 1.000000e+00 : f32
    %179 = vector.broadcast %cst_58 : f32 to vector<8x128xf32>
    %180 = arith.addf %179, %178 : vector<8x128xf32>
    %181 = arith.divf %179, %180 : vector<8x128xf32>
    %182 = math.tanh %176 : vector<8x128xf32>
    %183 = vector.extract_strided_slice %181 {offsets = [0, 0], sizes = [8, 32], strides = [1, 1]} : vector<8x128xf32> to vector<8x32xf32>
    %184 = vector.extract_strided_slice %181 {offsets = [0, 32], sizes = [8, 32], strides = [1, 1]} : vector<8x128xf32> to vector<8x32xf32>
    %185 = vector.extract_strided_slice %182 {offsets = [0, 64], sizes = [8, 32], strides = [1, 1]} : vector<8x128xf32> to vector<8x32xf32>
    %186 = vector.extract_strided_slice %181 {offsets = [0, 96], sizes = [8, 32], strides = [1, 1]} : vector<8x128xf32> to vector<8x32xf32>
    %187 = arith.mulf %184, %170 : vector<8x32xf32>
    %188 = arith.mulf %183, %185 : vector<8x32xf32>
    %189 = arith.addf %187, %188 : vector<8x32xf32>
    %190 = math.tanh %189 : vector<8x32xf32>
    %191 = arith.mulf %186, %190 : vector<8x32xf32>
    %192 = arith.index_cast %c5_i32 : i32 to index
    %c0_59 = arith.constant 0 : index
    %c0_60 = arith.constant 0 : index
    %193 = vector.load %arg2[%192, %c0_59, %c0_60] : memref<10x8x32xf32, #tpu.memory_space<vmem>>, vector<1x8x32xf32>
    %194 = vector.shape_cast %193 : vector<1x8x32xf32> to vector<8x32xf32>
    %195 = arith.subf %191, %167 : vector<8x32xf32>
    %196 = arith.mulf %194, %195 : vector<8x32xf32>
    %197 = arith.addf %167, %196 : vector<8x32xf32>
    %198 = arith.subf %189, %170 : vector<8x32xf32>
    %199 = arith.mulf %194, %198 : vector<8x32xf32>
    %200 = arith.addf %170, %199 : vector<8x32xf32>
    %c6_i32 = arith.constant 6 : i32
    %201 = arith.index_cast %c6_i32 : i32 to index
    %c0_61 = arith.constant 0 : index
    %c0_62 = arith.constant 0 : index
    %202 = vector.load %arg13[%201, %c0_61, %c0_62] : memref<10x8x128xf32, #tpu.memory_space<vmem>>, vector<1x8x128xf32>
    %203 = vector.shape_cast %202 : vector<1x8x128xf32> to vector<8x128xf32>
    %204 = arith.truncf %197 : vector<8x32xf32> to vector<8x32xbf16>
    %cst_63 = arith.constant dense<0.000000e+00> : vector<8x128xf32>
    %205 = tpu.matmul %204, %18, %cst_63 {dimension_numbers = #tpu.dot_dimension_numbers<[1], [0], [0], [1], [0, 0, 1, 1], [], []>} : vector<8x32xbf16>, vector<32x128xbf16>, vector<8x128xf32> -> vector<8x128xf32>
    %206 = arith.addf %203, %205 : vector<8x128xf32>
    %207 = arith.negf %206 : vector<8x128xf32>
    %208 = math.exp %207 : vector<8x128xf32>
    %cst_64 = arith.constant 1.000000e+00 : f32
    %209 = vector.broadcast %cst_64 : f32 to vector<8x128xf32>
    %210 = arith.addf %209, %208 : vector<8x128xf32>
    %211 = arith.divf %209, %210 : vector<8x128xf32>
    %212 = math.tanh %206 : vector<8x128xf32>
    %213 = vector.extract_strided_slice %211 {offsets = [0, 0], sizes = [8, 32], strides = [1, 1]} : vector<8x128xf32> to vector<8x32xf32>
    %214 = vector.extract_strided_slice %211 {offsets = [0, 32], sizes = [8, 32], strides = [1, 1]} : vector<8x128xf32> to vector<8x32xf32>
    %215 = vector.extract_strided_slice %212 {offsets = [0, 64], sizes = [8, 32], strides = [1, 1]} : vector<8x128xf32> to vector<8x32xf32>
    %216 = vector.extract_strided_slice %211 {offsets = [0, 96], sizes = [8, 32], strides = [1, 1]} : vector<8x128xf32> to vector<8x32xf32>
    %217 = arith.mulf %214, %200 : vector<8x32xf32>
    %218 = arith.mulf %213, %215 : vector<8x32xf32>
    %219 = arith.addf %217, %218 : vector<8x32xf32>
    %220 = math.tanh %219 : vector<8x32xf32>
    %221 = arith.mulf %216, %220 : vector<8x32xf32>
    %222 = arith.index_cast %c6_i32 : i32 to index
    %c0_65 = arith.constant 0 : index
    %c0_66 = arith.constant 0 : index
    %223 = vector.load %arg2[%222, %c0_65, %c0_66] : memref<10x8x32xf32, #tpu.memory_space<vmem>>, vector<1x8x32xf32>
    %224 = vector.shape_cast %223 : vector<1x8x32xf32> to vector<8x32xf32>
    %225 = arith.subf %221, %197 : vector<8x32xf32>
    %226 = arith.mulf %224, %225 : vector<8x32xf32>
    %227 = arith.addf %197, %226 : vector<8x32xf32>
    %228 = arith.subf %219, %200 : vector<8x32xf32>
    %229 = arith.mulf %224, %228 : vector<8x32xf32>
    %230 = arith.addf %200, %229 : vector<8x32xf32>
    %c7_i32 = arith.constant 7 : i32
    %231 = arith.index_cast %c7_i32 : i32 to index
    %c0_67 = arith.constant 0 : index
    %c0_68 = arith.constant 0 : index
    %232 = vector.load %arg13[%231, %c0_67, %c0_68] : memref<10x8x128xf32, #tpu.memory_space<vmem>>, vector<1x8x128xf32>
    %233 = vector.shape_cast %232 : vector<1x8x128xf32> to vector<8x128xf32>
    %234 = arith.truncf %227 : vector<8x32xf32> to vector<8x32xbf16>
    %cst_69 = arith.constant dense<0.000000e+00> : vector<8x128xf32>
    %235 = tpu.matmul %234, %18, %cst_69 {dimension_numbers = #tpu.dot_dimension_numbers<[1], [0], [0], [1], [0, 0, 1, 1], [], []>} : vector<8x32xbf16>, vector<32x128xbf16>, vector<8x128xf32> -> vector<8x128xf32>
    %236 = arith.addf %233, %235 : vector<8x128xf32>
    %237 = arith.negf %236 : vector<8x128xf32>
    %238 = math.exp %237 : vector<8x128xf32>
    %cst_70 = arith.constant 1.000000e+00 : f32
    %239 = vector.broadcast %cst_70 : f32 to vector<8x128xf32>
    %240 = arith.addf %239, %238 : vector<8x128xf32>
    %241 = arith.divf %239, %240 : vector<8x128xf32>
    %242 = math.tanh %236 : vector<8x128xf32>
    %243 = vector.extract_strided_slice %241 {offsets = [0, 0], sizes = [8, 32], strides = [1, 1]} : vector<8x128xf32> to vector<8x32xf32>
    %244 = vector.extract_strided_slice %241 {offsets = [0, 32], sizes = [8, 32], strides = [1, 1]} : vector<8x128xf32> to vector<8x32xf32>
    %245 = vector.extract_strided_slice %242 {offsets = [0, 64], sizes = [8, 32], strides = [1, 1]} : vector<8x128xf32> to vector<8x32xf32>
    %246 = vector.extract_strided_slice %241 {offsets = [0, 96], sizes = [8, 32], strides = [1, 1]} : vector<8x128xf32> to vector<8x32xf32>
    %247 = arith.mulf %244, %230 : vector<8x32xf32>
    %248 = arith.mulf %243, %245 : vector<8x32xf32>
    %249 = arith.addf %247, %248 : vector<8x32xf32>
    %250 = math.tanh %249 : vector<8x32xf32>
    %251 = arith.mulf %246, %250 : vector<8x32xf32>
    %252 = arith.index_cast %c7_i32 : i32 to index
    %c0_71 = arith.constant 0 : index
    %c0_72 = arith.constant 0 : index
    %253 = vector.load %arg2[%252, %c0_71, %c0_72] : memref<10x8x32xf32, #tpu.memory_space<vmem>>, vector<1x8x32xf32>
    %254 = vector.shape_cast %253 : vector<1x8x32xf32> to vector<8x32xf32>
    %255 = arith.subf %251, %227 : vector<8x32xf32>
    %256 = arith.mulf %254, %255 : vector<8x32xf32>
    %257 = arith.addf %227, %256 : vector<8x32xf32>
    %258 = arith.subf %249, %230 : vector<8x32xf32>
    %259 = arith.mulf %254, %258 : vector<8x32xf32>
    %260 = arith.addf %230, %259 : vector<8x32xf32>
    %c8_i32 = arith.constant 8 : i32
    %261 = arith.index_cast %c8_i32 : i32 to index
    %c0_73 = arith.constant 0 : index
    %c0_74 = arith.constant 0 : index
    %262 = vector.load %arg13[%261, %c0_73, %c0_74] : memref<10x8x128xf32, #tpu.memory_space<vmem>>, vector<1x8x128xf32>
    %263 = vector.shape_cast %262 : vector<1x8x128xf32> to vector<8x128xf32>
    %264 = arith.truncf %257 : vector<8x32xf32> to vector<8x32xbf16>
    %cst_75 = arith.constant dense<0.000000e+00> : vector<8x128xf32>
    %265 = tpu.matmul %264, %18, %cst_75 {dimension_numbers = #tpu.dot_dimension_numbers<[1], [0], [0], [1], [0, 0, 1, 1], [], []>} : vector<8x32xbf16>, vector<32x128xbf16>, vector<8x128xf32> -> vector<8x128xf32>
    %266 = arith.addf %263, %265 : vector<8x128xf32>
    %267 = arith.negf %266 : vector<8x128xf32>
    %268 = math.exp %267 : vector<8x128xf32>
    %cst_76 = arith.constant 1.000000e+00 : f32
    %269 = vector.broadcast %cst_76 : f32 to vector<8x128xf32>
    %270 = arith.addf %269, %268 : vector<8x128xf32>
    %271 = arith.divf %269, %270 : vector<8x128xf32>
    %272 = math.tanh %266 : vector<8x128xf32>
    %273 = vector.extract_strided_slice %271 {offsets = [0, 0], sizes = [8, 32], strides = [1, 1]} : vector<8x128xf32> to vector<8x32xf32>
    %274 = vector.extract_strided_slice %271 {offsets = [0, 32], sizes = [8, 32], strides = [1, 1]} : vector<8x128xf32> to vector<8x32xf32>
    %275 = vector.extract_strided_slice %272 {offsets = [0, 64], sizes = [8, 32], strides = [1, 1]} : vector<8x128xf32> to vector<8x32xf32>
    %276 = vector.extract_strided_slice %271 {offsets = [0, 96], sizes = [8, 32], strides = [1, 1]} : vector<8x128xf32> to vector<8x32xf32>
    %277 = arith.mulf %274, %260 : vector<8x32xf32>
    %278 = arith.mulf %273, %275 : vector<8x32xf32>
    %279 = arith.addf %277, %278 : vector<8x32xf32>
    %280 = math.tanh %279 : vector<8x32xf32>
    %281 = arith.mulf %276, %280 : vector<8x32xf32>
    %282 = arith.index_cast %c8_i32 : i32 to index
    %c0_77 = arith.constant 0 : index
    %c0_78 = arith.constant 0 : index
    %283 = vector.load %arg2[%282, %c0_77, %c0_78] : memref<10x8x32xf32, #tpu.memory_space<vmem>>, vector<1x8x32xf32>
    %284 = vector.shape_cast %283 : vector<1x8x32xf32> to vector<8x32xf32>
    %285 = arith.subf %281, %257 : vector<8x32xf32>
    %286 = arith.mulf %284, %285 : vector<8x32xf32>
    %287 = arith.addf %257, %286 : vector<8x32xf32>
    %288 = arith.subf %279, %260 : vector<8x32xf32>
    %289 = arith.mulf %284, %288 : vector<8x32xf32>
    %290 = arith.addf %260, %289 : vector<8x32xf32>
    %c9_i32 = arith.constant 9 : i32
    %291 = arith.index_cast %c9_i32 : i32 to index
    %c0_79 = arith.constant 0 : index
    %c0_80 = arith.constant 0 : index
    %292 = vector.load %arg13[%291, %c0_79, %c0_80] : memref<10x8x128xf32, #tpu.memory_space<vmem>>, vector<1x8x128xf32>
    %293 = vector.shape_cast %292 : vector<1x8x128xf32> to vector<8x128xf32>
    %294 = arith.truncf %287 : vector<8x32xf32> to vector<8x32xbf16>
    %cst_81 = arith.constant dense<0.000000e+00> : vector<8x128xf32>
    %295 = tpu.matmul %294, %18, %cst_81 {dimension_numbers = #tpu.dot_dimension_numbers<[1], [0], [0], [1], [0, 0, 1, 1], [], []>} : vector<8x32xbf16>, vector<32x128xbf16>, vector<8x128xf32> -> vector<8x128xf32>
    %296 = arith.addf %293, %295 : vector<8x128xf32>
    %297 = arith.negf %296 : vector<8x128xf32>
    %298 = math.exp %297 : vector<8x128xf32>
    %cst_82 = arith.constant 1.000000e+00 : f32
    %299 = vector.broadcast %cst_82 : f32 to vector<8x128xf32>
    %300 = arith.addf %299, %298 : vector<8x128xf32>
    %301 = arith.divf %299, %300 : vector<8x128xf32>
    %302 = math.tanh %296 : vector<8x128xf32>
    %303 = vector.extract_strided_slice %301 {offsets = [0, 0], sizes = [8, 32], strides = [1, 1]} : vector<8x128xf32> to vector<8x32xf32>
    %304 = vector.extract_strided_slice %301 {offsets = [0, 32], sizes = [8, 32], strides = [1, 1]} : vector<8x128xf32> to vector<8x32xf32>
    %305 = vector.extract_strided_slice %302 {offsets = [0, 64], sizes = [8, 32], strides = [1, 1]} : vector<8x128xf32> to vector<8x32xf32>
    %306 = vector.extract_strided_slice %301 {offsets = [0, 96], sizes = [8, 32], strides = [1, 1]} : vector<8x128xf32> to vector<8x32xf32>
    %307 = arith.mulf %304, %290 : vector<8x32xf32>
    %308 = arith.mulf %303, %305 : vector<8x32xf32>
    %309 = arith.addf %307, %308 : vector<8x32xf32>
    %310 = math.tanh %309 : vector<8x32xf32>
    %311 = arith.mulf %306, %310 : vector<8x32xf32>
    %312 = arith.index_cast %c9_i32 : i32 to index
    %c0_83 = arith.constant 0 : index
    %c0_84 = arith.constant 0 : index
    %313 = vector.load %arg2[%312, %c0_83, %c0_84] : memref<10x8x32xf32, #tpu.memory_space<vmem>>, vector<1x8x32xf32>
    %314 = vector.shape_cast %313 : vector<1x8x32xf32> to vector<8x32xf32>
    %315 = arith.subf %311, %287 : vector<8x32xf32>
    %316 = arith.mulf %314, %315 : vector<8x32xf32>
    %317 = arith.addf %287, %316 : vector<8x32xf32>
    %318 = arith.subf %309, %290 : vector<8x32xf32>
    %319 = arith.mulf %314, %318 : vector<8x32xf32>
    %320 = arith.addf %290, %319 : vector<8x32xf32>
    %c10_i32 = arith.constant 10 : i32
    %c0_i32_85 = arith.constant 0 : i32
    %321 = arith.index_cast %c0_i32_85 : i32 to index
    %c0_86 = arith.constant 0 : index
    %c0_87 = arith.constant 0 : index
    %322 = vector.load %arg14[%321, %c0_86, %c0_87] : memref<7x8x128xf32, #tpu.memory_space<vmem>>, vector<1x8x128xf32>
    %323 = vector.shape_cast %322 : vector<1x8x128xf32> to vector<8x128xf32>
    %324 = arith.truncf %317 : vector<8x32xf32> to vector<8x32xbf16>
    %cst_88 = arith.constant dense<0.000000e+00> : vector<8x128xf32>
    %325 = tpu.matmul %324, %19, %cst_88 {dimension_numbers = #tpu.dot_dimension_numbers<[1], [0], [0], [1], [0, 0, 1, 1], [], []>} : vector<8x32xbf16>, vector<32x128xbf16>, vector<8x128xf32> -> vector<8x128xf32>
    %326 = arith.addf %323, %325 : vector<8x128xf32>
    %327 = arith.negf %326 : vector<8x128xf32>
    %328 = math.exp %327 : vector<8x128xf32>
    %cst_89 = arith.constant 1.000000e+00 : f32
    %329 = vector.broadcast %cst_89 : f32 to vector<8x128xf32>
    %330 = arith.addf %329, %328 : vector<8x128xf32>
    %331 = arith.divf %329, %330 : vector<8x128xf32>
    %332 = math.tanh %326 : vector<8x128xf32>
    %333 = vector.extract_strided_slice %331 {offsets = [0, 0], sizes = [8, 32], strides = [1, 1]} : vector<8x128xf32> to vector<8x32xf32>
    %334 = vector.extract_strided_slice %331 {offsets = [0, 32], sizes = [8, 32], strides = [1, 1]} : vector<8x128xf32> to vector<8x32xf32>
    %335 = vector.extract_strided_slice %332 {offsets = [0, 64], sizes = [8, 32], strides = [1, 1]} : vector<8x128xf32> to vector<8x32xf32>
    %336 = vector.extract_strided_slice %331 {offsets = [0, 96], sizes = [8, 32], strides = [1, 1]} : vector<8x128xf32> to vector<8x32xf32>
    %337 = arith.mulf %334, %320 : vector<8x32xf32>
    %338 = arith.mulf %333, %335 : vector<8x32xf32>
    %339 = arith.addf %337, %338 : vector<8x32xf32>
    %340 = math.tanh %339 : vector<8x32xf32>
    %341 = arith.mulf %336, %340 : vector<8x32xf32>
    %342 = arith.index_cast %c0_i32_85 : i32 to index
    %c0_90 = arith.constant 0 : index
    %c0_91 = arith.constant 0 : index
    %343 = vector.load %arg15[%342, %c0_90, %c0_91] : memref<7x8x32xf32, #tpu.memory_space<vmem>>, vector<1x8x32xf32>
    %344 = vector.shape_cast %343 : vector<1x8x32xf32> to vector<8x32xf32>
    %345 = vector.shape_cast %341 : vector<8x32xf32> to vector<1x8x32xf32>
    tpu.vector_store %arg15[%342, %c0_90, %c0_91], %345 {strides = array<i32>} : memref<7x8x32xf32, #tpu.memory_space<vmem>>, vector<1x8x32xf32>,
    %c1_i32_92 = arith.constant 1 : i32
    %346 = arith.index_cast %c1_i32_92 : i32 to index
    %c0_93 = arith.constant 0 : index
    %c0_94 = arith.constant 0 : index
    %347 = vector.load %arg14[%346, %c0_93, %c0_94] : memref<7x8x128xf32, #tpu.memory_space<vmem>>, vector<1x8x128xf32>
    %348 = vector.shape_cast %347 : vector<1x8x128xf32> to vector<8x128xf32>
    %349 = arith.truncf %341 : vector<8x32xf32> to vector<8x32xbf16>
    %cst_95 = arith.constant dense<0.000000e+00> : vector<8x128xf32>
    %350 = tpu.matmul %349, %19, %cst_95 {dimension_numbers = #tpu.dot_dimension_numbers<[1], [0], [0], [1], [0, 0, 1, 1], [], []>} : vector<8x32xbf16>, vector<32x128xbf16>, vector<8x128xf32> -> vector<8x128xf32>
    %351 = arith.addf %348, %350 : vector<8x128xf32>
    %352 = arith.negf %351 : vector<8x128xf32>
    %353 = math.exp %352 : vector<8x128xf32>
    %cst_96 = arith.constant 1.000000e+00 : f32
    %354 = vector.broadcast %cst_96 : f32 to vector<8x128xf32>
    %355 = arith.addf %354, %353 : vector<8x128xf32>
    %356 = arith.divf %354, %355 : vector<8x128xf32>
    %357 = math.tanh %351 : vector<8x128xf32>
    %358 = vector.extract_strided_slice %356 {offsets = [0, 0], sizes = [8, 32], strides = [1, 1]} : vector<8x128xf32> to vector<8x32xf32>
    %359 = vector.extract_strided_slice %356 {offsets = [0, 32], sizes = [8, 32], strides = [1, 1]} : vector<8x128xf32> to vector<8x32xf32>
    %360 = vector.extract_strided_slice %357 {offsets = [0, 64], sizes = [8, 32], strides = [1, 1]} : vector<8x128xf32> to vector<8x32xf32>
    %361 = vector.extract_strided_slice %356 {offsets = [0, 96], sizes = [8, 32], strides = [1, 1]} : vector<8x128xf32> to vector<8x32xf32>
    %362 = arith.mulf %359, %339 : vector<8x32xf32>
    %363 = arith.mulf %358, %360 : vector<8x32xf32>
    %364 = arith.addf %362, %363 : vector<8x32xf32>
    %365 = math.tanh %364 : vector<8x32xf32>
    %366 = arith.mulf %361, %365 : vector<8x32xf32>
    %367 = arith.index_cast %c1_i32_92 : i32 to index
    %c0_97 = arith.constant 0 : index
    %c0_98 = arith.constant 0 : index
    %368 = vector.load %arg15[%367, %c0_97, %c0_98] : memref<7x8x32xf32, #tpu.memory_space<vmem>>, vector<1x8x32xf32>
    %369 = vector.shape_cast %368 : vector<1x8x32xf32> to vector<8x32xf32>
    %370 = vector.shape_cast %366 : vector<8x32xf32> to vector<1x8x32xf32>
    tpu.vector_store %arg15[%367, %c0_97, %c0_98], %370 {strides = array<i32>} : memref<7x8x32xf32, #tpu.memory_space<vmem>>, vector<1x8x32xf32>,
    %c2_i32_99 = arith.constant 2 : i32
    %371 = arith.index_cast %c2_i32_99 : i32 to index
    %c0_100 = arith.constant 0 : index
    %c0_101 = arith.constant 0 : index
    %372 = vector.load %arg14[%371, %c0_100, %c0_101] : memref<7x8x128xf32, #tpu.memory_space<vmem>>, vector<1x8x128xf32>
    %373 = vector.shape_cast %372 : vector<1x8x128xf32> to vector<8x128xf32>
    %374 = arith.truncf %366 : vector<8x32xf32> to vector<8x32xbf16>
    %cst_102 = arith.constant dense<0.000000e+00> : vector<8x128xf32>
    %375 = tpu.matmul %374, %19, %cst_102 {dimension_numbers = #tpu.dot_dimension_numbers<[1], [0], [0], [1], [0, 0, 1, 1], [], []>} : vector<8x32xbf16>, vector<32x128xbf16>, vector<8x128xf32> -> vector<8x128xf32>
    %376 = arith.addf %373, %375 : vector<8x128xf32>
    %377 = arith.negf %376 : vector<8x128xf32>
    %378 = math.exp %377 : vector<8x128xf32>
    %cst_103 = arith.constant 1.000000e+00 : f32
    %379 = vector.broadcast %cst_103 : f32 to vector<8x128xf32>
    %380 = arith.addf %379, %378 : vector<8x128xf32>
    %381 = arith.divf %379, %380 : vector<8x128xf32>
    %382 = math.tanh %376 : vector<8x128xf32>
    %383 = vector.extract_strided_slice %381 {offsets = [0, 0], sizes = [8, 32], strides = [1, 1]} : vector<8x128xf32> to vector<8x32xf32>
    %384 = vector.extract_strided_slice %381 {offsets = [0, 32], sizes = [8, 32], strides = [1, 1]} : vector<8x128xf32> to vector<8x32xf32>
    %385 = vector.extract_strided_slice %382 {offsets = [0, 64], sizes = [8, 32], strides = [1, 1]} : vector<8x128xf32> to vector<8x32xf32>
    %386 = vector.extract_strided_slice %381 {offsets = [0, 96], sizes = [8, 32], strides = [1, 1]} : vector<8x128xf32> to vector<8x32xf32>
    %387 = arith.mulf %384, %364 : vector<8x32xf32>
    %388 = arith.mulf %383, %385 : vector<8x32xf32>
    %389 = arith.addf %387, %388 : vector<8x32xf32>
    %390 = math.tanh %389 : vector<8x32xf32>
    %391 = arith.mulf %386, %390 : vector<8x32xf32>
    %392 = arith.index_cast %c2_i32_99 : i32 to index
    %c0_104 = arith.constant 0 : index
    %c0_105 = arith.constant 0 : index
    %393 = vector.load %arg15[%392, %c0_104, %c0_105] : memref<7x8x32xf32, #tpu.memory_space<vmem>>, vector<1x8x32xf32>
    %394 = vector.shape_cast %393 : vector<1x8x32xf32> to vector<8x32xf32>
    %395 = vector.shape_cast %391 : vector<8x32xf32> to vector<1x8x32xf32>
    tpu.vector_store %arg15[%392, %c0_104, %c0_105], %395 {strides = array<i32>} : memref<7x8x32xf32, #tpu.memory_space<vmem>>, vector<1x8x32xf32>,
    %c3_i32_106 = arith.constant 3 : i32
    %396 = arith.index_cast %c3_i32_106 : i32 to index
    %c0_107 = arith.constant 0 : index
    %c0_108 = arith.constant 0 : index
    %397 = vector.load %arg14[%396, %c0_107, %c0_108] : memref<7x8x128xf32, #tpu.memory_space<vmem>>, vector<1x8x128xf32>
    %398 = vector.shape_cast %397 : vector<1x8x128xf32> to vector<8x128xf32>
    %399 = arith.truncf %391 : vector<8x32xf32> to vector<8x32xbf16>
    %cst_109 = arith.constant dense<0.000000e+00> : vector<8x128xf32>
    %400 = tpu.matmul %399, %19, %cst_109 {dimension_numbers = #tpu.dot_dimension_numbers<[1], [0], [0], [1], [0, 0, 1, 1], [], []>} : vector<8x32xbf16>, vector<32x128xbf16>, vector<8x128xf32> -> vector<8x128xf32>
    %401 = arith.addf %398, %400 : vector<8x128xf32>
    %402 = arith.negf %401 : vector<8x128xf32>
    %403 = math.exp %402 : vector<8x128xf32>
    %cst_110 = arith.constant 1.000000e+00 : f32
    %404 = vector.broadcast %cst_110 : f32 to vector<8x128xf32>
    %405 = arith.addf %404, %403 : vector<8x128xf32>
    %406 = arith.divf %404, %405 : vector<8x128xf32>
    %407 = math.tanh %401 : vector<8x128xf32>
    %408 = vector.extract_strided_slice %406 {offsets = [0, 0], sizes = [8, 32], strides = [1, 1]} : vector<8x128xf32> to vector<8x32xf32>
    %409 = vector.extract_strided_slice %406 {offsets = [0, 32], sizes = [8, 32], strides = [1, 1]} : vector<8x128xf32> to vector<8x32xf32>
    %410 = vector.extract_strided_slice %407 {offsets = [0, 64], sizes = [8, 32], strides = [1, 1]} : vector<8x128xf32> to vector<8x32xf32>
    %411 = vector.extract_strided_slice %406 {offsets = [0, 96], sizes = [8, 32], strides = [1, 1]} : vector<8x128xf32> to vector<8x32xf32>
    %412 = arith.mulf %409, %389 : vector<8x32xf32>
    %413 = arith.mulf %408, %410 : vector<8x32xf32>
    %414 = arith.addf %412, %413 : vector<8x32xf32>
    %415 = math.tanh %414 : vector<8x32xf32>
    %416 = arith.mulf %411, %415 : vector<8x32xf32>
    %417 = arith.index_cast %c3_i32_106 : i32 to index
    %c0_111 = arith.constant 0 : index
    %c0_112 = arith.constant 0 : index
    %418 = vector.load %arg15[%417, %c0_111, %c0_112] : memref<7x8x32xf32, #tpu.memory_space<vmem>>, vector<1x8x32xf32>
    %419 = vector.shape_cast %418 : vector<1x8x32xf32> to vector<8x32xf32>
    %420 = vector.shape_cast %416 : vector<8x32xf32> to vector<1x8x32xf32>
    tpu.vector_store %arg15[%417, %c0_111, %c0_112], %420 {strides = array<i32>} : memref<7x8x32xf32, #tpu.memory_space<vmem>>, vector<1x8x32xf32>,
    %c4_i32_113 = arith.constant 4 : i32
    %421 = arith.index_cast %c4_i32_113 : i32 to index
    %c0_114 = arith.constant 0 : index
    %c0_115 = arith.constant 0 : index
    %422 = vector.load %arg14[%421, %c0_114, %c0_115] : memref<7x8x128xf32, #tpu.memory_space<vmem>>, vector<1x8x128xf32>
    %423 = vector.shape_cast %422 : vector<1x8x128xf32> to vector<8x128xf32>
    %424 = arith.truncf %416 : vector<8x32xf32> to vector<8x32xbf16>
    %cst_116 = arith.constant dense<0.000000e+00> : vector<8x128xf32>
    %425 = tpu.matmul %424, %19, %cst_116 {dimension_numbers = #tpu.dot_dimension_numbers<[1], [0], [0], [1], [0, 0, 1, 1], [], []>} : vector<8x32xbf16>, vector<32x128xbf16>, vector<8x128xf32> -> vector<8x128xf32>
    %426 = arith.addf %423, %425 : vector<8x128xf32>
    %427 = arith.negf %426 : vector<8x128xf32>
    %428 = math.exp %427 : vector<8x128xf32>
    %cst_117 = arith.constant 1.000000e+00 : f32
    %429 = vector.broadcast %cst_117 : f32 to vector<8x128xf32>
    %430 = arith.addf %429, %428 : vector<8x128xf32>
    %431 = arith.divf %429, %430 : vector<8x128xf32>
    %432 = math.tanh %426 : vector<8x128xf32>
    %433 = vector.extract_strided_slice %431 {offsets = [0, 0], sizes = [8, 32], strides = [1, 1]} : vector<8x128xf32> to vector<8x32xf32>
    %434 = vector.extract_strided_slice %431 {offsets = [0, 32], sizes = [8, 32], strides = [1, 1]} : vector<8x128xf32> to vector<8x32xf32>
    %435 = vector.extract_strided_slice %432 {offsets = [0, 64], sizes = [8, 32], strides = [1, 1]} : vector<8x128xf32> to vector<8x32xf32>
    %436 = vector.extract_strided_slice %431 {offsets = [0, 96], sizes = [8, 32], strides = [1, 1]} : vector<8x128xf32> to vector<8x32xf32>
    %437 = arith.mulf %434, %414 : vector<8x32xf32>
    %438 = arith.mulf %433, %435 : vector<8x32xf32>
    %439 = arith.addf %437, %438 : vector<8x32xf32>
    %440 = math.tanh %439 : vector<8x32xf32>
    %441 = arith.mulf %436, %440 : vector<8x32xf32>
    %442 = arith.index_cast %c4_i32_113 : i32 to index
    %c0_118 = arith.constant 0 : index
    %c0_119 = arith.constant 0 : index
    %443 = vector.load %arg15[%442, %c0_118, %c0_119] : memref<7x8x32xf32, #tpu.memory_space<vmem>>, vector<1x8x32xf32>
    %444 = vector.shape_cast %443 : vector<1x8x32xf32> to vector<8x32xf32>
    %445 = vector.shape_cast %441 : vector<8x32xf32> to vector<1x8x32xf32>
    tpu.vector_store %arg15[%442, %c0_118, %c0_119], %445 {strides = array<i32>} : memref<7x8x32xf32, #tpu.memory_space<vmem>>, vector<1x8x32xf32>,
    %c5_i32_120 = arith.constant 5 : i32
    %446 = arith.index_cast %c5_i32_120 : i32 to index
    %c0_121 = arith.constant 0 : index
    %c0_122 = arith.constant 0 : index
    %447 = vector.load %arg14[%446, %c0_121, %c0_122] : memref<7x8x128xf32, #tpu.memory_space<vmem>>, vector<1x8x128xf32>
    %448 = vector.shape_cast %447 : vector<1x8x128xf32> to vector<8x128xf32>
    %449 = arith.truncf %441 : vector<8x32xf32> to vector<8x32xbf16>
    %cst_123 = arith.constant dense<0.000000e+00> : vector<8x128xf32>
    %450 = tpu.matmul %449, %19, %cst_123 {dimension_numbers = #tpu.dot_dimension_numbers<[1], [0], [0], [1], [0, 0, 1, 1], [], []>} : vector<8x32xbf16>, vector<32x128xbf16>, vector<8x128xf32> -> vector<8x128xf32>
    %451 = arith.addf %448, %450 : vector<8x128xf32>
    %452 = arith.negf %451 : vector<8x128xf32>
    %453 = math.exp %452 : vector<8x128xf32>
    %cst_124 = arith.constant 1.000000e+00 : f32
    %454 = vector.broadcast %cst_124 : f32 to vector<8x128xf32>
    %455 = arith.addf %454, %453 : vector<8x128xf32>
    %456 = arith.divf %454, %455 : vector<8x128xf32>
    %457 = math.tanh %451 : vector<8x128xf32>
    %458 = vector.extract_strided_slice %456 {offsets = [0, 0], sizes = [8, 32], strides = [1, 1]} : vector<8x128xf32> to vector<8x32xf32>
    %459 = vector.extract_strided_slice %456 {offsets = [0, 32], sizes = [8, 32], strides = [1, 1]} : vector<8x128xf32> to vector<8x32xf32>
    %460 = vector.extract_strided_slice %457 {offsets = [0, 64], sizes = [8, 32], strides = [1, 1]} : vector<8x128xf32> to vector<8x32xf32>
    %461 = vector.extract_strided_slice %456 {offsets = [0, 96], sizes = [8, 32], strides = [1, 1]} : vector<8x128xf32> to vector<8x32xf32>
    %462 = arith.mulf %459, %439 : vector<8x32xf32>
    %463 = arith.mulf %458, %460 : vector<8x32xf32>
    %464 = arith.addf %462, %463 : vector<8x32xf32>
    %465 = math.tanh %464 : vector<8x32xf32>
    %466 = arith.mulf %461, %465 : vector<8x32xf32>
    %467 = arith.index_cast %c5_i32_120 : i32 to index
    %c0_125 = arith.constant 0 : index
    %c0_126 = arith.constant 0 : index
    %468 = vector.load %arg15[%467, %c0_125, %c0_126] : memref<7x8x32xf32, #tpu.memory_space<vmem>>, vector<1x8x32xf32>
    %469 = vector.shape_cast %468 : vector<1x8x32xf32> to vector<8x32xf32>
    %470 = vector.shape_cast %466 : vector<8x32xf32> to vector<1x8x32xf32>
    tpu.vector_store %arg15[%467, %c0_125, %c0_126], %470 {strides = array<i32>} : memref<7x8x32xf32, #tpu.memory_space<vmem>>, vector<1x8x32xf32>,
    %c6_i32_127 = arith.constant 6 : i32
    %471 = arith.index_cast %c6_i32_127 : i32 to index
    %c0_128 = arith.constant 0 : index
    %c0_129 = arith.constant 0 : index
    %472 = vector.load %arg14[%471, %c0_128, %c0_129] : memref<7x8x128xf32, #tpu.memory_space<vmem>>, vector<1x8x128xf32>
    %473 = vector.shape_cast %472 : vector<1x8x128xf32> to vector<8x128xf32>
    %474 = arith.truncf %466 : vector<8x32xf32> to vector<8x32xbf16>
    %cst_130 = arith.constant dense<0.000000e+00> : vector<8x128xf32>
    %475 = tpu.matmul %474, %19, %cst_130 {dimension_numbers = #tpu.dot_dimension_numbers<[1], [0], [0], [1], [0, 0, 1, 1], [], []>} : vector<8x32xbf16>, vector<32x128xbf16>, vector<8x128xf32> -> vector<8x128xf32>
    %476 = arith.addf %473, %475 : vector<8x128xf32>
    %477 = arith.negf %476 : vector<8x128xf32>
    %478 = math.exp %477 : vector<8x128xf32>
    %cst_131 = arith.constant 1.000000e+00 : f32
    %479 = vector.broadcast %cst_131 : f32 to vector<8x128xf32>
    %480 = arith.addf %479, %478 : vector<8x128xf32>
    %481 = arith.divf %479, %480 : vector<8x128xf32>
    %482 = math.tanh %476 : vector<8x128xf32>
    %483 = vector.extract_strided_slice %481 {offsets = [0, 0], sizes = [8, 32], strides = [1, 1]} : vector<8x128xf32> to vector<8x32xf32>
    %484 = vector.extract_strided_slice %481 {offsets = [0, 32], sizes = [8, 32], strides = [1, 1]} : vector<8x128xf32> to vector<8x32xf32>
    %485 = vector.extract_strided_slice %482 {offsets = [0, 64], sizes = [8, 32], strides = [1, 1]} : vector<8x128xf32> to vector<8x32xf32>
    %486 = vector.extract_strided_slice %481 {offsets = [0, 96], sizes = [8, 32], strides = [1, 1]} : vector<8x128xf32> to vector<8x32xf32>
    %487 = arith.mulf %484, %464 : vector<8x32xf32>
    %488 = arith.mulf %483, %485 : vector<8x32xf32>
    %489 = arith.addf %487, %488 : vector<8x32xf32>
    %490 = math.tanh %489 : vector<8x32xf32>
    %491 = arith.mulf %486, %490 : vector<8x32xf32>
    %492 = arith.index_cast %c6_i32_127 : i32 to index
    %c0_132 = arith.constant 0 : index
    %c0_133 = arith.constant 0 : index
    %493 = vector.load %arg15[%492, %c0_132, %c0_133] : memref<7x8x32xf32, #tpu.memory_space<vmem>>, vector<1x8x32xf32>
    %494 = vector.shape_cast %493 : vector<1x8x32xf32> to vector<8x32xf32>
    %495 = vector.shape_cast %491 : vector<8x32xf32> to vector<1x8x32xf32>
    tpu.vector_store %arg15[%492, %c0_132, %c0_133], %495 {strides = array<i32>} : memref<7x8x32xf32, #tpu.memory_space<vmem>>, vector<1x8x32xf32>,
    %c7_i32_134 = arith.constant 7 : i32
    %c0_135 = arith.constant 0 : index
    %c0_136 = arith.constant 0 : index
    %c0_137 = arith.constant 0 : index
    %496 = vector.load %arg15[%c0_135, %c0_136, %c0_137] : memref<7x8x32xf32, #tpu.memory_space<vmem>>, vector<7x8x32xf32>
    %497 = tpu.transpose %496, [1, 0, 2] : vector<7x8x32xf32> -> vector<8x7x32xf32>
    %498 = vector.shape_cast %497 : vector<8x7x32xf32> to vector<56x32xf32>
    %499 = arith.truncf %498 : vector<56x32xf32> to vector<56x32xbf16>
    %c0_138 = arith.constant 0 : index
    %c0_139 = arith.constant 0 : index
    %500 = vector.load %arg10[%c0_138, %c0_139] : memref<32x128xbf16, #tpu.memory_space<vmem>>, vector<32x128xbf16>
    %cst_140 = arith.constant dense<0.000000e+00> : vector<56x128xf32>
    %501 = tpu.matmul %499, %500, %cst_140 {dimension_numbers = #tpu.dot_dimension_numbers<[1], [0], [0], [1], [0, 0, 1, 1], [], []>} : vector<56x32xbf16>, vector<32x128xbf16>, vector<56x128xf32> -> vector<56x128xf32>
    %c0_141 = arith.constant 0 : index
    %c0_142 = arith.constant 0 : index
    %502 = vector.load %arg11[%c0_141, %c0_142] : memref<1x128xf32, #tpu.memory_space<vmem>>, vector<1x128xf32>
    %503 = vector.broadcast %502 : vector<1x128xf32> to vector<56x128xf32>
    %504 = arith.addf %501, %503 : vector<56x128xf32>
    %505 = vector.shape_cast %504 : vector<56x128xf32> to vector<8x7x128xf32>
    %c0_143 = arith.constant 0 : index
    %c0_144 = arith.constant 0 : index
    %c0_145 = arith.constant 0 : index
    %506 = vector.load %arg12[%c0_143, %c0_144, %c0_145] : memref<8x7x128xf32, #tpu.memory_space<vmem>>, vector<8x7x128xf32>
    tpu.vector_store %arg12[%c0_143, %c0_144, %c0_145], %505 {strides = array<i32>} : memref<8x7x128xf32, #tpu.memory_space<vmem>>, vector<8x7x128xf32>,
    return
  }
  func.func @transform_0(%arg0: i32) -> (i32, i32, i32) {
    %c0_i32 = arith.constant 0 : i32
    %c0_i32_0 = arith.constant 0 : i32
    %c0_i32_1 = arith.constant 0 : i32
    %c0_i32_2 = arith.constant 0 : i32
    return %c0_i32, %c0_i32_0, %c0_i32_1 : i32, i32, i32
  }
  func.func @transform_1(%arg0: i32) -> (i32, i32, i32) {
    %c0_i32 = arith.constant 0 : i32
    %c0_i32_0 = arith.constant 0 : i32
    %c0_i32_1 = arith.constant 0 : i32
    %c0_i32_2 = arith.constant 0 : i32
    return %c0_i32, %c0_i32_0, %c0_i32_1 : i32, i32, i32
  }
  func.func @transform_2(%arg0: i32) -> (i32, i32, i32) {
    %c0_i32 = arith.constant 0 : i32
    %c0_i32_0 = arith.constant 0 : i32
    %c0_i32_1 = arith.constant 0 : i32
    %c0_i32_2 = arith.constant 0 : i32
    return %c0_i32, %c0_i32_0, %c0_i32_1 : i32, i32, i32
  }
  func.func @transform_3(%arg0: i32) -> (i32, i32) {
    %c0_i32 = arith.constant 0 : i32
    %c0_i32_0 = arith.constant 0 : i32
    %c0_i32_1 = arith.constant 0 : i32
    return %c0_i32, %c0_i32_0 : i32, i32
  }
  func.func @transform_4(%arg0: i32) -> (i32, i32) {
    %c0_i32 = arith.constant 0 : i32
    %c0_i32_0 = arith.constant 0 : i32
    %c0_i32_1 = arith.constant 0 : i32
    return %c0_i32, %c0_i32_0 : i32, i32
  }
  func.func @transform_5(%arg0: i32) -> (i32, i32) {
    %c0_i32 = arith.constant 0 : i32
    %c0_i32_0 = arith.constant 0 : i32
    %c0_i32_1 = arith.constant 0 : i32
    return %c0_i32, %c0_i32_0 : i32, i32
  }
  func.func @transform_6(%arg0: i32) -> (i32, i32) {
    %c0_i32 = arith.constant 0 : i32
    %c0_i32_0 = arith.constant 0 : i32
    %c0_i32_1 = arith.constant 0 : i32
    return %c0_i32, %c0_i32_0 : i32, i32
  }
  func.func @transform_7(%arg0: i32) -> (i32, i32) {
    %c0_i32 = arith.constant 0 : i32
    %c0_i32_0 = arith.constant 0 : i32
    %c0_i32_1 = arith.constant 0 : i32
    return %c0_i32, %c0_i32_0 : i32, i32
  }
  func.func @transform_8(%arg0: i32) -> (i32, i32) {
    %c0_i32 = arith.constant 0 : i32
    %c0_i32_0 = arith.constant 0 : i32
    %c0_i32_1 = arith.constant 0 : i32
    return %c0_i32, %c0_i32_0 : i32, i32
  }
  func.func @transform_9(%arg0: i32) -> (i32, i32) {
    %c0_i32 = arith.constant 0 : i32
    %c0_i32_0 = arith.constant 0 : i32
    %c0_i32_1 = arith.constant 0 : i32
    return %c0_i32, %c0_i32_0 : i32, i32
  }
  func.func @transform_10(%arg0: i32) -> (i32, i32) {
    %c0_i32 = arith.constant 0 : i32
    %c0_i32_0 = arith.constant 0 : i32
    %c0_i32_1 = arith.constant 0 : i32
    return %c0_i32, %c0_i32_0 : i32, i32
  }
  func.func @transform_11(%arg0: i32) -> (i32, i32, i32) {
    %c0_i32 = arith.constant 0 : i32
    %c0_i32_0 = arith.constant 0 : i32
    %c0_i32_1 = arith.constant 0 : i32
    %c0_i32_2 = arith.constant 0 : i32
    return %c0_i32, %c0_i32_0, %c0_i32_1 : i32, i32, i32
  }
}

</mosaic_0001>

<llo_original>
// kernel: tpu_custom_call.1
$region0: #{tpu_custom_call.1}
  #allocation0 [shape = 'u32[]', space=smem, size = 0x4, offset = 0x4, fixed_abs, tag = 'smem constant byte address 0x4 - core index']
  #allocation1 [shape = 'u32[144,128]{1,0:T(1,128)}', space=vmem, size = 0x12000, scoped, tag = 'internal scratch']
  #allocation2 [shape = 'f32[10,8,128]{2,1,0:T(8,128)}', space=vmem, size = 0xa000, scoped, tag = 'scratch operand']
  #allocation3 [shape = 'f32[7,8,128]{2,1,0:T(8,128)}', space=vmem, size = 0x7000, scoped, tag = 'scratch operand']
  #allocation4 [shape = 'f32[7,8,32]{2,1,0:T(8,128)}', space=vmem, size = 0x7000, scoped, tag = 'scratch operand']
  %s0 = inlined_call_operand.hbm [shape: bf16[10,8,32], index: 0, kind: input, shape index: {}]
  %s1 = inlined_call_operand.hbm [shape: f32[10,8,32], index: 1, kind: input, shape index: {}]
  %s2 = inlined_call_operand.hbm [shape: bf16[7,8,32], index: 2, kind: input, shape index: {}]
  %s3 = inlined_call_operand.hbm [shape: bf16[32,128], index: 3, kind: input, shape index: {}]
  %s4 = inlined_call_operand.hbm [shape: bf16[32,128], index: 4, kind: input, shape index: {}]
  %s5 = inlined_call_operand.vmem [shape: f32[1,128], index: 5, kind: input, shape index: {}]
  %s6 = inlined_call_operand.vmem [shape: bf16[32,128], index: 6, kind: input, shape index: {}]
  %s7 = inlined_call_operand.hbm [shape: bf16[32,128], index: 7, kind: input, shape index: {}]
  %s8 = inlined_call_operand.vmem [shape: f32[1,128], index: 8, kind: input, shape index: {}]
  %s9 = inlined_call_operand.vmem [shape: bf16[32,128], index: 9, kind: input, shape index: {}]
  %s10 = inlined_call_operand.vmem [shape: f32[1,128], index: 10, kind: input, shape index: {}]
  %s11 = inlined_call_operand.vmem [shape: f32[8,7,128], index: 11, kind: output, shape index: {}]
  %s12 = sld [smem:[#allocation0]]
  $region78: #{tpu_custom_call.1} parent=0
    _
  %s14 = ssub.s32 1, %s12
  %s15 = scalar_select 0, %s14, %s12
  $region1: #{tpu_custom_call.1} parent=0
    #allocation5 [shape = 'u8[20480]{0}', space=vmem, size = 0x5000, scoped, tag = 'input window, operand 0, single buffered']
    #allocation6 [shape = 's32[1]{0}', space=sflag, size = 0x4, scoped, tag = 'scoped memory for tpu_custom_call.1']
    #allocation7 [shape = 'u8[40960]{0}', space=vmem, size = 0xa000, scoped, tag = 'input window, operand 1, single buffered']
    #allocation8 [shape = 's32[1]{0}', space=sflag, size = 0x4, scoped, tag = 'scoped memory for tpu_custom_call.1']
    #allocation9 [shape = 'u8[14336]{0}', space=vmem, size = 0x3800, scoped, tag = 'input window, operand 2, single buffered']
    #allocation10 [shape = 'u8[8192]{0}', space=vmem, size = 0x2000, scoped, tag = 'input window, operand 3, single buffered']
    #allocation11 [shape = 's32[1]{0}', space=sflag, size = 0x4, scoped, tag = 'scoped memory for tpu_custom_call.1']
    #allocation12 [shape = 'u8[8192]{0}', space=vmem, size = 0x2000, scoped, tag = 'input window, operand 4, single buffered']
    #allocation13 [shape = 'u8[8192]{0}', space=vmem, size = 0x2000, scoped, tag = 'input window, operand 7, single buffered']
    #allocation14 [shape = 's32[1]{0}', space=sflag, size = 0x4, scoped, tag = 'scoped memory for tpu_custom_call.1']
    %16 = vsyncpa [#allocation6], 0
    %17 = vsyncpa [#allocation8], 0
    %18 = vsyncpa [#allocation11], 0
    %19 = vsyncpa [#allocation14], 0
    // Predicated region
    $region2: #{tpu_custom_call.1} parent=1 // pred_check
      _
    $region3: #{tpu_custom_call.1} parent=1 // pred_check_branch
      %21 = sbr.rel (0) target = $region5
    $region4: #{tpu_custom_call.1} parent=1 // pred_region
      %s23 = ssub.s32 640, 640
      %24 = vsyncadd [#allocation6], %s23
      %s25 = sshll.u32 [#allocation5], 4
      %s26 = int_to_ptr.vmem [resolvable:$true] %s25
      %31 = dma.hbm_to_vmem [thread:$0]  %s0, 640, %s26, [#allocation6], 64, 64, 4
    $region5: #{tpu_custom_call.1} parent=1 // pred_fallthru
      _
    // Predicated region
    $region6: #{tpu_custom_call.1} parent=1 // pred_check
      _
    $region7: #{tpu_custom_call.1} parent=1 // pred_check_branch
      %33 = sbr.rel (0) target = $region9
    $region8: #{tpu_custom_call.1} parent=1 // pred_region
      %s35 = ssub.s32 1280, 1280
      %36 = vsyncadd [#allocation8], %s35
      %s37 = sshll.u32 [#allocation7], 4
      %s38 = int_to_ptr.vmem [resolvable:$true] %s37
      %43 = dma.hbm_to_vmem [thread:$0]  %s1, 1280, %s38, [#allocation8], 128, 128, 8
    $region9: #{tpu_custom_call.1} parent=1 // pred_fallthru
      _
    // Predicated region
    $region10: #{tpu_custom_call.1} parent=1 // pred_check
      _
    $region11: #{tpu_custom_call.1} parent=1 // pred_check_branch
      %45 = sbr.rel (0) target = $region13
    $region12: #{tpu_custom_call.1} parent=1 // pred_region
      %s47 = ssub.s32 448, 448
      %48 = vsyncadd [#allocation8], %s47
      %s49 = sshll.u32 [#allocation9], 4
      %s50 = int_to_ptr.vmem [resolvable:$true] %s49
      %55 = dma.hbm_to_vmem [thread:$0]  %s2, 448, %s50, [#allocation8], 64, 64, 4
    $region13: #{tpu_custom_call.1} parent=1 // pred_fallthru
      _
    // Predicated region
    $region14: #{tpu_custom_call.1} parent=1 // pred_check
      _
    $region15: #{tpu_custom_call.1} parent=1 // pred_check_branch
      %57 = sbr.rel (0) target = $region17
    $region16: #{tpu_custom_call.1} parent=1 // pred_region
      %s59 = ssub.s32 256, 256
      %60 = vsyncadd [#allocation11], %s59
      %s61 = sshll.u32 [#allocation10], 4
      %s62 = int_to_ptr.vmem [resolvable:$true] %s61
      %67 = dma.hbm_to_vmem [thread:$0]  %s3, 256, %s62, [#allocation11], 64, 64, 4
    $region17: #{tpu_custom_call.1} parent=1 // pred_fallthru
      _
    // Predicated region
    $region18: #{tpu_custom_call.1} parent=1 // pred_check
      _
    $region19: #{tpu_custom_call.1} parent=1 // pred_check_branch
      %69 = sbr.rel (0) target = $region21
    $region20: #{tpu_custom_call.1} parent=1 // pred_region
      %s71 = ssub.s32 256, 256
      %72 = vsyncadd [#allocation11], %s71
      %s73 = sshll.u32 [#allocation12], 4
      %s74 = int_to_ptr.vmem [resolvable:$true] %s73
      %79 = dma.hbm_to_vmem [thread:$0]  %s4, 256, %s74, [#allocation11], 64, 64, 4
    $region21: #{tpu_custom_call.1} parent=1 // pred_fallthru
      _
    // Predicated region
    $region22: #{tpu_custom_call.1} parent=1 // pred_check
      _
    $region23: #{tpu_custom_call.1} parent=1 // pred_check_branch
      %81 = sbr.rel (0) target = $region25
    $region24: #{tpu_custom_call.1} parent=1 // pred_region
      _
    $region25: #{tpu_custom_call.1} parent=1 // pred_fallthru
      _
    // Predicated region
    $region26: #{tpu_custom_call.1} parent=1 // pred_check
      _
    $region27: #{tpu_custom_call.1} parent=1 // pred_check_branch
      %83 = sbr.rel (0) target = $region29
    $region28: #{tpu_custom_call.1} parent=1 // pred_region
      _
    $region29: #{tpu_custom_call.1} parent=1 // pred_fallthru
      _
    // Predicated region
    $region30: #{tpu_custom_call.1} parent=1 // pred_check
      _
    $region31: #{tpu_custom_call.1} parent=1 // pred_check_branch
      %85 = sbr.rel (0) target = $region33
    $region32: #{tpu_custom_call.1} parent=1 // pred_region
      %s87 = ssub.s32 256, 256
      %88 = vsyncadd [#allocation14], %s87
      %s89 = sshll.u32 [#allocation13], 4
      %s90 = int_to_ptr.vmem [resolvable:$true] %s89
      %95 = dma.hbm_to_vmem [thread:$0]  %s7, 256, %s90, [#allocation14], 64, 64, 4
    $region33: #{tpu_custom_call.1} parent=1 // pred_fallthru
      _
    // Predicated region
    $region34: #{tpu_custom_call.1} parent=1 // pred_check
      _
    $region35: #{tpu_custom_call.1} parent=1 // pred_check_branch
      %97 = sbr.rel (0) target = $region37
    $region36: #{tpu_custom_call.1} parent=1 // pred_region
      _
    $region37: #{tpu_custom_call.1} parent=1 // pred_fallthru
      _
    // Predicated region
    $region38: #{tpu_custom_call.1} parent=1 // pred_check
      _
    $region39: #{tpu_custom_call.1} parent=1 // pred_check_branch
      %99 = sbr.rel (0) target = $region41
    $region40: #{tpu_custom_call.1} parent=1 // pred_region
      _
    $region41: #{tpu_custom_call.1} parent=1 // pred_fallthru
      _
    // Predicated region
    $region42: #{tpu_custom_call.1} parent=1 // pred_check
      _
    $region43: #{tpu_custom_call.1} parent=1 // pred_check_branch
      %101 = sbr.rel (0) target = $region45
    $region44: #{tpu_custom_call.1} parent=1 // pred_region
      _
    $region45: #{tpu_custom_call.1} parent=1 // pred_fallthru
      _
    // Predicated region
    $region46: #{tpu_custom_call.1} parent=1 // pred_check
      _
    $region47: #{tpu_custom_call.1} parent=1 // pred_check_branch
      %103 = sbr.rel (0) target = $region49
    $region48: #{tpu_custom_call.1} parent=1 // pred_region
      %104 = dma.done [#allocation6], 640
    $region49: #{tpu_custom_call.1} parent=1 // pred_fallthru
      _
    // Predicated region
    $region50: #{tpu_custom_call.1} parent=1 // pred_check
      _
    $region51: #{tpu_custom_call.1} parent=1 // pred_check_branch
      %106 = sbr.rel (0) target = $region53
    $region52: #{tpu_custom_call.1} parent=1 // pred_region
      %107 = dma.done [#allocation8], 1280
    $region53: #{tpu_custom_call.1} parent=1 // pred_fallthru
      _
    // Predicated region
    $region54: #{tpu_custom_call.1} parent=1 // pred_check
      _
    $region55: #{tpu_custom_call.1} parent=1 // pred_check_branch
      %109 = sbr.rel (0) target = $region57
    $region56: #{tpu_custom_call.1} parent=1 // pred_region
      %110 = dma.done [#allocation8], 448
    $region57: #{tpu_custom_call.1} parent=1 // pred_fallthru
      _
    // Predicated region
    $region58: #{tpu_custom_call.1} parent=1 // pred_check
      _
    $region59: #{tpu_custom_call.1} parent=1 // pred_check_branch
      %112 = sbr.rel (0) target = $region61
    $region60: #{tpu_custom_call.1} parent=1 // pred_region
      %113 = dma.done [#allocation11], 256
    $region61: #{tpu_custom_call.1} parent=1 // pred_fallthru
      _
    // Predicated region
    $region62: #{tpu_custom_call.1} parent=1 // pred_check
      _
    $region63: #{tpu_custom_call.1} parent=1 // pred_check_branch
      %115 = sbr.rel (0) target = $region65
    $region64: #{tpu_custom_call.1} parent=1 // pred_region
      %116 = dma.done [#allocation11], 256
    $region65: #{tpu_custom_call.1} parent=1 // pred_fallthru
      _
    // Predicated region
    $region66: #{tpu_custom_call.1} parent=1 // pred_check
      _
    $region67: #{tpu_custom_call.1} parent=1 // pred_check_branch
      %118 = sbr.rel (0) target = $region69
    $region68: #{tpu_custom_call.1} parent=1 // pred_region
      %119 = dma.done [#allocation14], 256
    $region69: #{tpu_custom_call.1} parent=1 // pred_fallthru
      _
    %v121 = vld [vmem:[#allocation5] sm:$0xf]
    %v122 = vld [vmem:[#allocation5 + $0x4] sm:$0xf]
    %v123 = vld [vmem:[#allocation5 + $0x8] sm:$0xf]
    %v124 = vld [vmem:[#allocation5 + $0xc] sm:$0xf]
    %v125 = vld [vmem:[#allocation5 + $0x10] sm:$0xf]
    %v126 = vld [vmem:[#allocation5 + $0x14] sm:$0xf]
    %v127 = vld [vmem:[#allocation5 + $0x18] sm:$0xf]
    %v128 = vld [vmem:[#allocation5 + $0x1c] sm:$0xf]
    %v129 = vld [vmem:[#allocation5 + $0x20] sm:$0xf]
    %v130 = vld [vmem:[#allocation5 + $0x24] sm:$0xf]
    %v131 = vld [vmem:[#allocation10] sm:$0xf]
    %v132 = vld [vmem:[#allocation10 + $0x4] sm:$0xf]
    %v133 = vld [vmem:[#allocation10 + $0x8] sm:$0xf]
    %v134 = vld [vmem:[#allocation10 + $0xc] sm:$0xf]
    %v135 = vld [vmem:[%s5] sm:$0x1]
    %v137 = vlaneseq
    %v138 = vshrl.u32 %v137, 7
    %v139 = vsub.s32 0, %v138
    %v140 = vrot.slane %v135, %v139
    %v152 = vunpack.c.l.b16 %v121
    %v153 = vunpack.c.l.b16 %v122
    %v154 = vunpack.c.l.b16 %v123
    %v155 = vunpack.c.l.b16 %v124
    %v156 = vunpack.c.l.b16 %v125
    %v157 = vunpack.c.l.b16 %v126
    %v158 = vunpack.c.l.b16 %v127
    %v159 = vunpack.c.l.b16 %v128
    %v160 = vunpack.c.l.b16 %v129
    %v161 = vunpack.c.l.b16 %v130
    %v162 = vpack.c.b16 %v153, %v152
    %v163 = vpack.c.b16 %v155, %v154
    %v164 = vpack.c.b16 %v157, %v156
    %v165 = vpack.c.b16 %v159, %v158
    %v166 = vpack.c.b16 %v161, %v160
    %v171 = vunpack.c.l.b16 %v131
    %v172 = vunpack.c.l.b16 %v132
    %v173 = vunpack.c.l.b16 %v133
    %v174 = vunpack.c.l.b16 %v134
    %v175 = vpack.c.b16 %v172, %v171
    %v176 = vpack.c.b16 %v174, %v173
    %vm179 = vcmask 261120
    %v181 = vsel %vm179, %v162, 0
    %v184 = vsel %vm179, %v163, 0
    %v187 = vsel %vm179, %v164, 0
    %v190 = vsel %vm179, %v165, 0
    %v193 = vsel %vm179, %v166, 0
    %195 = vmatprep.subr.bf16.mxu0 0
    %196 = vmatpush1.bf16.msra.mxu0 %v175
    %197 = vmatprep.subr.bf16.mxu0 0
    %198 = vmatpush1.bf16.msra.mxu0 %v176
    %199 = vmatprep.subr.bf16.mxu0 0
    %200 = vmatpush1.bf16.msra.mxu0 0
    %201 = vmatprep.subr.bf16.mxu0 0
    %202 = vmatpush1.bf16.msra.mxu0 0
    %203 = vmatprep.subr.bf16.mxu0 0
    %204 = vmatpush1.bf16.msra.mxu0 0
    %205 = vmatprep.subr.bf16.mxu0 0
    %206 = vmatpush1.bf16.msra.mxu0 0
    %207 = vmatprep.subr.bf16.mxu0 0
    %208 = vmatpush1.bf16.msra.mxu0 0
    %209 = vmatprep.subr.bf16.mxu0 0
    %210 = vmatpush1.bf16.msra.mxu0 0
    %211 = vmatprep.subr.bf16.mxu0 0
    %212 = vmatpush1.bf16.msra.mxu0 0
    %213 = vmatprep.subr.bf16.mxu0 0
    %214 = vmatpush1.bf16.msra.mxu0 0
    %215 = vmatprep.subr.bf16.mxu0 0
    %216 = vmatpush1.bf16.msra.mxu0 0
    %217 = vmatprep.subr.bf16.mxu0 0
    %218 = vmatpush1.bf16.msra.mxu0 0
    %219 = vmatprep.subr.bf16.mxu0 0
    %220 = vmatpush1.bf16.msra.mxu0 0
    %221 = vmatprep.subr.bf16.mxu0 0
    %222 = vmatpush1.bf16.msra.mxu0 0
    %223 = vmatprep.subr.bf16.mxu0 0
    %224 = vmatpush1.bf16.msra.mxu0 0
    %225 = vmatprep.subr.bf16.mxu0 0
    %226 = vmatpush1.bf16.msra.mxu0 0
    %227 = vmatprep.mubr.bf16.mxu0 0
    %228 = vmatmul.mubr.bf16.gmra.mrb[0].mxu0 %v181
    %v229 = vpop.f32.mrb[0].mxu0
    %v230 = vadd.f32 %v140, %v229
    %v231 = vpop.f32.mrb[0].mxu0
    %v232 = vpop.f32.mrb[0].mxu0
    %v233 = vadd.f32 %v140, %v232
    %v234 = vpop.f32.mrb[0].mxu0
    %235 = vmatprep.mubr.bf16.mxu0 0
    %236 = vmatmul.mubr.bf16.gmra.mrb[0].mxu0 %v184
    %v237 = vpop.f32.mrb[0].mxu0
    %v238 = vadd.f32 %v140, %v237
    %v239 = vpop.f32.mrb[0].mxu0
    %v240 = vpop.f32.mrb[0].mxu0
    %v241 = vadd.f32 %v140, %v240
    %v242 = vpop.f32.mrb[0].mxu0
    %243 = vmatprep.mubr.bf16.mxu0 0
    %244 = vmatmul.mubr.bf16.gmra.mrb[0].mxu0 %v187
    %v245 = vpop.f32.mrb[0].mxu0
    %v246 = vadd.f32 %v140, %v245
    %v247 = vpop.f32.mrb[0].mxu0
    %v248 = vpop.f32.mrb[0].mxu0
    %v249 = vadd.f32 %v140, %v248
    %v250 = vpop.f32.mrb[0].mxu0
    %251 = vmatprep.mubr.bf16.mxu0 0
    %252 = vmatmul.mubr.bf16.gmra.mrb[0].mxu0 %v190
    %v253 = vpop.f32.mrb[0].mxu0
    %v254 = vadd.f32 %v140, %v253
    %v255 = vpop.f32.mrb[0].mxu0
    %v256 = vpop.f32.mrb[0].mxu0
    %v257 = vadd.f32 %v140, %v256
    %v258 = vpop.f32.mrb[0].mxu0
    %259 = vmatprep.mubr.bf16.mxu0 0
    %260 = vmatmul.mubr.bf16.gmra.mrb[0].mxu0 %v193
    %v261 = vpop.f32.mrb[0].mxu0
    %v262 = vadd.f32 %v140, %v261
    %v263 = vpop.f32.mrb[0].mxu0
    %v264 = vpop.f32.mrb[0].mxu0
    %v265 = vadd.f32 %v140, %v264
    %v266 = vpop.f32.mrb[0].mxu0
    %267 = vdwg.mxu0
    %268 = vst [vmem:[#allocation2] sm:$0xff] %v230
    %269 = vst [vmem:[#allocation2 + $0x8] sm:$0xff] %v233
    %270 = vst [vmem:[#allocation2 + $0x10] sm:$0xff] %v238
    %271 = vst [vmem:[#allocation2 + $0x18] sm:$0xff] %v241
    %272 = vst [vmem:[#allocation2 + $0x20] sm:$0xff] %v246
    %273 = vst [vmem:[#allocation2 + $0x28] sm:$0xff] %v249
    %274 = vst [vmem:[#allocation2 + $0x30] sm:$0xff] %v254
    %275 = vst [vmem:[#allocation2 + $0x38] sm:$0xff] %v257
    %276 = vst [vmem:[#allocation2 + $0x40] sm:$0xff] %v262
    %277 = vst [vmem:[#allocation2 + $0x48] sm:$0xff] %v265
    %v278 = vld [vmem:[#allocation9] sm:$0xf]
    %v279 = vld [vmem:[#allocation9 + $0x4] sm:$0xf]
    %v280 = vld [vmem:[#allocation9 + $0x8] sm:$0xf]
    %v281 = vld [vmem:[#allocation9 + $0xc] sm:$0xf]
    %v282 = vld [vmem:[#allocation9 + $0x10] sm:$0xf]
    %v283 = vld [vmem:[#allocation9 + $0x14] sm:$0xf]
    %v284 = vld [vmem:[#allocation9 + $0x18] sm:$0xf]
    %v285 = vld [vmem:[%s6] sm:$0xf]
    %v286 = vld [vmem:[%s6 + $0x4] sm:$0xf]
    %v287 = vld [vmem:[%s6 + $0x8] sm:$0xf]
    %v288 = vld [vmem:[%s6 + $0xc] sm:$0xf]
    %v289 = vld [vmem:[%s8] sm:$0x1]
    %v291 = vlaneseq
    %v292 = vshrl.u32 %v291, 7
    %v293 = vsub.s32 0, %v292
    %v294 = vrot.slane %v289, %v293
    %v303 = vunpack.c.l.b16 %v278
    %v304 = vunpack.c.l.b16 %v279
    %v305 = vunpack.c.l.b16 %v280
    %v306 = vunpack.c.l.b16 %v281
    %v307 = vunpack.c.l.b16 %v282
    %v308 = vunpack.c.l.b16 %v283
    %v309 = vunpack.c.l.b16 %v284
    %v310 = vpack.c.b16 %v304, %v303
    %v311 = vpack.c.b16 %v306, %v305
    %v312 = vpack.c.b16 %v308, %v307
    %v313 = vpack.c.b16 %v309, %v309
    %v318 = vunpack.c.l.b16 %v285
    %v319 = vunpack.c.l.b16 %v286
    %v320 = vunpack.c.l.b16 %v287
    %v321 = vunpack.c.l.b16 %v288
    %v322 = vpack.c.b16 %v319, %v318
    %v323 = vpack.c.b16 %v321, %v320
    %v327 = vsel %vm179, %v310, 0
    %v330 = vsel %vm179, %v311, 0
    %v333 = vsel %vm179, %v312, 0
    %v336 = vsel %vm179, %v313, 0
    %338 = vmatprep.subr.bf16.mxu0 0
    %339 = vmatpush1.bf16.msra.mxu0 %v322
    %340 = vmatprep.subr.bf16.mxu0 0
    %341 = vmatpush1.bf16.msra.mxu0 %v323
    %342 = vmatprep.subr.bf16.mxu0 0
    %343 = vmatpush1.bf16.msra.mxu0 0
    %344 = vmatprep.subr.bf16.mxu0 0
    %345 = vmatpush1.bf16.msra.mxu0 0
    %346 = vmatprep.subr.bf16.mxu0 0
    %347 = vmatpush1.bf16.msra.mxu0 0
    %348 = vmatprep.subr.bf16.mxu0 0
    %349 = vmatpush1.bf16.msra.mxu0 0
    %350 = vmatprep.subr.bf16.mxu0 0
    %351 = vmatpush1.bf16.msra.mxu0 0
    %352 = vmatprep.subr.bf16.mxu0 0
    %353 = vmatpush1.bf16.msra.mxu0 0
    %354 = vmatprep.subr.bf16.mxu0 0
    %355 = vmatpush1.bf16.msra.mxu0 0
    %356 = vmatprep.subr.bf16.mxu0 0
    %357 = vmatpush1.bf16.msra.mxu0 0
    %358 = vmatprep.subr.bf16.mxu0 0
    %359 = vmatpush1.bf16.msra.mxu0 0
    %360 = vmatprep.subr.bf16.mxu0 0
    %361 = vmatpush1.bf16.msra.mxu0 0
    %362 = vmatprep.subr.bf16.mxu0 0
    %363 = vmatpush1.bf16.msra.mxu0 0
    %364 = vmatprep.subr.bf16.mxu0 0
    %365 = vmatpush1.bf16.msra.mxu0 0
    %366 = vmatprep.subr.bf16.mxu0 0
    %367 = vmatpush1.bf16.msra.mxu0 0
    %368 = vmatprep.subr.bf16.mxu0 0
    %369 = vmatpush1.bf16.msra.mxu0 0
    %370 = vmatprep.mubr.bf16.mxu0 0
    %371 = vmatmul.mubr.bf16.gmra.mrb[0].mxu0 %v327
    %v372 = vpop.f32.mrb[0].mxu0
    %v373 = vadd.f32 %v294, %v372
    %v374 = vpop.f32.mrb[0].mxu0
    %v375 = vpop.f32.mrb[0].mxu0
    %v376 = vadd.f32 %v294, %v375
    %v377 = vpop.f32.mrb[0].mxu0
    %378 = vmatprep.mubr.bf16.mxu0 0
    %379 = vmatmul.mubr.bf16.gmra.mrb[0].mxu0 %v330
    %v380 = vpop.f32.mrb[0].mxu0
    %v381 = vadd.f32 %v294, %v380
    %v382 = vpop.f32.mrb[0].mxu0
    %v383 = vpop.f32.mrb[0].mxu0
    %v384 = vadd.f32 %v294, %v383
    %v385 = vpop.f32.mrb[0].mxu0
    %386 = vmatprep.mubr.bf16.mxu0 0
    %387 = vmatmul.mubr.bf16.gmra.mrb[0].mxu0 %v333
    %v388 = vpop.f32.mrb[0].mxu0
    %v389 = vadd.f32 %v294, %v388
    %v390 = vpop.f32.mrb[0].mxu0
    %v391 = vpop.f32.mrb[0].mxu0
    %v392 = vadd.f32 %v294, %v391
    %v393 = vpop.f32.mrb[0].mxu0
    %394 = vmatprep.mubr.bf16.mxu0 0
    %395 = vmatmul.mubr.bf16.gmra.mrb[0].mxu0 %v336
    %v396 = vpop.f32.mrb[0].mxu0
    %v397 = vadd.f32 %v294, %v396
    %v398 = vpop.f32.mrb[0].mxu0
    %v399 = vpop.f32.mrb[0].mxu0
    %v400 = vpop.f32.mrb[0].mxu0
    %401 = vdwg.mxu0
    %402 = vst [vmem:[#allocation3] sm:$0xff] %v373
    %403 = vst [vmem:[#allocation3 + $0x8] sm:$0xff] %v376
    %404 = vst [vmem:[#allocation3 + $0x10] sm:$0xff] %v381
    %405 = vst [vmem:[#allocation3 + $0x18] sm:$0xff] %v384
    %406 = vst [vmem:[#allocation3 + $0x20] sm:$0xff] %v389
    %407 = vst [vmem:[#allocation3 + $0x28] sm:$0xff] %v392
    %408 = vst [vmem:[#allocation3 + $0x30] sm:$0xff] %v397
    %v409 = vld [vmem:[#allocation12] sm:$0xf]
    %v410 = vld [vmem:[#allocation12 + $0x4] sm:$0xf]
    %v411 = vld [vmem:[#allocation12 + $0x8] sm:$0xf]
    %v412 = vld [vmem:[#allocation12 + $0xc] sm:$0xf]
    %v413 = vld [vmem:[#allocation13] sm:$0xf]
    %v414 = vld [vmem:[#allocation13 + $0x4] sm:$0xf]
    %v415 = vld [vmem:[#allocation13 + $0x8] sm:$0xf]
    %v416 = vld [vmem:[#allocation13 + $0xc] sm:$0xf]
    %v417 = vld [vmem:[#allocation2] sm:$0xff]
    %v422 = vunpack.c.l.b16 %v409
    %v423 = vunpack.c.l.b16 %v410
    %v424 = vunpack.c.l.b16 %v411
    %v425 = vunpack.c.l.b16 %v412
    %v426 = vpack.c.b16 %v423, %v422
    %v427 = vpack.c.b16 %v425, %v424
    %v431 = vsel %vm179, 0, 0
    %433 = vmatprep.subr.bf16.mxu0 0
    %434 = vmatpush1.bf16.msra.mxu0 %v426
    %435 = vmatprep.subr.bf16.mxu0 0
    %436 = vmatpush1.bf16.msra.mxu0 %v427
    %437 = vmatprep.subr.bf16.mxu0 0
    %438 = vmatpush1.bf16.msra.mxu0 0
    %439 = vmatprep.subr.bf16.mxu0 0
    %440 = vmatpush1.bf16.msra.mxu0 0
    %441 = vmatprep.subr.bf16.mxu0 0
    %442 = vmatpush1.bf16.msra.mxu0 0
    %443 = vmatprep.subr.bf16.mxu0 0
    %444 = vmatpush1.bf16.msra.mxu0 0
    %445 = vmatprep.subr.bf16.mxu0 0
    %446 = vmatpush1.bf16.msra.mxu0 0
    %447 = vmatprep.subr.bf16.mxu0 0
    %448 = vmatpush1.bf16.msra.mxu0 0
    %449 = vmatprep.subr.bf16.mxu0 0
    %450 = vmatpush1.bf16.msra.mxu0 0
    %451 = vmatprep.subr.bf16.mxu0 0
    %452 = vmatpush1.bf16.msra.mxu0 0
    %453 = vmatprep.subr.bf16.mxu0 0
    %454 = vmatpush1.bf16.msra.mxu0 0
    %455 = vmatprep.subr.bf16.mxu0 0
    %456 = vmatpush1.bf16.msra.mxu0 0
    %457 = vmatprep.subr.bf16.mxu0 0
    %458 = vmatpush1.bf16.msra.mxu0 0
    %459 = vmatprep.subr.bf16.mxu0 0
    %460 = vmatpush1.bf16.msra.mxu0 0
    %461 = vmatprep.subr.bf16.mxu0 0
    %462 = vmatpush1.bf16.msra.mxu0 0
    %463 = vmatprep.subr.bf16.mxu0 0
    %464 = vmatpush1.bf16.msra.mxu0 0
    %465 = vmatprep.mubr.bf16.mxu0 0
    %466 = vmatmul.mubr.bf16.gmra.mrb[0].mxu0 %v431
    %v467 = vpop.f32.mrb[0].mxu0
    %v468 = vadd.f32 0.0, %v467
    %v469 = vpop.f32.mrb[0].mxu0
    %v470 = vpop.f32.mrb[0].mxu0
    %v471 = vpop.f32.mrb[0].mxu0
    %472 = vdwg.mxu0
    %v473 = vadd.f32 %v417, %v468
    %v474 = vxor.u32 %v473, 2147483648
    %v475 = vmul.f32 %v474, 1.442695
    %v476 = vpow.pop %v475
    %v477 = vadd.f32 %v476, 1.0
    %v478 = vrcp.pop %v477
    %v479 = vmul.f32 1.0, %v478
    %v480 = vtanh.pop %v473
    %v481 = vmul.f32 %v479, 0.0
    %483 = vrot.lane.b32.xlu0 %v480, 64
    %v484 = vpop.permute.xlu0 %483
    %v486 = vmul.f32 %v479, %v484
    %488 = vrot.lane.b32.xlu0 %v486, 32
    %v489 = vpop.permute.xlu0 %488
    %v491 = vadd.f32 %v481, %v489
    %v492 = vtanh.pop %v491
    %494 = vrot.lane.b32.xlu0 %v492, 64
    %v495 = vpop.permute.xlu0 %494
    %v497 = vmul.f32 %v479, %v495
    %v498 = vld [vmem:[#allocation7] sm:$0xff]
    %500 = vrot.lane.b32.xlu0 %v497, 32
    %v501 = vpop.permute.xlu0 %500
    %v503 = vmul.f32 %v498, %v501
    %v504 = vadd.f32 %v503, 0.0
    %506 = vrot.lane.b32.xlu0 %v491, 96
    %v507 = vpop.permute.xlu0 %506
    %v509 = vmul.f32 %v498, %v507
    %v510 = vadd.f32 %v509, 0.0
    %s511 = scalar_lea.vmem [#allocation2], 8
    %v512 = vld [vmem:[%s511] sm:$0xff]
    %v513 = vpack.c.bf16 %v504, %v504
    %v515 = vsel %vm179, %v513, 0
    %517 = vmatprep.subr.bf16.mxu0 0
    %518 = vmatpush1.bf16.msra.mxu0 %v426
    %519 = vmatprep.subr.bf16.mxu0 0
    %520 = vmatpush1.bf16.msra.mxu0 %v427
    %521 = vmatprep.subr.bf16.mxu0 0
    %522 = vmatpush1.bf16.msra.mxu0 0
    %523 = vmatprep.subr.bf16.mxu0 0
    %524 = vmatpush1.bf16.msra.mxu0 0
    %525 = vmatprep.subr.bf16.mxu0 0
    %526 = vmatpush1.bf16.msra.mxu0 0
    %527 = vmatprep.subr.bf16.mxu0 0
    %528 = vmatpush1.bf16.msra.mxu0 0
    %529 = vmatprep.subr.bf16.mxu0 0
    %530 = vmatpush1.bf16.msra.mxu0 0
    %531 = vmatprep.subr.bf16.mxu0 0
    %532 = vmatpush1.bf16.msra.mxu0 0
    %533 = vmatprep.subr.bf16.mxu0 0
    %534 = vmatpush1.bf16.msra.mxu0 0
    %535 = vmatprep.subr.bf16.mxu0 0
    %536 = vmatpush1.bf16.msra.mxu0 0
    %537 = vmatprep.subr.bf16.mxu0 0
    %538 = vmatpush1.bf16.msra.mxu0 0
    %539 = vmatprep.subr.bf16.mxu0 0
    %540 = vmatpush1.bf16.msra.mxu0 0
    %541 = vmatprep.subr.bf16.mxu0 0
    %542 = vmatpush1.bf16.msra.mxu0 0
    %543 = vmatprep.subr.bf16.mxu0 0
    %544 = vmatpush1.bf16.msra.mxu0 0
    %545 = vmatprep.subr.bf16.mxu0 0
    %546 = vmatpush1.bf16.msra.mxu0 0
    %547 = vmatprep.subr.bf16.mxu0 0
    %548 = vmatpush1.bf16.msra.mxu0 0
    %549 = vmatprep.mubr.bf16.mxu0 0
    %550 = vmatmul.mubr.bf16.gmra.mrb[0].mxu0 %v515
    %v551 = vpop.f32.mrb[0].mxu0
    %v552 = vadd.f32 0.0, %v551
    %v553 = vpop.f32.mrb[0].mxu0
    %v554 = vpop.f32.mrb[0].mxu0
    %v555 = vpop.f32.mrb[0].mxu0
    %556 = vdwg.mxu0
    %v557 = vadd.f32 %v512, %v552
    %v558 = vxor.u32 %v557, 2147483648
    %v559 = vmul.f32 %v558, 1.442695
    %v560 = vpow.pop %v559
    %v561 = vadd.f32 %v560, 1.0
    %v562 = vrcp.pop %v561
    %v563 = vmul.f32 1.0, %v562
    %v564 = vtanh.pop %v557
    %566 = vrot.lane.b32.xlu0 %v510, 32
    %v567 = vpop.permute.xlu0 %566
    %v569 = vmul.f32 %v563, %v567
    %571 = vrot.lane.b32.xlu0 %v564, 64
    %v572 = vpop.permute.xlu0 %571
    %v574 = vmul.f32 %v563, %v572
    %576 = vrot.lane.b32.xlu0 %v574, 32
    %v577 = vpop.permute.xlu0 %576
    %v579 = vadd.f32 %v569, %v577
    %v580 = vtanh.pop %v579
    %582 = vrot.lane.b32.xlu0 %v580, 64
    %v583 = vpop.permute.xlu0 %582
    %v585 = vmul.f32 %v563, %v583
    %s586 = scalar_lea.vmem [#allocation7], 8
    %v587 = vld [vmem:[%s586] sm:$0xff]
    %589 = vrot.lane.b32.xlu0 %v504, 96
    %v590 = vpop.permute.xlu0 %589
    %v592 = vsub.f32 %v585, %v590
    %594 = vrot.lane.b32.xlu0 %v592, 32
    %v595 = vpop.permute.xlu0 %594
    %v597 = vmul.f32 %v587, %v595
    %v598 = vadd.f32 %v504, %v597
    %v599 = vsub.f32 %v579, %v567
    %601 = vrot.lane.b32.xlu0 %v599, 96
    %v602 = vpop.permute.xlu0 %601
    %v604 = vmul.f32 %v587, %v602
    %v605 = vadd.f32 %v510, %v604
    %s606 = scalar_lea.vmem [#allocation2], 16
    %v607 = vld [vmem:[%s606] sm:$0xff]
    %v608 = vpack.c.bf16 %v598, %v598
    %v610 = vsel %vm179, %v608, 0
    %612 = vmatprep.subr.bf16.mxu0 0
    %613 = vmatpush1.bf16.msra.mxu0 %v426
    %614 = vmatprep.subr.bf16.mxu0 0
    %615 = vmatpush1.bf16.msra.mxu0 %v427
    %616 = vmatprep.subr.bf16.mxu0 0
    %617 = vmatpush1.bf16.msra.mxu0 0
    %618 = vmatprep.subr.bf16.mxu0 0
    %619 = vmatpush1.bf16.msra.mxu0 0
    %620 = vmatprep.subr.bf16.mxu0 0
    %621 = vmatpush1.bf16.msra.mxu0 0
    %622 = vmatprep.subr.bf16.mxu0 0
    %623 = vmatpush1.bf16.msra.mxu0 0
    %624 = vmatprep.subr.bf16.mxu0 0
    %625 = vmatpush1.bf16.msra.mxu0 0
    %626 = vmatprep.subr.bf16.mxu0 0
    %627 = vmatpush1.bf16.msra.mxu0 0
    %628 = vmatprep.subr.bf16.mxu0 0
    %629 = vmatpush1.bf16.msra.mxu0 0
    %630 = vmatprep.subr.bf16.mxu0 0
    %631 = vmatpush1.bf16.msra.mxu0 0
    %632 = vmatprep.subr.bf16.mxu0 0
    %633 = vmatpush1.bf16.msra.mxu0 0
    %634 = vmatprep.subr.bf16.mxu0 0
    %635 = vmatpush1.bf16.msra.mxu0 0
    %636 = vmatprep.subr.bf16.mxu0 0
    %637 = vmatpush1.bf16.msra.mxu0 0
    %638 = vmatprep.subr.bf16.mxu0 0
    %639 = vmatpush1.bf16.msra.mxu0 0
    %640 = vmatprep.subr.bf16.mxu0 0
    %641 = vmatpush1.bf16.msra.mxu0 0
    %642 = vmatprep.subr.bf16.mxu0 0
    %643 = vmatpush1.bf16.msra.mxu0 0
    %644 = vmatprep.mubr.bf16.mxu0 0
    %645 = vmatmul.mubr.bf16.gmra.mrb[0].mxu0 %v610
    %v646 = vpop.f32.mrb[0].mxu0
    %v647 = vadd.f32 0.0, %v646
    %v648 = vpop.f32.mrb[0].mxu0
    %v649 = vpop.f32.mrb[0].mxu0
    %v650 = vpop.f32.mrb[0].mxu0
    %651 = vdwg.mxu0
    %v652 = vadd.f32 %v607, %v647
    %v653 = vxor.u32 %v652, 2147483648
    %v654 = vmul.f32 %v653, 1.442695
    %v655 = vpow.pop %v654
    %v656 = vadd.f32 %v655, 1.0
    %v657 = vrcp.pop %v656
    %v658 = vmul.f32 1.0, %v657
    %v659 = vtanh.pop %v652
    %661 = vrot.lane.b32.xlu0 %v605, 32
    %v662 = vpop.permute.xlu0 %661
    %v664 = vmul.f32 %v658, %v662
    %666 = vrot.lane.b32.xlu0 %v659, 64
    %v667 = vpop.permute.xlu0 %666
    %v669 = vmul.f32 %v658, %v667
    %671 = vrot.lane.b32.xlu0 %v669, 32
    %v672 = vpop.permute.xlu0 %671
    %v674 = vadd.f32 %v664, %v672
    %v675 = vtanh.pop %v674
    %677 = vrot.lane.b32.xlu0 %v675, 64
    %v678 = vpop.permute.xlu0 %677
    %v680 = vmul.f32 %v658, %v678
    %s681 = scalar_lea.vmem [#allocation7], 16
    %v682 = vld [vmem:[%s681] sm:$0xff]
    %684 = vrot.lane.b32.xlu0 %v598, 96
    %v685 = vpop.permute.xlu0 %684
    %v687 = vsub.f32 %v680, %v685
    %689 = vrot.lane.b32.xlu0 %v687, 32
    %v690 = vpop.permute.xlu0 %689
    %v692 = vmul.f32 %v682, %v690
    %v693 = vadd.f32 %v598, %v692
    %v694 = vsub.f32 %v674, %v662
    %696 = vrot.lane.b32.xlu0 %v694, 96
    %v697 = vpop.permute.xlu0 %696
    %v699 = vmul.f32 %v682, %v697
    %v700 = vadd.f32 %v605, %v699
    %s701 = scalar_lea.vmem [#allocation2], 24
    %v702 = vld [vmem:[%s701] sm:$0xff]
    %v703 = vpack.c.bf16 %v693, %v693
    %v705 = vsel %vm179, %v703, 0
    %707 = vmatprep.subr.bf16.mxu0 0
    %708 = vmatpush1.bf16.msra.mxu0 %v426
    %709 = vmatprep.subr.bf16.mxu0 0
    %710 = vmatpush1.bf16.msra.mxu0 %v427
    %711 = vmatprep.subr.bf16.mxu0 0
    %712 = vmatpush1.bf16.msra.mxu0 0
    %713 = vmatprep.subr.bf16.mxu0 0
    %714 = vmatpush1.bf16.msra.mxu0 0
    %715 = vmatprep.subr.bf16.mxu0 0
    %716 = vmatpush1.bf16.msra.mxu0 0
    %717 = vmatprep.subr.bf16.mxu0 0
    %718 = vmatpush1.bf16.msra.mxu0 0
    %719 = vmatprep.subr.bf16.mxu0 0
    %720 = vmatpush1.bf16.msra.mxu0 0
    %721 = vmatprep.subr.bf16.mxu0 0
    %722 = vmatpush1.bf16.msra.mxu0 0
    %723 = vmatprep.subr.bf16.mxu0 0
    %724 = vmatpush1.bf16.msra.mxu0 0
    %725 = vmatprep.subr.bf16.mxu0 0
    %726 = vmatpush1.bf16.msra.mxu0 0
    %727 = vmatprep.subr.bf16.mxu0 0
    %728 = vmatpush1.bf16.msra.mxu0 0
    %729 = vmatprep.subr.bf16.mxu0 0
    %730 = vmatpush1.bf16.msra.mxu0 0
    %731 = vmatprep.subr.bf16.mxu0 0
    %732 = vmatpush1.bf16.msra.mxu0 0
    %733 = vmatprep.subr.bf16.mxu0 0
    %734 = vmatpush1.bf16.msra.mxu0 0
    %735 = vmatprep.subr.bf16.mxu0 0
    %736 = vmatpush1.bf16.msra.mxu0 0
    %737 = vmatprep.subr.bf16.mxu0 0
    %738 = vmatpush1.bf16.msra.mxu0 0
    %739 = vmatprep.mubr.bf16.mxu0 0
    %740 = vmatmul.mubr.bf16.gmra.mrb[0].mxu0 %v705
    %v741 = vpop.f32.mrb[0].mxu0
    %v742 = vadd.f32 0.0, %v741
    %v743 = vpop.f32.mrb[0].mxu0
    %v744 = vpop.f32.mrb[0].mxu0
    %v745 = vpop.f32.mrb[0].mxu0
    %746 = vdwg.mxu0
    %v747 = vadd.f32 %v702, %v742
    %v748 = vxor.u32 %v747, 2147483648
    %v749 = vmul.f32 %v748, 1.442695
    %v750 = vpow.pop %v749
    %v751 = vadd.f32 %v750, 1.0
    %v752 = vrcp.pop %v751
    %v753 = vmul.f32 1.0, %v752
    %v754 = vtanh.pop %v747
    %756 = vrot.lane.b32.xlu0 %v700, 32
    %v757 = vpop.permute.xlu0 %756
    %v759 = vmul.f32 %v753, %v757
    %761 = vrot.lane.b32.xlu0 %v754, 64
    %v762 = vpop.permute.xlu0 %761
    %v764 = vmul.f32 %v753, %v762
    %766 = vrot.lane.b32.xlu0 %v764, 32
    %v767 = vpop.permute.xlu0 %766
    %v769 = vadd.f32 %v759, %v767
    %v770 = vtanh.pop %v769
    %772 = vrot.lane.b32.xlu0 %v770, 64
    %v773 = vpop.permute.xlu0 %772
    %v775 = vmul.f32 %v753, %v773
    %s776 = scalar_lea.vmem [#allocation7], 24
    %v777 = vld [vmem:[%s776] sm:$0xff]
    %779 = vrot.lane.b32.xlu0 %v693, 96
    %v780 = vpop.permute.xlu0 %779
    %v782 = vsub.f32 %v775, %v780
    %784 = vrot.lane.b32.xlu0 %v782, 32
    %v785 = vpop.permute.xlu0 %784
    %v787 = vmul.f32 %v777, %v785
    %v788 = vadd.f32 %v693, %v787
    %v789 = vsub.f32 %v769, %v757
    %791 = vrot.lane.b32.xlu0 %v789, 96
    %v792 = vpop.permute.xlu0 %791
    %v794 = vmul.f32 %v777, %v792
    %v795 = vadd.f32 %v700, %v794
    %s796 = scalar_lea.vmem [#allocation2], 32
    %v797 = vld [vmem:[%s796] sm:$0xff]
    %v798 = vpack.c.bf16 %v788, %v788
    %v800 = vsel %vm179, %v798, 0
    %802 = vmatprep.subr.bf16.mxu0 0
    %803 = vmatpush1.bf16.msra.mxu0 %v426
    %804 = vmatprep.subr.bf16.mxu0 0
    %805 = vmatpush1.bf16.msra.mxu0 %v427
    %806 = vmatprep.subr.bf16.mxu0 0
    %807 = vmatpush1.bf16.msra.mxu0 0
    %808 = vmatprep.subr.bf16.mxu0 0
    %809 = vmatpush1.bf16.msra.mxu0 0
    %810 = vmatprep.subr.bf16.mxu0 0
    %811 = vmatpush1.bf16.msra.mxu0 0
    %812 = vmatprep.subr.bf16.mxu0 0
    %813 = vmatpush1.bf16.msra.mxu0 0
    %814 = vmatprep.subr.bf16.mxu0 0
    %815 = vmatpush1.bf16.msra.mxu0 0
    %816 = vmatprep.subr.bf16.mxu0 0
    %817 = vmatpush1.bf16.msra.mxu0 0
    %818 = vmatprep.subr.bf16.mxu0 0
    %819 = vmatpush1.bf16.msra.mxu0 0
    %820 = vmatprep.subr.bf16.mxu0 0
    %821 = vmatpush1.bf16.msra.mxu0 0
    %822 = vmatprep.subr.bf16.mxu0 0
    %823 = vmatpush1.bf16.msra.mxu0 0
    %824 = vmatprep.subr.bf16.mxu0 0
    %825 = vmatpush1.bf16.msra.mxu0 0
    %826 = vmatprep.subr.bf16.mxu0 0
    %827 = vmatpush1.bf16.msra.mxu0 0
    %828 = vmatprep.subr.bf16.mxu0 0
    %829 = vmatpush1.bf16.msra.mxu0 0
    %830 = vmatprep.subr.bf16.mxu0 0
    %831 = vmatpush1.bf16.msra.mxu0 0
    %832 = vmatprep.subr.bf16.mxu0 0
    %833 = vmatpush1.bf16.msra.mxu0 0
    %834 = vmatprep.mubr.bf16.mxu0 0
    %835 = vmatmul.mubr.bf16.gmra.mrb[0].mxu0 %v800
    %v836 = vpop.f32.mrb[0].mxu0
    %v837 = vadd.f32 0.0, %v836
    %v838 = vpop.f32.mrb[0].mxu0
    %v839 = vpop.f32.mrb[0].mxu0
    %v840 = vpop.f32.mrb[0].mxu0
    %841 = vdwg.mxu0
    %v842 = vadd.f32 %v797, %v837
    %v843 = vxor.u32 %v842, 2147483648
    %v844 = vmul.f32 %v843, 1.442695
    %v845 = vpow.pop %v844
    %v846 = vadd.f32 %v845, 1.0
    %v847 = vrcp.pop %v846
    %v848 = vmul.f32 1.0, %v847
    %v849 = vtanh.pop %v842
    %851 = vrot.lane.b32.xlu0 %v795, 32
    %v852 = vpop.permute.xlu0 %851
    %v854 = vmul.f32 %v848, %v852
    %856 = vrot.lane.b32.xlu0 %v849, 64
    %v857 = vpop.permute.xlu0 %856
    %v859 = vmul.f32 %v848, %v857
    %861 = vrot.lane.b32.xlu0 %v859, 32
    %v862 = vpop.permute.xlu0 %861
    %v864 = vadd.f32 %v854, %v862
    %v865 = vtanh.pop %v864
    %867 = vrot.lane.b32.xlu0 %v865, 64
    %v868 = vpop.permute.xlu0 %867
    %v870 = vmul.f32 %v848, %v868
    %s871 = scalar_lea.vmem [#allocation7], 32
    %v872 = vld [vmem:[%s871] sm:$0xff]
    %874 = vrot.lane.b32.xlu0 %v788, 96
    %v875 = vpop.permute.xlu0 %874
    %v877 = vsub.f32 %v870, %v875
    %879 = vrot.lane.b32.xlu0 %v877, 32
    %v880 = vpop.permute.xlu0 %879
    %v882 = vmul.f32 %v872, %v880
    %v883 = vadd.f32 %v788, %v882
    %v884 = vsub.f32 %v864, %v852
    %886 = vrot.lane.b32.xlu0 %v884, 96
    %v887 = vpop.permute.xlu0 %886
    %v889 = vmul.f32 %v872, %v887
    %v890 = vadd.f32 %v795, %v889
    %s891 = scalar_lea.vmem [#allocation2], 40
    %v892 = vld [vmem:[%s891] sm:$0xff]
    %v893 = vpack.c.bf16 %v883, %v883
    %v895 = vsel %vm179, %v893, 0
    %897 = vmatprep.subr.bf16.mxu0 0
    %898 = vmatpush1.bf16.msra.mxu0 %v426
    %899 = vmatprep.subr.bf16.mxu0 0
    %900 = vmatpush1.bf16.msra.mxu0 %v427
    %901 = vmatprep.subr.bf16.mxu0 0
    %902 = vmatpush1.bf16.msra.mxu0 0
    %903 = vmatprep.subr.bf16.mxu0 0
    %904 = vmatpush1.bf16.msra.mxu0 0
    %905 = vmatprep.subr.bf16.mxu0 0
    %906 = vmatpush1.bf16.msra.mxu0 0
    %907 = vmatprep.subr.bf16.mxu0 0
    %908 = vmatpush1.bf16.msra.mxu0 0
    %909 = vmatprep.subr.bf16.mxu0 0
    %910 = vmatpush1.bf16.msra.mxu0 0
    %911 = vmatprep.subr.bf16.mxu0 0
    %912 = vmatpush1.bf16.msra.mxu0 0
    %913 = vmatprep.subr.bf16.mxu0 0
    %914 = vmatpush1.bf16.msra.mxu0 0
    %915 = vmatprep.subr.bf16.mxu0 0
    %916 = vmatpush1.bf16.msra.mxu0 0
    %917 = vmatprep.subr.bf16.mxu0 0
    %918 = vmatpush1.bf16.msra.mxu0 0
    %919 = vmatprep.subr.bf16.mxu0 0
    %920 = vmatpush1.bf16.msra.mxu0 0
    %921 = vmatprep.subr.bf16.mxu0 0
    %922 = vmatpush1.bf16.msra.mxu0 0
    %923 = vmatprep.subr.bf16.mxu0 0
    %924 = vmatpush1.bf16.msra.mxu0 0
    %925 = vmatprep.subr.bf16.mxu0 0
    %926 = vmatpush1.bf16.msra.mxu0 0
    %927 = vmatprep.subr.bf16.mxu0 0
    %928 = vmatpush1.bf16.msra.mxu0 0
    %929 = vmatprep.mubr.bf16.mxu0 0
    %930 = vmatmul.mubr.bf16.gmra.mrb[0].mxu0 %v895
    %v931 = vpop.f32.mrb[0].mxu0
    %v932 = vadd.f32 0.0, %v931
    %v933 = vpop.f32.mrb[0].mxu0
    %v934 = vpop.f32.mrb[0].mxu0
    %v935 = vpop.f32.mrb[0].mxu0
    %936 = vdwg.mxu0
    %v937 = vadd.f32 %v892, %v932
    %v938 = vxor.u32 %v937, 2147483648
    %v939 = vmul.f32 %v938, 1.442695
    %v940 = vpow.pop %v939
    %v941 = vadd.f32 %v940, 1.0
    %v942 = vrcp.pop %v941
    %v943 = vmul.f32 1.0, %v942
    %v944 = vtanh.pop %v937
    %946 = vrot.lane.b32.xlu0 %v890, 32
    %v947 = vpop.permute.xlu0 %946
    %v949 = vmul.f32 %v943, %v947
    %951 = vrot.lane.b32.xlu0 %v944, 64
    %v952 = vpop.permute.xlu0 %951
    %v954 = vmul.f32 %v943, %v952
    %956 = vrot.lane.b32.xlu0 %v954, 32
    %v957 = vpop.permute.xlu0 %956
    %v959 = vadd.f32 %v949, %v957
    %v960 = vtanh.pop %v959
    %962 = vrot.lane.b32.xlu0 %v960, 64
    %v963 = vpop.permute.xlu0 %962
    %v965 = vmul.f32 %v943, %v963
    %s966 = scalar_lea.vmem [#allocation7], 40
    %v967 = vld [vmem:[%s966] sm:$0xff]
    %969 = vrot.lane.b32.xlu0 %v883, 96
    %v970 = vpop.permute.xlu0 %969
    %v972 = vsub.f32 %v965, %v970
    %974 = vrot.lane.b32.xlu0 %v972, 32
    %v975 = vpop.permute.xlu0 %974
    %v977 = vmul.f32 %v967, %v975
    %v978 = vadd.f32 %v883, %v977
    %v979 = vsub.f32 %v959, %v947
    %981 = vrot.lane.b32.xlu0 %v979, 96
    %v982 = vpop.permute.xlu0 %981
    %v984 = vmul.f32 %v967, %v982
    %v985 = vadd.f32 %v890, %v984
    %s986 = scalar_lea.vmem [#allocation2], 48
    %v987 = vld [vmem:[%s986] sm:$0xff]
    %v988 = vpack.c.bf16 %v978, %v978
    %v990 = vsel %vm179, %v988, 0
    %992 = vmatprep.subr.bf16.mxu0 0
    %993 = vmatpush1.bf16.msra.mxu0 %v426
    %994 = vmatprep.subr.bf16.mxu0 0
    %995 = vmatpush1.bf16.msra.mxu0 %v427
    %996 = vmatprep.subr.bf16.mxu0 0
    %997 = vmatpush1.bf16.msra.mxu0 0
    %998 = vmatprep.subr.bf16.mxu0 0
    %999 = vmatpush1.bf16.msra.mxu0 0
    %1000 = vmatprep.subr.bf16.mxu0 0
    %1001 = vmatpush1.bf16.msra.mxu0 0
    %1002 = vmatprep.subr.bf16.mxu0 0
    %1003 = vmatpush1.bf16.msra.mxu0 0
    %1004 = vmatprep.subr.bf16.mxu0 0
    %1005 = vmatpush1.bf16.msra.mxu0 0
    %1006 = vmatprep.subr.bf16.mxu0 0
    %1007 = vmatpush1.bf16.msra.mxu0 0
    %1008 = vmatprep.subr.bf16.mxu0 0
    %1009 = vmatpush1.bf16.msra.mxu0 0
    %1010 = vmatprep.subr.bf16.mxu0 0
    %1011 = vmatpush1.bf16.msra.mxu0 0
    %1012 = vmatprep.subr.bf16.mxu0 0
    %1013 = vmatpush1.bf16.msra.mxu0 0
    %1014 = vmatprep.subr.bf16.mxu0 0
    %1015 = vmatpush1.bf16.msra.mxu0 0
    %1016 = vmatprep.subr.bf16.mxu0 0
    %1017 = vmatpush1.bf16.msra.mxu0 0
    %1018 = vmatprep.subr.bf16.mxu0 0
    %1019 = vmatpush1.bf16.msra.mxu0 0
    %1020 = vmatprep.subr.bf16.mxu0 0
    %1021 = vmatpush1.bf16.msra.mxu0 0
    %1022 = vmatprep.subr.bf16.mxu0 0
    %1023 = vmatpush1.bf16.msra.mxu0 0
    %1024 = vmatprep.mubr.bf16.mxu0 0
    %1025 = vmatmul.mubr.bf16.gmra.mrb[0].mxu0 %v990
    %v1026 = vpop.f32.mrb[0].mxu0
    %v1027 = vadd.f32 0.0, %v1026
    %v1028 = vpop.f32.mrb[0].mxu0
    %v1029 = vpop.f32.mrb[0].mxu0
    %v1030 = vpop.f32.mrb[0].mxu0
    %1031 = vdwg.mxu0
    %v1032 = vadd.f32 %v987, %v1027
    %v1033 = vxor.u32 %v1032, 2147483648
    %v1034 = vmul.f32 %v1033, 1.442695
    %v1035 = vpow.pop %v1034
    %v1036 = vadd.f32 %v1035, 1.0
    %v1037 = vrcp.pop %v1036
    %v1038 = vmul.f32 1.0, %v1037
    %v1039 = vtanh.pop %v1032
    %1041 = vrot.lane.b32.xlu0 %v985, 32
    %v1042 = vpop.permute.xlu0 %1041
    %v1044 = vmul.f32 %v1038, %v1042
    %1046 = vrot.lane.b32.xlu0 %v1039, 64
    %v1047 = vpop.permute.xlu0 %1046
    %v1049 = vmul.f32 %v1038, %v1047
    %1051 = vrot.lane.b32.xlu0 %v1049, 32
    %v1052 = vpop.permute.xlu0 %1051
    %v1054 = vadd.f32 %v1044, %v1052
    %v1055 = vtanh.pop %v1054
    %1057 = vrot.lane.b32.xlu0 %v1055, 64
    %v1058 = vpop.permute.xlu0 %1057
    %v1060 = vmul.f32 %v1038, %v1058
    %s1061 = scalar_lea.vmem [#allocation7], 48
    %v1062 = vld [vmem:[%s1061] sm:$0xff]
    %1064 = vrot.lane.b32.xlu0 %v978, 96
    %v1065 = vpop.permute.xlu0 %1064
    %v1067 = vsub.f32 %v1060, %v1065
    %1069 = vrot.lane.b32.xlu0 %v1067, 32
    %v1070 = vpop.permute.xlu0 %1069
    %v1072 = vmul.f32 %v1062, %v1070
    %v1073 = vadd.f32 %v978, %v1072
    %v1074 = vsub.f32 %v1054, %v1042
    %1076 = vrot.lane.b32.xlu0 %v1074, 96
    %v1077 = vpop.permute.xlu0 %1076
    %v1079 = vmul.f32 %v1062, %v1077
    %v1080 = vadd.f32 %v985, %v1079
    %s1081 = scalar_lea.vmem [#allocation2], 56
    %v1082 = vld [vmem:[%s1081] sm:$0xff]
    %v1083 = vpack.c.bf16 %v1073, %v1073
    %v1085 = vsel %vm179, %v1083, 0
    %1087 = vmatprep.subr.bf16.mxu0 0
    %1088 = vmatpush1.bf16.msra.mxu0 %v426
    %1089 = vmatprep.subr.bf16.mxu0 0
    %1090 = vmatpush1.bf16.msra.mxu0 %v427
    %1091 = vmatprep.subr.bf16.mxu0 0
    %1092 = vmatpush1.bf16.msra.mxu0 0
    %1093 = vmatprep.subr.bf16.mxu0 0
    %1094 = vmatpush1.bf16.msra.mxu0 0
    %1095 = vmatprep.subr.bf16.mxu0 0
    %1096 = vmatpush1.bf16.msra.mxu0 0
    %1097 = vmatprep.subr.bf16.mxu0 0
    %1098 = vmatpush1.bf16.msra.mxu0 0
    %1099 = vmatprep.subr.bf16.mxu0 0
    %1100 = vmatpush1.bf16.msra.mxu0 0
    %1101 = vmatprep.subr.bf16.mxu0 0
    %1102 = vmatpush1.bf16.msra.mxu0 0
    %1103 = vmatprep.subr.bf16.mxu0 0
    %1104 = vmatpush1.bf16.msra.mxu0 0
    %1105 = vmatprep.subr.bf16.mxu0 0
    %1106 = vmatpush1.bf16.msra.mxu0 0
    %1107 = vmatprep.subr.bf16.mxu0 0
    %1108 = vmatpush1.bf16.msra.mxu0 0
    %1109 = vmatprep.subr.bf16.mxu0 0
    %1110 = vmatpush1.bf16.msra.mxu0 0
    %1111 = vmatprep.subr.bf16.mxu0 0
    %1112 = vmatpush1.bf16.msra.mxu0 0
    %1113 = vmatprep.subr.bf16.mxu0 0
    %1114 = vmatpush1.bf16.msra.mxu0 0
    %1115 = vmatprep.subr.bf16.mxu0 0
    %1116 = vmatpush1.bf16.msra.mxu0 0
    %1117 = vmatprep.subr.bf16.mxu0 0
    %1118 = vmatpush1.bf16.msra.mxu0 0
    %1119 = vmatprep.mubr.bf16.mxu0 0
    %1120 = vmatmul.mubr.bf16.gmra.mrb[0].mxu0 %v1085
    %v1121 = vpop.f32.mrb[0].mxu0
    %v1122 = vadd.f32 0.0, %v1121
    %v1123 = vpop.f32.mrb[0].mxu0
    %v1124 = vpop.f32.mrb[0].mxu0
    %v1125 = vpop.f32.mrb[0].mxu0
    %1126 = vdwg.mxu0
    %v1127 = vadd.f32 %v1082, %v1122
    %v1128 = vxor.u32 %v1127, 2147483648
    %v1129 = vmul.f32 %v1128, 1.442695
    %v1130 = vpow.pop %v1129
    %v1131 = vadd.f32 %v1130, 1.0
    %v1132 = vrcp.pop %v1131
    %v1133 = vmul.f32 1.0, %v1132
    %v1134 = vtanh.pop %v1127
    %1136 = vrot.lane.b32.xlu0 %v1080, 32
    %v1137 = vpop.permute.xlu0 %1136
    %v1139 = vmul.f32 %v1133, %v1137
    %1141 = vrot.lane.b32.xlu0 %v1134, 64
    %v1142 = vpop.permute.xlu0 %1141
    %v1144 = vmul.f32 %v1133, %v1142
    %1146 = vrot.lane.b32.xlu0 %v1144, 32
    %v1147 = vpop.permute.xlu0 %1146
    %v1149 = vadd.f32 %v1139, %v1147
    %v1150 = vtanh.pop %v1149
    %1152 = vrot.lane.b32.xlu0 %v1150, 64
    %v1153 = vpop.permute.xlu0 %1152
    %v1155 = vmul.f32 %v1133, %v1153
    %s1156 = scalar_lea.vmem [#allocation7], 56
    %v1157 = vld [vmem:[%s1156] sm:$0xff]
    %1159 = vrot.lane.b32.xlu0 %v1073, 96
    %v1160 = vpop.permute.xlu0 %1159
    %v1162 = vsub.f32 %v1155, %v1160
    %1164 = vrot.lane.b32.xlu0 %v1162, 32
    %v1165 = vpop.permute.xlu0 %1164
    %v1167 = vmul.f32 %v1157, %v1165
    %v1168 = vadd.f32 %v1073, %v1167
    %v1169 = vsub.f32 %v1149, %v1137
    %1171 = vrot.lane.b32.xlu0 %v1169, 96
    %v1172 = vpop.permute.xlu0 %1171
    %v1174 = vmul.f32 %v1157, %v1172
    %v1175 = vadd.f32 %v1080, %v1174
    %s1176 = scalar_lea.vmem [#allocation2], 64
    %v1177 = vld [vmem:[%s1176] sm:$0xff]
    %v1178 = vpack.c.bf16 %v1168, %v1168
    %v1180 = vsel %vm179, %v1178, 0
    %1182 = vmatprep.subr.bf16.mxu0 0
    %1183 = vmatpush1.bf16.msra.mxu0 %v426
    %1184 = vmatprep.subr.bf16.mxu0 0
    %1185 = vmatpush1.bf16.msra.mxu0 %v427
    %1186 = vmatprep.subr.bf16.mxu0 0
    %1187 = vmatpush1.bf16.msra.mxu0 0
    %1188 = vmatprep.subr.bf16.mxu0 0
    %1189 = vmatpush1.bf16.msra.mxu0 0
    %1190 = vmatprep.subr.bf16.mxu0 0
    %1191 = vmatpush1.bf16.msra.mxu0 0
    %1192 = vmatprep.subr.bf16.mxu0 0
    %1193 = vmatpush1.bf16.msra.mxu0 0
    %1194 = vmatprep.subr.bf16.mxu0 0
    %1195 = vmatpush1.bf16.msra.mxu0 0
    %1196 = vmatprep.subr.bf16.mxu0 0
    %1197 = vmatpush1.bf16.msra.mxu0 0
    %1198 = vmatprep.subr.bf16.mxu0 0
    %1199 = vmatpush1.bf16.msra.mxu0 0
    %1200 = vmatprep.subr.bf16.mxu0 0
    %1201 = vmatpush1.bf16.msra.mxu0 0
    %1202 = vmatprep.subr.bf16.mxu0 0
    %1203 = vmatpush1.bf16.msra.mxu0 0
    %1204 = vmatprep.subr.bf16.mxu0 0
    %1205 = vmatpush1.bf16.msra.mxu0 0
    %1206 = vmatprep.subr.bf16.mxu0 0
    %1207 = vmatpush1.bf16.msra.mxu0 0
    %1208 = vmatprep.subr.bf16.mxu0 0
    %1209 = vmatpush1.bf16.msra.mxu0 0
    %1210 = vmatprep.subr.bf16.mxu0 0
    %1211 = vmatpush1.bf16.msra.mxu0 0
    %1212 = vmatprep.subr.bf16.mxu0 0
    %1213 = vmatpush1.bf16.msra.mxu0 0
    %1214 = vmatprep.mubr.bf16.mxu0 0
    %1215 = vmatmul.mubr.bf16.gmra.mrb[0].mxu0 %v1180
    %v1216 = vpop.f32.mrb[0].mxu0
    %v1217 = vadd.f32 0.0, %v1216
    %v1218 = vpop.f32.mrb[0].mxu0
    %v1219 = vpop.f32.mrb[0].mxu0
    %v1220 = vpop.f32.mrb[0].mxu0
    %1221 = vdwg.mxu0
    %v1222 = vadd.f32 %v1177, %v1217
    %v1223 = vxor.u32 %v1222, 2147483648
    %v1224 = vmul.f32 %v1223, 1.442695
    %v1225 = vpow.pop %v1224
    %v1226 = vadd.f32 %v1225, 1.0
    %v1227 = vrcp.pop %v1226
    %v1228 = vmul.f32 1.0, %v1227
    %v1229 = vtanh.pop %v1222
    %1231 = vrot.lane.b32.xlu0 %v1175, 32
    %v1232 = vpop.permute.xlu0 %1231
    %v1234 = vmul.f32 %v1228, %v1232
    %1236 = vrot.lane.b32.xlu0 %v1229, 64
    %v1237 = vpop.permute.xlu0 %1236
    %v1239 = vmul.f32 %v1228, %v1237
    %1241 = vrot.lane.b32.xlu0 %v1239, 32
    %v1242 = vpop.permute.xlu0 %1241
    %v1244 = vadd.f32 %v1234, %v1242
    %v1245 = vtanh.pop %v1244
    %1247 = vrot.lane.b32.xlu0 %v1245, 64
    %v1248 = vpop.permute.xlu0 %1247
    %v1250 = vmul.f32 %v1228, %v1248
    %s1251 = scalar_lea.vmem [#allocation7], 64
    %v1252 = vld [vmem:[%s1251] sm:$0xff]
    %1254 = vrot.lane.b32.xlu0 %v1168, 96
    %v1255 = vpop.permute.xlu0 %1254
    %v1257 = vsub.f32 %v1250, %v1255
    %1259 = vrot.lane.b32.xlu0 %v1257, 32
    %v1260 = vpop.permute.xlu0 %1259
    %v1262 = vmul.f32 %v1252, %v1260
    %v1263 = vadd.f32 %v1168, %v1262
    %v1264 = vsub.f32 %v1244, %v1232
    %1266 = vrot.lane.b32.xlu0 %v1264, 96
    %v1267 = vpop.permute.xlu0 %1266
    %v1269 = vmul.f32 %v1252, %v1267
    %v1270 = vadd.f32 %v1175, %v1269
    %s1271 = scalar_lea.vmem [#allocation2], 72
    %v1272 = vld [vmem:[%s1271] sm:$0xff]
    %v1273 = vpack.c.bf16 %v1263, %v1263
    %v1275 = vsel %vm179, %v1273, 0
    %1277 = vmatprep.subr.bf16.mxu0 0
    %1278 = vmatpush1.bf16.msra.mxu0 %v426
    %1279 = vmatprep.subr.bf16.mxu0 0
    %1280 = vmatpush1.bf16.msra.mxu0 %v427
    %1281 = vmatprep.subr.bf16.mxu0 0
    %1282 = vmatpush1.bf16.msra.mxu0 0
    %1283 = vmatprep.subr.bf16.mxu0 0
    %1284 = vmatpush1.bf16.msra.mxu0 0
    %1285 = vmatprep.subr.bf16.mxu0 0
    %1286 = vmatpush1.bf16.msra.mxu0 0
    %1287 = vmatprep.subr.bf16.mxu0 0
    %1288 = vmatpush1.bf16.msra.mxu0 0
    %1289 = vmatprep.subr.bf16.mxu0 0
    %1290 = vmatpush1.bf16.msra.mxu0 0
    %1291 = vmatprep.subr.bf16.mxu0 0
    %1292 = vmatpush1.bf16.msra.mxu0 0
    %1293 = vmatprep.subr.bf16.mxu0 0
    %1294 = vmatpush1.bf16.msra.mxu0 0
    %1295 = vmatprep.subr.bf16.mxu0 0
    %1296 = vmatpush1.bf16.msra.mxu0 0
    %1297 = vmatprep.subr.bf16.mxu0 0
    %1298 = vmatpush1.bf16.msra.mxu0 0
    %1299 = vmatprep.subr.bf16.mxu0 0
    %1300 = vmatpush1.bf16.msra.mxu0 0
    %1301 = vmatprep.subr.bf16.mxu0 0
    %1302 = vmatpush1.bf16.msra.mxu0 0
    %1303 = vmatprep.subr.bf16.mxu0 0
    %1304 = vmatpush1.bf16.msra.mxu0 0
    %1305 = vmatprep.subr.bf16.mxu0 0
    %1306 = vmatpush1.bf16.msra.mxu0 0
    %1307 = vmatprep.subr.bf16.mxu0 0
    %1308 = vmatpush1.bf16.msra.mxu0 0
    %1309 = vmatprep.mubr.bf16.mxu0 0
    %1310 = vmatmul.mubr.bf16.gmra.mrb[0].mxu0 %v1275
    %v1311 = vpop.f32.mrb[0].mxu0
    %v1312 = vadd.f32 0.0, %v1311
    %v1313 = vpop.f32.mrb[0].mxu0
    %v1314 = vpop.f32.mrb[0].mxu0
    %v1315 = vpop.f32.mrb[0].mxu0
    %1316 = vdwg.mxu0
    %v1317 = vadd.f32 %v1272, %v1312
    %v1318 = vxor.u32 %v1317, 2147483648
    %v1319 = vmul.f32 %v1318, 1.442695
    %v1320 = vpow.pop %v1319
    %v1321 = vadd.f32 %v1320, 1.0
    %v1322 = vrcp.pop %v1321
    %v1323 = vmul.f32 1.0, %v1322
    %v1324 = vtanh.pop %v1317
    %1326 = vrot.lane.b32.xlu0 %v1270, 32
    %v1327 = vpop.permute.xlu0 %1326
    %v1329 = vmul.f32 %v1323, %v1327
    %1331 = vrot.lane.b32.xlu0 %v1324, 64
    %v1332 = vpop.permute.xlu0 %1331
    %v1334 = vmul.f32 %v1323, %v1332
    %1336 = vrot.lane.b32.xlu0 %v1334, 32
    %v1337 = vpop.permute.xlu0 %1336
    %v1339 = vadd.f32 %v1329, %v1337
    %v1340 = vtanh.pop %v1339
    %1342 = vrot.lane.b32.xlu0 %v1340, 64
    %v1343 = vpop.permute.xlu0 %1342
    %v1345 = vmul.f32 %v1323, %v1343
    %s1346 = scalar_lea.vmem [#allocation7], 72
    %v1347 = vld [vmem:[%s1346] sm:$0xff]
    %1349 = vrot.lane.b32.xlu0 %v1263, 96
    %v1350 = vpop.permute.xlu0 %1349
    %v1352 = vsub.f32 %v1345, %v1350
    %1354 = vrot.lane.b32.xlu0 %v1352, 32
    %v1355 = vpop.permute.xlu0 %1354
    %v1357 = vmul.f32 %v1347, %v1355
    %v1358 = vadd.f32 %v1263, %v1357
    %v1359 = vsub.f32 %v1339, %v1327
    %1361 = vrot.lane.b32.xlu0 %v1359, 96
    %v1362 = vpop.permute.xlu0 %1361
    %v1364 = vmul.f32 %v1347, %v1362
    %v1365 = vadd.f32 %v1270, %v1364
    %v1366 = vld [vmem:[#allocation3] sm:$0xff]
    %v1367 = vpack.c.bf16 %v1358, %v1358
    %v1372 = vunpack.c.l.b16 %v413
    %v1373 = vunpack.c.l.b16 %v414
    %v1374 = vunpack.c.l.b16 %v415
    %v1375 = vunpack.c.l.b16 %v416
    %v1376 = vpack.c.b16 %v1373, %v1372
    %v1377 = vpack.c.b16 %v1375, %v1374
    %v1381 = vsel %vm179, %v1367, 0
    %1383 = vmatprep.subr.bf16.mxu0 0
    %1384 = vmatpush1.bf16.msra.mxu0 %v1376
    %1385 = vmatprep.subr.bf16.mxu0 0
    %1386 = vmatpush1.bf16.msra.mxu0 %v1377
    %1387 = vmatprep.subr.bf16.mxu0 0
    %1388 = vmatpush1.bf16.msra.mxu0 0
    %1389 = vmatprep.subr.bf16.mxu0 0
    %1390 = vmatpush1.bf16.msra.mxu0 0
    %1391 = vmatprep.subr.bf16.mxu0 0
    %1392 = vmatpush1.bf16.msra.mxu0 0
    %1393 = vmatprep.subr.bf16.mxu0 0
    %1394 = vmatpush1.bf16.msra.mxu0 0
    %1395 = vmatprep.subr.bf16.mxu0 0
    %1396 = vmatpush1.bf16.msra.mxu0 0
    %1397 = vmatprep.subr.bf16.mxu0 0
    %1398 = vmatpush1.bf16.msra.mxu0 0
    %1399 = vmatprep.subr.bf16.mxu0 0
    %1400 = vmatpush1.bf16.msra.mxu0 0
    %1401 = vmatprep.subr.bf16.mxu0 0
    %1402 = vmatpush1.bf16.msra.mxu0 0
    %1403 = vmatprep.subr.bf16.mxu0 0
    %1404 = vmatpush1.bf16.msra.mxu0 0
    %1405 = vmatprep.subr.bf16.mxu0 0
    %1406 = vmatpush1.bf16.msra.mxu0 0
    %1407 = vmatprep.subr.bf16.mxu0 0
    %1408 = vmatpush1.bf16.msra.mxu0 0
    %1409 = vmatprep.subr.bf16.mxu0 0
    %1410 = vmatpush1.bf16.msra.mxu0 0
    %1411 = vmatprep.subr.bf16.mxu0 0
    %1412 = vmatpush1.bf16.msra.mxu0 0
    %1413 = vmatprep.subr.bf16.mxu0 0
    %1414 = vmatpush1.bf16.msra.mxu0 0
    %1415 = vmatprep.mubr.bf16.mxu0 0
    %1416 = vmatmul.mubr.bf16.gmra.mrb[0].mxu0 %v1381
    %v1417 = vpop.f32.mrb[0].mxu0
    %v1418 = vadd.f32 0.0, %v1417
    %v1419 = vpop.f32.mrb[0].mxu0
    %v1420 = vpop.f32.mrb[0].mxu0
    %v1421 = vpop.f32.mrb[0].mxu0
    %1422 = vdwg.mxu0
    %v1423 = vadd.f32 %v1366, %v1418
    %v1424 = vxor.u32 %v1423, 2147483648
    %v1425 = vmul.f32 %v1424, 1.442695
    %v1426 = vpow.pop %v1425
    %v1427 = vadd.f32 %v1426, 1.0
    %v1428 = vrcp.pop %v1427
    %v1429 = vmul.f32 1.0, %v1428
    %v1430 = vtanh.pop %v1423
    %1432 = vrot.lane.b32.xlu0 %v1365, 32
    %v1433 = vpop.permute.xlu0 %1432
    %v1435 = vmul.f32 %v1429, %v1433
    %1437 = vrot.lane.b32.xlu0 %v1430, 64
    %v1438 = vpop.permute.xlu0 %1437
    %v1440 = vmul.f32 %v1429, %v1438
    %1442 = vrot.lane.b32.xlu0 %v1440, 32
    %v1443 = vpop.permute.xlu0 %1442
    %v1445 = vadd.f32 %v1435, %v1443
    %v1446 = vtanh.pop %v1445
    %1448 = vrot.lane.b32.xlu0 %v1446, 64
    %v1449 = vpop.permute.xlu0 %1448
    %v1451 = vmul.f32 %v1429, %v1449
    %1453 = vrot.lane.b32.xlu0 %v1451, 32
    %v1454 = vpop.permute.xlu0 %1453
    %1456 = vst.msk [vmem:[#allocation4] sm:$0xff] %vm179, %v1454
    %s1457 = scalar_lea.vmem [#allocation3], 8
    %v1458 = vld [vmem:[%s1457] sm:$0xff]
    %v1459 = vpack.c.bf16 %v1451, %v1451
    %1461 = vrot.lane.b32.xlu0 %v1459, 32
    %v1462 = vpop.permute.xlu0 %1461
    %v1464 = vsel %vm179, %v1462, 0
    %1466 = vmatprep.subr.bf16.mxu0 0
    %1467 = vmatpush1.bf16.msra.mxu0 %v1376
    %1468 = vmatprep.subr.bf16.mxu0 0
    %1469 = vmatpush1.bf16.msra.mxu0 %v1377
    %1470 = vmatprep.subr.bf16.mxu0 0
    %1471 = vmatpush1.bf16.msra.mxu0 0
    %1472 = vmatprep.subr.bf16.mxu0 0
    %1473 = vmatpush1.bf16.msra.mxu0 0
    %1474 = vmatprep.subr.bf16.mxu0 0
    %1475 = vmatpush1.bf16.msra.mxu0 0
    %1476 = vmatprep.subr.bf16.mxu0 0
    %1477 = vmatpush1.bf16.msra.mxu0 0
    %1478 = vmatprep.subr.bf16.mxu0 0
    %1479 = vmatpush1.bf16.msra.mxu0 0
    %1480 = vmatprep.subr.bf16.mxu0 0
    %1481 = vmatpush1.bf16.msra.mxu0 0
    %1482 = vmatprep.subr.bf16.mxu0 0
    %1483 = vmatpush1.bf16.msra.mxu0 0
    %1484 = vmatprep.subr.bf16.mxu0 0
    %1485 = vmatpush1.bf16.msra.mxu0 0
    %1486 = vmatprep.subr.bf16.mxu0 0
    %1487 = vmatpush1.bf16.msra.mxu0 0
    %1488 = vmatprep.subr.bf16.mxu0 0
    %1489 = vmatpush1.bf16.msra.mxu0 0
    %1490 = vmatprep.subr.bf16.mxu0 0
    %1491 = vmatpush1.bf16.msra.mxu0 0
    %1492 = vmatprep.subr.bf16.mxu0 0
    %1493 = vmatpush1.bf16.msra.mxu0 0
    %1494 = vmatprep.subr.bf16.mxu0 0
    %1495 = vmatpush1.bf16.msra.mxu0 0
    %1496 = vmatprep.subr.bf16.mxu0 0
    %1497 = vmatpush1.bf16.msra.mxu0 0
    %1498 = vmatprep.mubr.bf16.mxu0 0
    %1499 = vmatmul.mubr.bf16.gmra.mrb[0].mxu0 %v1464
    %v1500 = vpop.f32.mrb[0].mxu0
    %v1501 = vadd.f32 0.0, %v1500
    %v1502 = vpop.f32.mrb[0].mxu0
    %v1503 = vpop.f32.mrb[0].mxu0
    %v1504 = vpop.f32.mrb[0].mxu0
    %1505 = vdwg.mxu0
    %v1506 = vadd.f32 %v1458, %v1501
    %v1507 = vxor.u32 %v1506, 2147483648
    %v1508 = vmul.f32 %v1507, 1.442695
    %v1509 = vpow.pop %v1508
    %v1510 = vadd.f32 %v1509, 1.0
    %v1511 = vrcp.pop %v1510
    %v1512 = vmul.f32 1.0, %v1511
    %v1513 = vtanh.pop %v1506
    %v1514 = vmul.f32 %v1512, %v1445
    %1516 = vrot.lane.b32.xlu0 %v1513, 64
    %v1517 = vpop.permute.xlu0 %1516
    %v1519 = vmul.f32 %v1512, %v1517
    %1521 = vrot.lane.b32.xlu0 %v1519, 32
    %v1522 = vpop.permute.xlu0 %1521
    %v1524 = vadd.f32 %v1514, %v1522
    %v1525 = vtanh.pop %v1524
    %1527 = vrot.lane.b32.xlu0 %v1525, 64
    %v1528 = vpop.permute.xlu0 %1527
    %v1530 = vmul.f32 %v1512, %v1528
    %1532 = vrot.lane.b32.xlu0 %v1530, 32
    %v1533 = vpop.permute.xlu0 %1532
    %s1535 = scalar_lea.vmem [#allocation4], 8
    %1536 = vst.msk [vmem:[%s1535] sm:$0xff] %vm179, %v1533
    %s1537 = scalar_lea.vmem [#allocation3], 16
    %v1538 = vld [vmem:[%s1537] sm:$0xff]
    %v1539 = vpack.c.bf16 %v1530, %v1530
    %1541 = vrot.lane.b32.xlu0 %v1539, 32
    %v1542 = vpop.permute.xlu0 %1541
    %v1544 = vsel %vm179, %v1542, 0
    %1546 = vmatprep.subr.bf16.mxu0 0
    %1547 = vmatpush1.bf16.msra.mxu0 %v1376
    %1548 = vmatprep.subr.bf16.mxu0 0
    %1549 = vmatpush1.bf16.msra.mxu0 %v1377
    %1550 = vmatprep.subr.bf16.mxu0 0
    %1551 = vmatpush1.bf16.msra.mxu0 0
    %1552 = vmatprep.subr.bf16.mxu0 0
    %1553 = vmatpush1.bf16.msra.mxu0 0
    %1554 = vmatprep.subr.bf16.mxu0 0
    %1555 = vmatpush1.bf16.msra.mxu0 0
    %1556 = vmatprep.subr.bf16.mxu0 0
    %1557 = vmatpush1.bf16.msra.mxu0 0
    %1558 = vmatprep.subr.bf16.mxu0 0
    %1559 = vmatpush1.bf16.msra.mxu0 0
    %1560 = vmatprep.subr.bf16.mxu0 0
    %1561 = vmatpush1.bf16.msra.mxu0 0
    %1562 = vmatprep.subr.bf16.mxu0 0
    %1563 = vmatpush1.bf16.msra.mxu0 0
    %1564 = vmatprep.subr.bf16.mxu0 0
    %1565 = vmatpush1.bf16.msra.mxu0 0
    %1566 = vmatprep.subr.bf16.mxu0 0
    %1567 = vmatpush1.bf16.msra.mxu0 0
    %1568 = vmatprep.subr.bf16.mxu0 0
    %1569 = vmatpush1.bf16.msra.mxu0 0
    %1570 = vmatprep.subr.bf16.mxu0 0
    %1571 = vmatpush1.bf16.msra.mxu0 0
    %1572 = vmatprep.subr.bf16.mxu0 0
    %1573 = vmatpush1.bf16.msra.mxu0 0
    %1574 = vmatprep.subr.bf16.mxu0 0
    %1575 = vmatpush1.bf16.msra.mxu0 0
    %1576 = vmatprep.subr.bf16.mxu0 0
    %1577 = vmatpush1.bf16.msra.mxu0 0
    %1578 = vmatprep.mubr.bf16.mxu0 0
    %1579 = vmatmul.mubr.bf16.gmra.mrb[0].mxu0 %v1544
    %v1580 = vpop.f32.mrb[0].mxu0
    %v1581 = vadd.f32 0.0, %v1580
    %v1582 = vpop.f32.mrb[0].mxu0
    %v1583 = vpop.f32.mrb[0].mxu0
    %v1584 = vpop.f32.mrb[0].mxu0
    %1585 = vdwg.mxu0
    %v1586 = vadd.f32 %v1538, %v1581
    %v1587 = vxor.u32 %v1586, 2147483648
    %v1588 = vmul.f32 %v1587, 1.442695
    %v1589 = vpow.pop %v1588
    %v1590 = vadd.f32 %v1589, 1.0
    %v1591 = vrcp.pop %v1590
    %v1592 = vmul.f32 1.0, %v1591
    %v1593 = vtanh.pop %v1586
    %v1594 = vmul.f32 %v1592, %v1524
    %1596 = vrot.lane.b32.xlu0 %v1593, 64
    %v1597 = vpop.permute.xlu0 %1596
    %v1599 = vmul.f32 %v1592, %v1597
    %1601 = vrot.lane.b32.xlu0 %v1599, 32
    %v1602 = vpop.permute.xlu0 %1601
    %v1604 = vadd.f32 %v1594, %v1602
    %v1605 = vtanh.pop %v1604
    %1607 = vrot.lane.b32.xlu0 %v1605, 64
    %v1608 = vpop.permute.xlu0 %1607
    %v1610 = vmul.f32 %v1592, %v1608
    %1612 = vrot.lane.b32.xlu0 %v1610, 32
    %v1613 = vpop.permute.xlu0 %1612
    %s1615 = scalar_lea.vmem [#allocation4], 16
    %1616 = vst.msk [vmem:[%s1615] sm:$0xff] %vm179, %v1613
    %s1617 = scalar_lea.vmem [#allocation3], 24
    %v1618 = vld [vmem:[%s1617] sm:$0xff]
    %v1619 = vpack.c.bf16 %v1610, %v1610
    %1621 = vrot.lane.b32.xlu0 %v1619, 32
    %v1622 = vpop.permute.xlu0 %1621
    %v1624 = vsel %vm179, %v1622, 0
    %1626 = vmatprep.subr.bf16.mxu0 0
    %1627 = vmatpush1.bf16.msra.mxu0 %v1376
    %1628 = vmatprep.subr.bf16.mxu0 0
    %1629 = vmatpush1.bf16.msra.mxu0 %v1377
    %1630 = vmatprep.subr.bf16.mxu0 0
    %1631 = vmatpush1.bf16.msra.mxu0 0
    %1632 = vmatprep.subr.bf16.mxu0 0
    %1633 = vmatpush1.bf16.msra.mxu0 0
    %1634 = vmatprep.subr.bf16.mxu0 0
    %1635 = vmatpush1.bf16.msra.mxu0 0
    %1636 = vmatprep.subr.bf16.mxu0 0
    %1637 = vmatpush1.bf16.msra.mxu0 0
    %1638 = vmatprep.subr.bf16.mxu0 0
    %1639 = vmatpush1.bf16.msra.mxu0 0
    %1640 = vmatprep.subr.bf16.mxu0 0
    %1641 = vmatpush1.bf16.msra.mxu0 0
    %1642 = vmatprep.subr.bf16.mxu0 0
    %1643 = vmatpush1.bf16.msra.mxu0 0
    %1644 = vmatprep.subr.bf16.mxu0 0
    %1645 = vmatpush1.bf16.msra.mxu0 0
    %1646 = vmatprep.subr.bf16.mxu0 0
    %1647 = vmatpush1.bf16.msra.mxu0 0
    %1648 = vmatprep.subr.bf16.mxu0 0
    %1649 = vmatpush1.bf16.msra.mxu0 0
    %1650 = vmatprep.subr.bf16.mxu0 0
    %1651 = vmatpush1.bf16.msra.mxu0 0
    %1652 = vmatprep.subr.bf16.mxu0 0
    %1653 = vmatpush1.bf16.msra.mxu0 0
    %1654 = vmatprep.subr.bf16.mxu0 0
    %1655 = vmatpush1.bf16.msra.mxu0 0
    %1656 = vmatprep.subr.bf16.mxu0 0
    %1657 = vmatpush1.bf16.msra.mxu0 0
    %1658 = vmatprep.mubr.bf16.mxu0 0
    %1659 = vmatmul.mubr.bf16.gmra.mrb[0].mxu0 %v1624
    %v1660 = vpop.f32.mrb[0].mxu0
    %v1661 = vadd.f32 0.0, %v1660
    %v1662 = vpop.f32.mrb[0].mxu0
    %v1663 = vpop.f32.mrb[0].mxu0
    %v1664 = vpop.f32.mrb[0].mxu0
    %1665 = vdwg.mxu0
    %v1666 = vadd.f32 %v1618, %v1661
    %v1667 = vxor.u32 %v1666, 2147483648
    %v1668 = vmul.f32 %v1667, 1.442695
    %v1669 = vpow.pop %v1668
    %v1670 = vadd.f32 %v1669, 1.0
    %v1671 = vrcp.pop %v1670
    %v1672 = vmul.f32 1.0, %v1671
    %v1673 = vtanh.pop %v1666
    %v1674 = vmul.f32 %v1672, %v1604
    %1676 = vrot.lane.b32.xlu0 %v1673, 64
    %v1677 = vpop.permute.xlu0 %1676
    %v1679 = vmul.f32 %v1672, %v1677
    %1681 = vrot.lane.b32.xlu0 %v1679, 32
    %v1682 = vpop.permute.xlu0 %1681
    %v1684 = vadd.f32 %v1674, %v1682
    %v1685 = vtanh.pop %v1684
    %1687 = vrot.lane.b32.xlu0 %v1685, 64
    %v1688 = vpop.permute.xlu0 %1687
    %v1690 = vmul.f32 %v1672, %v1688
    %1692 = vrot.lane.b32.xlu0 %v1690, 32
    %v1693 = vpop.permute.xlu0 %1692
    %s1695 = scalar_lea.vmem [#allocation4], 24
    %1696 = vst.msk [vmem:[%s1695] sm:$0xff] %vm179, %v1693
    %s1697 = scalar_lea.vmem [#allocation3], 32
    %v1698 = vld [vmem:[%s1697] sm:$0xff]
    %v1699 = vpack.c.bf16 %v1690, %v1690
    %1701 = vrot.lane.b32.xlu0 %v1699, 32
    %v1702 = vpop.permute.xlu0 %1701
    %v1704 = vsel %vm179, %v1702, 0
    %1706 = vmatprep.subr.bf16.mxu0 0
    %1707 = vmatpush1.bf16.msra.mxu0 %v1376
    %1708 = vmatprep.subr.bf16.mxu0 0
    %1709 = vmatpush1.bf16.msra.mxu0 %v1377
    %1710 = vmatprep.subr.bf16.mxu0 0
    %1711 = vmatpush1.bf16.msra.mxu0 0
    %1712 = vmatprep.subr.bf16.mxu0 0
    %1713 = vmatpush1.bf16.msra.mxu0 0
    %1714 = vmatprep.subr.bf16.mxu0 0
    %1715 = vmatpush1.bf16.msra.mxu0 0
    %1716 = vmatprep.subr.bf16.mxu0 0
    %1717 = vmatpush1.bf16.msra.mxu0 0
    %1718 = vmatprep.subr.bf16.mxu0 0
    %1719 = vmatpush1.bf16.msra.mxu0 0
    %1720 = vmatprep.subr.bf16.mxu0 0
    %1721 = vmatpush1.bf16.msra.mxu0 0
    %1722 = vmatprep.subr.bf16.mxu0 0
    %1723 = vmatpush1.bf16.msra.mxu0 0
    %1724 = vmatprep.subr.bf16.mxu0 0
    %1725 = vmatpush1.bf16.msra.mxu0 0
    %1726 = vmatprep.subr.bf16.mxu0 0
    %1727 = vmatpush1.bf16.msra.mxu0 0
    %1728 = vmatprep.subr.bf16.mxu0 0
    %1729 = vmatpush1.bf16.msra.mxu0 0
    %1730 = vmatprep.subr.bf16.mxu0 0
    %1731 = vmatpush1.bf16.msra.mxu0 0
    %1732 = vmatprep.subr.bf16.mxu0 0
    %1733 = vmatpush1.bf16.msra.mxu0 0
    %1734 = vmatprep.subr.bf16.mxu0 0
    %1735 = vmatpush1.bf16.msra.mxu0 0
    %1736 = vmatprep.subr.bf16.mxu0 0
    %1737 = vmatpush1.bf16.msra.mxu0 0
    %1738 = vmatprep.mubr.bf16.mxu0 0
    %1739 = vmatmul.mubr.bf16.gmra.mrb[0].mxu0 %v1704
    %v1740 = vpop.f32.mrb[0].mxu0
    %v1741 = vadd.f32 0.0, %v1740
    %v1742 = vpop.f32.mrb[0].mxu0
    %v1743 = vpop.f32.mrb[0].mxu0
    %v1744 = vpop.f32.mrb[0].mxu0
    %1745 = vdwg.mxu0
    %v1746 = vadd.f32 %v1698, %v1741
    %v1747 = vxor.u32 %v1746, 2147483648
    %v1748 = vmul.f32 %v1747, 1.442695
    %v1749 = vpow.pop %v1748
    %v1750 = vadd.f32 %v1749, 1.0
    %v1751 = vrcp.pop %v1750
    %v1752 = vmul.f32 1.0, %v1751
    %v1753 = vtanh.pop %v1746
    %v1754 = vmul.f32 %v1752, %v1684
    %1756 = vrot.lane.b32.xlu0 %v1753, 64
    %v1757 = vpop.permute.xlu0 %1756
    %v1759 = vmul.f32 %v1752, %v1757
    %1761 = vrot.lane.b32.xlu0 %v1759, 32
    %v1762 = vpop.permute.xlu0 %1761
    %v1764 = vadd.f32 %v1754, %v1762
    %v1765 = vtanh.pop %v1764
    %1767 = vrot.lane.b32.xlu0 %v1765, 64
    %v1768 = vpop.permute.xlu0 %1767
    %v1770 = vmul.f32 %v1752, %v1768
    %1772 = vrot.lane.b32.xlu0 %v1770, 32
    %v1773 = vpop.permute.xlu0 %1772
    %s1775 = scalar_lea.vmem [#allocation4], 32
    %1776 = vst.msk [vmem:[%s1775] sm:$0xff] %vm179, %v1773
    %s1777 = scalar_lea.vmem [#allocation3], 40
    %v1778 = vld [vmem:[%s1777] sm:$0xff]
    %v1779 = vpack.c.bf16 %v1770, %v1770
    %1781 = vrot.lane.b32.xlu0 %v1779, 32
    %v1782 = vpop.permute.xlu0 %1781
    %v1784 = vsel %vm179, %v1782, 0
    %1786 = vmatprep.subr.bf16.mxu0 0
    %1787 = vmatpush1.bf16.msra.mxu0 %v1376
    %1788 = vmatprep.subr.bf16.mxu0 0
    %1789 = vmatpush1.bf16.msra.mxu0 %v1377
    %1790 = vmatprep.subr.bf16.mxu0 0
    %1791 = vmatpush1.bf16.msra.mxu0 0
    %1792 = vmatprep.subr.bf16.mxu0 0
    %1793 = vmatpush1.bf16.msra.mxu0 0
    %1794 = vmatprep.subr.bf16.mxu0 0
    %1795 = vmatpush1.bf16.msra.mxu0 0
    %1796 = vmatprep.subr.bf16.mxu0 0
    %1797 = vmatpush1.bf16.msra.mxu0 0
    %1798 = vmatprep.subr.bf16.mxu0 0
    %1799 = vmatpush1.bf16.msra.mxu0 0
    %1800 = vmatprep.subr.bf16.mxu0 0
    %1801 = vmatpush1.bf16.msra.mxu0 0
    %1802 = vmatprep.subr.bf16.mxu0 0
    %1803 = vmatpush1.bf16.msra.mxu0 0
    %1804 = vmatprep.subr.bf16.mxu0 0
    %1805 = vmatpush1.bf16.msra.mxu0 0
    %1806 = vmatprep.subr.bf16.mxu0 0
    %1807 = vmatpush1.bf16.msra.mxu0 0
    %1808 = vmatprep.subr.bf16.mxu0 0
    %1809 = vmatpush1.bf16.msra.mxu0 0
    %1810 = vmatprep.subr.bf16.mxu0 0
    %1811 = vmatpush1.bf16.msra.mxu0 0
    %1812 = vmatprep.subr.bf16.mxu0 0
    %1813 = vmatpush1.bf16.msra.mxu0 0
    %1814 = vmatprep.subr.bf16.mxu0 0
    %1815 = vmatpush1.bf16.msra.mxu0 0
    %1816 = vmatprep.subr.bf16.mxu0 0
    %1817 = vmatpush1.bf16.msra.mxu0 0
    %1818 = vmatprep.mubr.bf16.mxu0 0
    %1819 = vmatmul.mubr.bf16.gmra.mrb[0].mxu0 %v1784
    %v1820 = vpop.f32.mrb[0].mxu0
    %v1821 = vadd.f32 0.0, %v1820
    %v1822 = vpop.f32.mrb[0].mxu0
    %v1823 = vpop.f32.mrb[0].mxu0
    %v1824 = vpop.f32.mrb[0].mxu0
    %1825 = vdwg.mxu0
    %v1826 = vadd.f32 %v1778, %v1821
    %v1827 = vxor.u32 %v1826, 2147483648
    %v1828 = vmul.f32 %v1827, 1.442695
    %v1829 = vpow.pop %v1828
    %v1830 = vadd.f32 %v1829, 1.0
    %v1831 = vrcp.pop %v1830
    %v1832 = vmul.f32 1.0, %v1831
    %v1833 = vtanh.pop %v1826
    %v1834 = vmul.f32 %v1832, %v1764
    %1836 = vrot.lane.b32.xlu0 %v1833, 64
    %v1837 = vpop.permute.xlu0 %1836
    %v1839 = vmul.f32 %v1832, %v1837
    %1841 = vrot.lane.b32.xlu0 %v1839, 32
    %v1842 = vpop.permute.xlu0 %1841
    %v1844 = vadd.f32 %v1834, %v1842
    %v1845 = vtanh.pop %v1844
    %1847 = vrot.lane.b32.xlu0 %v1845, 64
    %v1848 = vpop.permute.xlu0 %1847
    %v1850 = vmul.f32 %v1832, %v1848
    %1852 = vrot.lane.b32.xlu0 %v1850, 32
    %v1853 = vpop.permute.xlu0 %1852
    %s1855 = scalar_lea.vmem [#allocation4], 40
    %1856 = vst.msk [vmem:[%s1855] sm:$0xff] %vm179, %v1853
    %s1857 = scalar_lea.vmem [#allocation3], 48
    %v1858 = vld [vmem:[%s1857] sm:$0xff]
    %v1859 = vpack.c.bf16 %v1850, %v1850
    %1861 = vrot.lane.b32.xlu0 %v1859, 32
    %v1862 = vpop.permute.xlu0 %1861
    %v1864 = vsel %vm179, %v1862, 0
    %1866 = vmatprep.subr.bf16.mxu0 0
    %1867 = vmatpush1.bf16.msra.mxu0 %v1376
    %1868 = vmatprep.subr.bf16.mxu0 0
    %1869 = vmatpush1.bf16.msra.mxu0 %v1377
    %1870 = vmatprep.subr.bf16.mxu0 0
    %1871 = vmatpush1.bf16.msra.mxu0 0
    %1872 = vmatprep.subr.bf16.mxu0 0
    %1873 = vmatpush1.bf16.msra.mxu0 0
    %1874 = vmatprep.subr.bf16.mxu0 0
    %1875 = vmatpush1.bf16.msra.mxu0 0
    %1876 = vmatprep.subr.bf16.mxu0 0
    %1877 = vmatpush1.bf16.msra.mxu0 0
    %1878 = vmatprep.subr.bf16.mxu0 0
    %1879 = vmatpush1.bf16.msra.mxu0 0
    %1880 = vmatprep.subr.bf16.mxu0 0
    %1881 = vmatpush1.bf16.msra.mxu0 0
    %1882 = vmatprep.subr.bf16.mxu0 0
    %1883 = vmatpush1.bf16.msra.mxu0 0
    %1884 = vmatprep.subr.bf16.mxu0 0
    %1885 = vmatpush1.bf16.msra.mxu0 0
    %1886 = vmatprep.subr.bf16.mxu0 0
    %1887 = vmatpush1.bf16.msra.mxu0 0
    %1888 = vmatprep.subr.bf16.mxu0 0
    %1889 = vmatpush1.bf16.msra.mxu0 0
    %1890 = vmatprep.subr.bf16.mxu0 0
    %1891 = vmatpush1.bf16.msra.mxu0 0
    %1892 = vmatprep.subr.bf16.mxu0 0
    %1893 = vmatpush1.bf16.msra.mxu0 0
    %1894 = vmatprep.subr.bf16.mxu0 0
    %1895 = vmatpush1.bf16.msra.mxu0 0
    %1896 = vmatprep.subr.bf16.mxu0 0
    %1897 = vmatpush1.bf16.msra.mxu0 0
    %1898 = vmatprep.mubr.bf16.mxu0 0
    %1899 = vmatmul.mubr.bf16.gmra.mrb[0].mxu0 %v1864
    %v1900 = vpop.f32.mrb[0].mxu0
    %v1901 = vadd.f32 0.0, %v1900
    %v1902 = vpop.f32.mrb[0].mxu0
    %v1903 = vpop.f32.mrb[0].mxu0
    %v1904 = vpop.f32.mrb[0].mxu0
    %1905 = vdwg.mxu0
    %v1906 = vadd.f32 %v1858, %v1901
    %v1907 = vxor.u32 %v1906, 2147483648
    %v1908 = vmul.f32 %v1907, 1.442695
    %v1909 = vpow.pop %v1908
    %v1910 = vadd.f32 %v1909, 1.0
    %v1911 = vrcp.pop %v1910
    %v1912 = vmul.f32 1.0, %v1911
    %v1913 = vtanh.pop %v1906
    %v1914 = vmul.f32 %v1912, %v1844
    %1916 = vrot.lane.b32.xlu0 %v1913, 64
    %v1917 = vpop.permute.xlu0 %1916
    %v1919 = vmul.f32 %v1912, %v1917
    %1921 = vrot.lane.b32.xlu0 %v1919, 32
    %v1922 = vpop.permute.xlu0 %1921
    %v1924 = vadd.f32 %v1914, %v1922
    %v1925 = vtanh.pop %v1924
    %1927 = vrot.lane.b32.xlu0 %v1925, 64
    %v1928 = vpop.permute.xlu0 %1927
    %v1930 = vmul.f32 %v1912, %v1928
    %1932 = vrot.lane.b32.xlu0 %v1930, 32
    %v1933 = vpop.permute.xlu0 %1932
    %s1935 = scalar_lea.vmem [#allocation4], 48
    %1936 = vst.msk [vmem:[%s1935] sm:$0xff] %vm179, %v1933
    %v1937 = vld [vmem:[#allocation4] sm:$0xff]
    %v1938 = vld [vmem:[#allocation4 + $0x8] sm:$0xff]
    %v1939 = vld [vmem:[#allocation4 + $0x10] sm:$0xff]
    %v1940 = vld [vmem:[#allocation4 + $0x18] sm:$0xff]
    %v1941 = vld [vmem:[#allocation4 + $0x20] sm:$0xff]
    %v1942 = vld [vmem:[#allocation4 + $0x28] sm:$0xff]
    %v1943 = vld [vmem:[#allocation4 + $0x30] sm:$0xff]
    %v1944 = vcombine.low %v1937, %v1939
    %v1945 = vcombine.high %v1937, %v1939
    %v1947 = vunpack.c.l.s4 1983009808
    %v1948 = vunpack.c.0.s8 %v1947
    %v1949 = vlaneseq
    %v1950 = vshrl.u32 %v1949, 7
    %v1951 = vsub.s32 %v1948, %v1950
    %v1952 = vrot.slane %v1944, %v1951
    %v1954 = vunpack.c.l.s4 1983009808
    %v1955 = vunpack.c.0.s8 %v1954
    %v1956 = vlaneseq
    %v1957 = vshrl.u32 %v1956, 7
    %v1958 = vsub.s32 %v1955, %v1957
    %v1959 = vrot.slane %v1945, %v1958
    %v1960 = vcombine.low %v1938, %v1940
    %v1961 = vcombine.high %v1938, %v1940
    %v1963 = vunpack.c.l.s4 1983009808
    %v1964 = vunpack.c.0.s8 %v1963
    %v1965 = vlaneseq
    %v1966 = vshrl.u32 %v1965, 7
    %v1967 = vsub.s32 %v1964, %v1966
    %v1968 = vrot.slane %v1960, %v1967
    %v1970 = vunpack.c.l.s4 1983009808
    %v1971 = vunpack.c.0.s8 %v1970
    %v1972 = vlaneseq
    %v1973 = vshrl.u32 %v1972, 7
    %v1974 = vsub.s32 %v1971, %v1973
    %v1975 = vrot.slane %v1961, %v1974
    %v1976 = vcombine.low %v1941, %v1943
    %v1977 = vcombine.high %v1941, %v1943
    %v1979 = vunpack.c.l.s4 1983009808
    %v1980 = vunpack.c.0.s8 %v1979
    %v1981 = vlaneseq
    %v1982 = vshrl.u32 %v1981, 7
    %v1983 = vsub.s32 %v1980, %v1982
    %v1984 = vrot.slane %v1976, %v1983
    %v1986 = vunpack.c.l.s4 1983009808
    %v1987 = vunpack.c.0.s8 %v1986
    %v1988 = vlaneseq
    %v1989 = vshrl.u32 %v1988, 7
    %v1990 = vsub.s32 %v1987, %v1989
    %v1991 = vrot.slane %v1977, %v1990
    %v1992 = vcombine.high %v1942, 0.0
    %v1994 = vunpack.c.l.s4 1983009808
    %v1995 = vunpack.c.0.s8 %v1994
    %v1996 = vlaneseq
    %v1997 = vshrl.u32 %v1996, 7
    %v1998 = vsub.s32 %v1995, %v1997
    %v1999 = vrot.slane %v1942, %v1998
    %v2001 = vunpack.c.l.s4 1983009808
    %v2002 = vunpack.c.0.s8 %v2001
    %v2003 = vlaneseq
    %v2004 = vshrl.u32 %v2003, 7
    %v2005 = vsub.s32 %v2002, %v2004
    %v2006 = vrot.slane %v1992, %v2005
    %v2007 = vcombine.low %v1952, %v1968
    %v2008 = vcombine.high %v1952, %v1968
    %v2010 = vunpack.c.l.s4 1934713408
    %v2011 = vunpack.c.0.s8 %v2010
    %v2012 = vlaneseq
    %v2013 = vshrl.u32 %v2012, 7
    %v2014 = vsub.s32 %v2011, %v2013
    %v2015 = vrot.slane %v2007, %v2014
    %v2017 = vunpack.c.l.s4 1934713408
    %v2018 = vunpack.c.0.s8 %v2017
    %v2019 = vlaneseq
    %v2020 = vshrl.u32 %v2019, 7
    %v2021 = vsub.s32 %v2018, %v2020
    %v2022 = vrot.slane %v2008, %v2021
    %v2023 = vcombine.low %v1959, %v1975
    %v2024 = vcombine.high %v1959, %v1975
    %v2026 = vunpack.c.l.s4 1934713408
    %v2027 = vunpack.c.0.s8 %v2026
    %v2028 = vlaneseq
    %v2029 = vshrl.u32 %v2028, 7
    %v2030 = vsub.s32 %v2027, %v2029
    %v2031 = vrot.slane %v2023, %v2030
    %v2033 = vunpack.c.l.s4 1934713408
    %v2034 = vunpack.c.0.s8 %v2033
    %v2035 = vlaneseq
    %v2036 = vshrl.u32 %v2035, 7
    %v2037 = vsub.s32 %v2034, %v2036
    %v2038 = vrot.slane %v2024, %v2037
    %v2039 = vcombine.low %v1984, %v1999
    %v2040 = vcombine.high %v1984, %v1999
    %v2042 = vunpack.c.l.s4 1934713408
    %v2043 = vunpack.c.0.s8 %v2042
    %v2044 = vlaneseq
    %v2045 = vshrl.u32 %v2044, 7
    %v2046 = vsub.s32 %v2043, %v2045
    %v2047 = vrot.slane %v2039, %v2046
    %v2049 = vunpack.c.l.s4 1934713408
    %v2050 = vunpack.c.0.s8 %v2049
    %v2051 = vlaneseq
    %v2052 = vshrl.u32 %v2051, 7
    %v2053 = vsub.s32 %v2050, %v2052
    %v2054 = vrot.slane %v2040, %v2053
    %v2055 = vcombine.low %v1991, %v2006
    %v2056 = vcombine.high %v1991, %v2006
    %v2058 = vunpack.c.l.s4 1934713408
    %v2059 = vunpack.c.0.s8 %v2058
    %v2060 = vlaneseq
    %v2061 = vshrl.u32 %v2060, 7
    %v2062 = vsub.s32 %v2059, %v2061
    %v2063 = vrot.slane %v2055, %v2062
    %v2065 = vunpack.c.l.s4 1934713408
    %v2066 = vunpack.c.0.s8 %v2065
    %v2067 = vlaneseq
    %v2068 = vshrl.u32 %v2067, 7
    %v2069 = vsub.s32 %v2066, %v2068
    %v2070 = vrot.slane %v2056, %v2069
    %v2071 = vcombine.low %v2015, %v2047
    %v2072 = vcombine.high %v2015, %v2047
    %v2073 = vcombine.low %v2022, %v2054
    %v2074 = vcombine.high %v2022, %v2054
    %v2075 = vcombine.low %v2031, %v2063
    %v2076 = vcombine.high %v2031, %v2063
    %v2077 = vcombine.low %v2038, %v2070
    %v2078 = vcombine.high %v2038, %v2070
    %v2087 = vcombine.high %v2071, %v2071
    %v2089 = vunpack.c.l.s4 1966171168
    %v2090 = vunpack.c.0.s8 %v2089
    %v2091 = vlaneseq
    %v2092 = vshrl.u32 %v2091, 7
    %v2093 = vsub.s32 %v2090, %v2092
    %v2094 = vrot.slane %v2071, %v2093
    %v2096 = vunpack.c.l.s4 1966171168
    %v2097 = vunpack.c.0.s8 %v2096
    %v2098 = vlaneseq
    %v2099 = vshrl.u32 %v2098, 7
    %v2100 = vsub.s32 %v2097, %v2099
    %v2101 = vrot.slane %v2087, %v2100
    %v2102 = vcombine.high %v2094, %v2094
    %v2103 = vcombine.high %v2101, %v2101
    %v2105 = vunpack.c.l.s4 1966171168
    %v2106 = vunpack.c.0.s8 %v2105
    %v2107 = vlaneseq
    %v2108 = vshrl.u32 %v2107, 7
    %v2109 = vsub.s32 %v2106, %v2108
    %v2110 = vrot.slane %v2094, %v2109
    %v2112 = vunpack.c.l.s4 1966171168
    %v2113 = vunpack.c.0.s8 %v2112
    %v2114 = vlaneseq
    %v2115 = vshrl.u32 %v2114, 7
    %v2116 = vsub.s32 %v2113, %v2115
    %v2117 = vrot.slane %v2101, %v2116
    %v2119 = vunpack.c.l.s4 1966171168
    %v2120 = vunpack.c.0.s8 %v2119
    %v2121 = vlaneseq
    %v2122 = vshrl.u32 %v2121, 7
    %v2123 = vsub.s32 %v2120, %v2122
    %v2124 = vrot.slane %v2102, %v2123
    %v2126 = vunpack.c.l.s4 1966171168
    %v2127 = vunpack.c.0.s8 %v2126
    %v2128 = vlaneseq
    %v2129 = vshrl.u32 %v2128, 7
    %v2130 = vsub.s32 %v2127, %v2129
    %v2131 = vrot.slane %v2103, %v2130
    %v2132 = vcombine.high %v2110, %v2110
    %v2133 = vcombine.high %v2117, %v2117
    %v2134 = vcombine.high %v2124, %v2124
    %v2135 = vcombine.high %v2072, %v2072
    %v2137 = vunpack.c.l.s4 1966171168
    %v2138 = vunpack.c.0.s8 %v2137
    %v2139 = vlaneseq
    %v2140 = vshrl.u32 %v2139, 7
    %v2141 = vsub.s32 %v2138, %v2140
    %v2142 = vrot.slane %v2072, %v2141
    %v2144 = vunpack.c.l.s4 1966171168
    %v2145 = vunpack.c.0.s8 %v2144
    %v2146 = vlaneseq
    %v2147 = vshrl.u32 %v2146, 7
    %v2148 = vsub.s32 %v2145, %v2147
    %v2149 = vrot.slane %v2135, %v2148
    %v2150 = vcombine.high %v2142, %v2142
    %v2151 = vcombine.high %v2149, %v2149
    %v2153 = vunpack.c.l.s4 1966171168
    %v2154 = vunpack.c.0.s8 %v2153
    %v2155 = vlaneseq
    %v2156 = vshrl.u32 %v2155, 7
    %v2157 = vsub.s32 %v2154, %v2156
    %v2158 = vrot.slane %v2142, %v2157
    %v2160 = vunpack.c.l.s4 1966171168
    %v2161 = vunpack.c.0.s8 %v2160
    %v2162 = vlaneseq
    %v2163 = vshrl.u32 %v2162, 7
    %v2164 = vsub.s32 %v2161, %v2163
    %v2165 = vrot.slane %v2149, %v2164
    %v2167 = vunpack.c.l.s4 1966171168
    %v2168 = vunpack.c.0.s8 %v2167
    %v2169 = vlaneseq
    %v2170 = vshrl.u32 %v2169, 7
    %v2171 = vsub.s32 %v2168, %v2170
    %v2172 = vrot.slane %v2150, %v2171
    %v2174 = vunpack.c.l.s4 1966171168
    %v2175 = vunpack.c.0.s8 %v2174
    %v2176 = vlaneseq
    %v2177 = vshrl.u32 %v2176, 7
    %v2178 = vsub.s32 %v2175, %v2177
    %v2179 = vrot.slane %v2151, %v2178
    %v2180 = vcombine.high %v2158, %v2158
    %v2181 = vcombine.high %v2165, %v2165
    %v2182 = vcombine.high %v2172, %v2172
    %v2183 = vcombine.high %v2073, %v2073
    %v2185 = vunpack.c.l.s4 1966171168
    %v2186 = vunpack.c.0.s8 %v2185
    %v2187 = vlaneseq
    %v2188 = vshrl.u32 %v2187, 7
    %v2189 = vsub.s32 %v2186, %v2188
    %v2190 = vrot.slane %v2073, %v2189
    %v2192 = vunpack.c.l.s4 1966171168
    %v2193 = vunpack.c.0.s8 %v2192
    %v2194 = vlaneseq
    %v2195 = vshrl.u32 %v2194, 7
    %v2196 = vsub.s32 %v2193, %v2195
    %v2197 = vrot.slane %v2183, %v2196
    %v2198 = vcombine.high %v2190, %v2190
    %v2199 = vcombine.high %v2197, %v2197
    %v2201 = vunpack.c.l.s4 1966171168
    %v2202 = vunpack.c.0.s8 %v2201
    %v2203 = vlaneseq
    %v2204 = vshrl.u32 %v2203, 7
    %v2205 = vsub.s32 %v2202, %v2204
    %v2206 = vrot.slane %v2190, %v2205
    %v2208 = vunpack.c.l.s4 1966171168
    %v2209 = vunpack.c.0.s8 %v2208
    %v2210 = vlaneseq
    %v2211 = vshrl.u32 %v2210, 7
    %v2212 = vsub.s32 %v2209, %v2211
    %v2213 = vrot.slane %v2197, %v2212
    %v2215 = vunpack.c.l.s4 1966171168
    %v2216 = vunpack.c.0.s8 %v2215
    %v2217 = vlaneseq
    %v2218 = vshrl.u32 %v2217, 7
    %v2219 = vsub.s32 %v2216, %v2218
    %v2220 = vrot.slane %v2198, %v2219
    %v2222 = vunpack.c.l.s4 1966171168
    %v2223 = vunpack.c.0.s8 %v2222
    %v2224 = vlaneseq
    %v2225 = vshrl.u32 %v2224, 7
    %v2226 = vsub.s32 %v2223, %v2225
    %v2227 = vrot.slane %v2199, %v2226
    %v2228 = vcombine.high %v2206, %v2206
    %v2229 = vcombine.high %v2213, %v2213
    %v2230 = vcombine.high %v2220, %v2220
    %v2231 = vcombine.high %v2074, %v2074
    %v2233 = vunpack.c.l.s4 1966171168
    %v2234 = vunpack.c.0.s8 %v2233
    %v2235 = vlaneseq
    %v2236 = vshrl.u32 %v2235, 7
    %v2237 = vsub.s32 %v2234, %v2236
    %v2238 = vrot.slane %v2074, %v2237
    %v2240 = vunpack.c.l.s4 1966171168
    %v2241 = vunpack.c.0.s8 %v2240
    %v2242 = vlaneseq
    %v2243 = vshrl.u32 %v2242, 7
    %v2244 = vsub.s32 %v2241, %v2243
    %v2245 = vrot.slane %v2231, %v2244
    %v2246 = vcombine.high %v2238, %v2238
    %v2247 = vcombine.high %v2245, %v2245
    %v2249 = vunpack.c.l.s4 1966171168
    %v2250 = vunpack.c.0.s8 %v2249
    %v2251 = vlaneseq
    %v2252 = vshrl.u32 %v2251, 7
    %v2253 = vsub.s32 %v2250, %v2252
    %v2254 = vrot.slane %v2238, %v2253
    %v2256 = vunpack.c.l.s4 1966171168
    %v2257 = vunpack.c.0.s8 %v2256
    %v2258 = vlaneseq
    %v2259 = vshrl.u32 %v2258, 7
    %v2260 = vsub.s32 %v2257, %v2259
    %v2261 = vrot.slane %v2245, %v2260
    %v2263 = vunpack.c.l.s4 1966171168
    %v2264 = vunpack.c.0.s8 %v2263
    %v2265 = vlaneseq
    %v2266 = vshrl.u32 %v2265, 7
    %v2267 = vsub.s32 %v2264, %v2266
    %v2268 = vrot.slane %v2246, %v2267
    %v2270 = vunpack.c.l.s4 1966171168
    %v2271 = vunpack.c.0.s8 %v2270
    %v2272 = vlaneseq
    %v2273 = vshrl.u32 %v2272, 7
    %v2274 = vsub.s32 %v2271, %v2273
    %v2275 = vrot.slane %v2247, %v2274
    %v2276 = vcombine.high %v2254, %v2254
    %v2277 = vcombine.high %v2261, %v2261
    %v2278 = vcombine.high %v2268, %v2268
    %v2279 = vcombine.high %v2075, %v2075
    %v2281 = vunpack.c.l.s4 1966171168
    %v2282 = vunpack.c.0.s8 %v2281
    %v2283 = vlaneseq
    %v2284 = vshrl.u32 %v2283, 7
    %v2285 = vsub.s32 %v2282, %v2284
    %v2286 = vrot.slane %v2075, %v2285
    %v2288 = vunpack.c.l.s4 1966171168
    %v2289 = vunpack.c.0.s8 %v2288
    %v2290 = vlaneseq
    %v2291 = vshrl.u32 %v2290, 7
    %v2292 = vsub.s32 %v2289, %v2291
    %v2293 = vrot.slane %v2279, %v2292
    %v2294 = vcombine.high %v2286, %v2286
    %v2295 = vcombine.high %v2293, %v2293
    %v2297 = vunpack.c.l.s4 1966171168
    %v2298 = vunpack.c.0.s8 %v2297
    %v2299 = vlaneseq
    %v2300 = vshrl.u32 %v2299, 7
    %v2301 = vsub.s32 %v2298, %v2300
    %v2302 = vrot.slane %v2286, %v2301
    %v2304 = vunpack.c.l.s4 1966171168
    %v2305 = vunpack.c.0.s8 %v2304
    %v2306 = vlaneseq
    %v2307 = vshrl.u32 %v2306, 7
    %v2308 = vsub.s32 %v2305, %v2307
    %v2309 = vrot.slane %v2293, %v2308
    %v2311 = vunpack.c.l.s4 1966171168
    %v2312 = vunpack.c.0.s8 %v2311
    %v2313 = vlaneseq
    %v2314 = vshrl.u32 %v2313, 7
    %v2315 = vsub.s32 %v2312, %v2314
    %v2316 = vrot.slane %v2294, %v2315
    %v2318 = vunpack.c.l.s4 1966171168
    %v2319 = vunpack.c.0.s8 %v2318
    %v2320 = vlaneseq
    %v2321 = vshrl.u32 %v2320, 7
    %v2322 = vsub.s32 %v2319, %v2321
    %v2323 = vrot.slane %v2295, %v2322
    %v2324 = vcombine.high %v2302, %v2302
    %v2325 = vcombine.high %v2309, %v2309
    %v2326 = vcombine.high %v2316, %v2316
    %v2327 = vcombine.high %v2076, %v2076
    %v2329 = vunpack.c.l.s4 1966171168
    %v2330 = vunpack.c.0.s8 %v2329
    %v2331 = vlaneseq
    %v2332 = vshrl.u32 %v2331, 7
    %v2333 = vsub.s32 %v2330, %v2332
    %v2334 = vrot.slane %v2076, %v2333
    %v2336 = vunpack.c.l.s4 1966171168
    %v2337 = vunpack.c.0.s8 %v2336
    %v2338 = vlaneseq
    %v2339 = vshrl.u32 %v2338, 7
    %v2340 = vsub.s32 %v2337, %v2339
    %v2341 = vrot.slane %v2327, %v2340
    %v2342 = vcombine.high %v2334, %v2334
    %v2343 = vcombine.high %v2341, %v2341
    %v2345 = vunpack.c.l.s4 1966171168
    %v2346 = vunpack.c.0.s8 %v2345
    %v2347 = vlaneseq
    %v2348 = vshrl.u32 %v2347, 7
    %v2349 = vsub.s32 %v2346, %v2348
    %v2350 = vrot.slane %v2334, %v2349
    %v2352 = vunpack.c.l.s4 1966171168
    %v2353 = vunpack.c.0.s8 %v2352
    %v2354 = vlaneseq
    %v2355 = vshrl.u32 %v2354, 7
    %v2356 = vsub.s32 %v2353, %v2355
    %v2357 = vrot.slane %v2341, %v2356
    %v2359 = vunpack.c.l.s4 1966171168
    %v2360 = vunpack.c.0.s8 %v2359
    %v2361 = vlaneseq
    %v2362 = vshrl.u32 %v2361, 7
    %v2363 = vsub.s32 %v2360, %v2362
    %v2364 = vrot.slane %v2342, %v2363
    %v2366 = vunpack.c.l.s4 1966171168
    %v2367 = vunpack.c.0.s8 %v2366
    %v2368 = vlaneseq
    %v2369 = vshrl.u32 %v2368, 7
    %v2370 = vsub.s32 %v2367, %v2369
    %v2371 = vrot.slane %v2343, %v2370
    %v2372 = vcombine.high %v2350, %v2350
    %v2373 = vcombine.high %v2357, %v2357
    %v2374 = vcombine.high %v2364, %v2364
    %v2375 = vcombine.high %v2077, %v2077
    %v2377 = vunpack.c.l.s4 1966171168
    %v2378 = vunpack.c.0.s8 %v2377
    %v2379 = vlaneseq
    %v2380 = vshrl.u32 %v2379, 7
    %v2381 = vsub.s32 %v2378, %v2380
    %v2382 = vrot.slane %v2077, %v2381
    %v2384 = vunpack.c.l.s4 1966171168
    %v2385 = vunpack.c.0.s8 %v2384
    %v2386 = vlaneseq
    %v2387 = vshrl.u32 %v2386, 7
    %v2388 = vsub.s32 %v2385, %v2387
    %v2389 = vrot.slane %v2375, %v2388
    %v2390 = vcombine.high %v2382, %v2382
    %v2391 = vcombine.high %v2389, %v2389
    %v2393 = vunpack.c.l.s4 1966171168
    %v2394 = vunpack.c.0.s8 %v2393
    %v2395 = vlaneseq
    %v2396 = vshrl.u32 %v2395, 7
    %v2397 = vsub.s32 %v2394, %v2396
    %v2398 = vrot.slane %v2382, %v2397
    %v2400 = vunpack.c.l.s4 1966171168
    %v2401 = vunpack.c.0.s8 %v2400
    %v2402 = vlaneseq
    %v2403 = vshrl.u32 %v2402, 7
    %v2404 = vsub.s32 %v2401, %v2403
    %v2405 = vrot.slane %v2389, %v2404
    %v2407 = vunpack.c.l.s4 1966171168
    %v2408 = vunpack.c.0.s8 %v2407
    %v2409 = vlaneseq
    %v2410 = vshrl.u32 %v2409, 7
    %v2411 = vsub.s32 %v2408, %v2410
    %v2412 = vrot.slane %v2390, %v2411
    %v2414 = vunpack.c.l.s4 1966171168
    %v2415 = vunpack.c.0.s8 %v2414
    %v2416 = vlaneseq
    %v2417 = vshrl.u32 %v2416, 7
    %v2418 = vsub.s32 %v2415, %v2417
    %v2419 = vrot.slane %v2391, %v2418
    %v2420 = vcombine.high %v2398, %v2398
    %v2421 = vcombine.high %v2405, %v2405
    %v2422 = vcombine.high %v2412, %v2412
    %v2423 = vcombine.high %v2078, %v2078
    %v2425 = vunpack.c.l.s4 1966171168
    %v2426 = vunpack.c.0.s8 %v2425
    %v2427 = vlaneseq
    %v2428 = vshrl.u32 %v2427, 7
    %v2429 = vsub.s32 %v2426, %v2428
    %v2430 = vrot.slane %v2078, %v2429
    %v2432 = vunpack.c.l.s4 1966171168
    %v2433 = vunpack.c.0.s8 %v2432
    %v2434 = vlaneseq
    %v2435 = vshrl.u32 %v2434, 7
    %v2436 = vsub.s32 %v2433, %v2435
    %v2437 = vrot.slane %v2423, %v2436
    %v2438 = vcombine.high %v2430, %v2430
    %v2439 = vcombine.high %v2437, %v2437
    %v2441 = vunpack.c.l.s4 1966171168
    %v2442 = vunpack.c.0.s8 %v2441
    %v2443 = vlaneseq
    %v2444 = vshrl.u32 %v2443, 7
    %v2445 = vsub.s32 %v2442, %v2444
    %v2446 = vrot.slane %v2430, %v2445
    %v2448 = vunpack.c.l.s4 1966171168
    %v2449 = vunpack.c.0.s8 %v2448
    %v2450 = vlaneseq
    %v2451 = vshrl.u32 %v2450, 7
    %v2452 = vsub.s32 %v2449, %v2451
    %v2453 = vrot.slane %v2437, %v2452
    %v2455 = vunpack.c.l.s4 1966171168
    %v2456 = vunpack.c.0.s8 %v2455
    %v2457 = vlaneseq
    %v2458 = vshrl.u32 %v2457, 7
    %v2459 = vsub.s32 %v2456, %v2458
    %v2460 = vrot.slane %v2438, %v2459
    %v2462 = vunpack.c.l.s4 1966171168
    %v2463 = vunpack.c.0.s8 %v2462
    %v2464 = vlaneseq
    %v2465 = vshrl.u32 %v2464, 7
    %v2466 = vsub.s32 %v2463, %v2465
    %v2467 = vrot.slane %v2439, %v2466
    %v2468 = vcombine.high %v2446, %v2446
    %v2469 = vcombine.high %v2453, %v2453
    %v2470 = vcombine.high %v2460, %v2460
    %v2471 = vcombine.low %v2110, %v2124
    %v2472 = vcombine.low %v2132, %v2134
    %v2473 = vcombine.low %v2117, %v2131
    %v2474 = vcombine.low %v2133, %v2158
    %v2476 = vunpack.c.l.s4 1966171168
    %v2477 = vunpack.c.0.s8 %v2476
    %v2478 = vlaneseq
    %v2479 = vshrl.u32 %v2478, 7
    %v2480 = vsub.s32 %v2477, %v2479
    %v2481 = vrot.slane %v2471, %v2480
    %v2483 = vunpack.c.l.s4 1966171168
    %v2484 = vunpack.c.0.s8 %v2483
    %v2485 = vlaneseq
    %v2486 = vshrl.u32 %v2485, 7
    %v2487 = vsub.s32 %v2484, %v2486
    %v2488 = vrot.slane %v2472, %v2487
    %v2490 = vunpack.c.l.s4 1966171168
    %v2491 = vunpack.c.0.s8 %v2490
    %v2492 = vlaneseq
    %v2493 = vshrl.u32 %v2492, 7
    %v2494 = vsub.s32 %v2491, %v2493
    %v2495 = vrot.slane %v2473, %v2494
    %v2497 = vunpack.c.l.s4 1966171168
    %v2498 = vunpack.c.0.s8 %v2497
    %v2499 = vlaneseq
    %v2500 = vshrl.u32 %v2499, 7
    %v2501 = vsub.s32 %v2498, %v2500
    %v2502 = vrot.slane %v2474, %v2501
    %v2503 = vcombine.low %v2481, %v2488
    %v2504 = vcombine.low %v2495, %v2502
    %v2506 = vunpack.c.l.s4 1966171168
    %v2507 = vunpack.c.0.s8 %v2506
    %v2508 = vlaneseq
    %v2509 = vshrl.u32 %v2508, 7
    %v2510 = vsub.s32 %v2507, %v2509
    %v2511 = vrot.slane %v2503, %v2510
    %v2513 = vunpack.c.l.s4 1966171168
    %v2514 = vunpack.c.0.s8 %v2513
    %v2515 = vlaneseq
    %v2516 = vshrl.u32 %v2515, 7
    %v2517 = vsub.s32 %v2514, %v2516
    %v2518 = vrot.slane %v2504, %v2517
    %v2519 = vcombine.low %v2511, %v2518
    %v2520 = vcombine.low %v2172, %v2180
    %v2521 = vcombine.low %v2182, %v2165
    %v2522 = vcombine.low %v2179, %v2181
    %v2523 = vcombine.low %v2206, %v2220
    %v2525 = vunpack.c.l.s4 1966171168
    %v2526 = vunpack.c.0.s8 %v2525
    %v2527 = vlaneseq
    %v2528 = vshrl.u32 %v2527, 7
    %v2529 = vsub.s32 %v2526, %v2528
    %v2530 = vrot.slane %v2520, %v2529
    %v2532 = vunpack.c.l.s4 1966171168
    %v2533 = vunpack.c.0.s8 %v2532
    %v2534 = vlaneseq
    %v2535 = vshrl.u32 %v2534, 7
    %v2536 = vsub.s32 %v2533, %v2535
    %v2537 = vrot.slane %v2521, %v2536
    %v2539 = vunpack.c.l.s4 1966171168
    %v2540 = vunpack.c.0.s8 %v2539
    %v2541 = vlaneseq
    %v2542 = vshrl.u32 %v2541, 7
    %v2543 = vsub.s32 %v2540, %v2542
    %v2544 = vrot.slane %v2522, %v2543
    %v2546 = vunpack.c.l.s4 1966171168
    %v2547 = vunpack.c.0.s8 %v2546
    %v2548 = vlaneseq
    %v2549 = vshrl.u32 %v2548, 7
    %v2550 = vsub.s32 %v2547, %v2549
    %v2551 = vrot.slane %v2523, %v2550
    %v2552 = vcombine.low %v2530, %v2537
    %v2553 = vcombine.low %v2544, %v2551
    %v2555 = vunpack.c.l.s4 1966171168
    %v2556 = vunpack.c.0.s8 %v2555
    %v2557 = vlaneseq
    %v2558 = vshrl.u32 %v2557, 7
    %v2559 = vsub.s32 %v2556, %v2558
    %v2560 = vrot.slane %v2552, %v2559
    %v2562 = vunpack.c.l.s4 1966171168
    %v2563 = vunpack.c.0.s8 %v2562
    %v2564 = vlaneseq
    %v2565 = vshrl.u32 %v2564, 7
    %v2566 = vsub.s32 %v2563, %v2565
    %v2567 = vrot.slane %v2553, %v2566
    %v2568 = vcombine.low %v2560, %v2567
    %v2569 = vcombine.low %v2228, %v2230
    %v2570 = vcombine.low %v2213, %v2227
    %v2571 = vcombine.low %v2229, %v2254
    %v2572 = vcombine.low %v2268, %v2276
    %v2574 = vunpack.c.l.s4 1966171168
    %v2575 = vunpack.c.0.s8 %v2574
    %v2576 = vlaneseq
    %v2577 = vshrl.u32 %v2576, 7
    %v2578 = vsub.s32 %v2575, %v2577
    %v2579 = vrot.slane %v2569, %v2578
    %v2581 = vunpack.c.l.s4 1966171168
    %v2582 = vunpack.c.0.s8 %v2581
    %v2583 = vlaneseq
    %v2584 = vshrl.u32 %v2583, 7
    %v2585 = vsub.s32 %v2582, %v2584
    %v2586 = vrot.slane %v2570, %v2585
    %v2588 = vunpack.c.l.s4 1966171168
    %v2589 = vunpack.c.0.s8 %v2588
    %v2590 = vlaneseq
    %v2591 = vshrl.u32 %v2590, 7
    %v2592 = vsub.s32 %v2589, %v2591
    %v2593 = vrot.slane %v2571, %v2592
    %v2595 = vunpack.c.l.s4 1966171168
    %v2596 = vunpack.c.0.s8 %v2595
    %v2597 = vlaneseq
    %v2598 = vshrl.u32 %v2597, 7
    %v2599 = vsub.s32 %v2596, %v2598
    %v2600 = vrot.slane %v2572, %v2599
    %v2601 = vcombine.low %v2579, %v2586
    %v2602 = vcombine.low %v2593, %v2600
    %v2604 = vunpack.c.l.s4 1966171168
    %v2605 = vunpack.c.0.s8 %v2604
    %v2606 = vlaneseq
    %v2607 = vshrl.u32 %v2606, 7
    %v2608 = vsub.s32 %v2605, %v2607
    %v2609 = vrot.slane %v2601, %v2608
    %v2611 = vunpack.c.l.s4 1966171168
    %v2612 = vunpack.c.0.s8 %v2611
    %v2613 = vlaneseq
    %v2614 = vshrl.u32 %v2613, 7
    %v2615 = vsub.s32 %v2612, %v2614
    %v2616 = vrot.slane %v2602, %v2615
    %v2617 = vcombine.low %v2609, %v2616
    %v2618 = vcombine.low %v2278, %v2261
    %v2619 = vcombine.low %v2275, %v2277
    %v2620 = vcombine.low %v2302, %v2316
    %v2621 = vcombine.low %v2324, %v2326
    %v2623 = vunpack.c.l.s4 1966171168
    %v2624 = vunpack.c.0.s8 %v2623
    %v2625 = vlaneseq
    %v2626 = vshrl.u32 %v2625, 7
    %v2627 = vsub.s32 %v2624, %v2626
    %v2628 = vrot.slane %v2618, %v2627
    %v2630 = vunpack.c.l.s4 1966171168
    %v2631 = vunpack.c.0.s8 %v2630
    %v2632 = vlaneseq
    %v2633 = vshrl.u32 %v2632, 7
    %v2634 = vsub.s32 %v2631, %v2633
    %v2635 = vrot.slane %v2619, %v2634
    %v2637 = vunpack.c.l.s4 1966171168
    %v2638 = vunpack.c.0.s8 %v2637
    %v2639 = vlaneseq
    %v2640 = vshrl.u32 %v2639, 7
    %v2641 = vsub.s32 %v2638, %v2640
    %v2642 = vrot.slane %v2620, %v2641
    %v2644 = vunpack.c.l.s4 1966171168
    %v2645 = vunpack.c.0.s8 %v2644
    %v2646 = vlaneseq
    %v2647 = vshrl.u32 %v2646, 7
    %v2648 = vsub.s32 %v2645, %v2647
    %v2649 = vrot.slane %v2621, %v2648
    %v2650 = vcombine.low %v2628, %v2635
    %v2651 = vcombine.low %v2642, %v2649
    %v2653 = vunpack.c.l.s4 1966171168
    %v2654 = vunpack.c.0.s8 %v2653
    %v2655 = vlaneseq
    %v2656 = vshrl.u32 %v2655, 7
    %v2657 = vsub.s32 %v2654, %v2656
    %v2658 = vrot.slane %v2650, %v2657
    %v2660 = vunpack.c.l.s4 1966171168
    %v2661 = vunpack.c.0.s8 %v2660
    %v2662 = vlaneseq
    %v2663 = vshrl.u32 %v2662, 7
    %v2664 = vsub.s32 %v2661, %v2663
    %v2665 = vrot.slane %v2651, %v2664
    %v2666 = vcombine.low %v2658, %v2665
    %v2667 = vcombine.low %v2309, %v2323
    %v2668 = vcombine.low %v2325, %v2350
    %v2669 = vcombine.low %v2364, %v2372
    %v2670 = vcombine.low %v2374, %v2357
    %v2672 = vunpack.c.l.s4 1966171168
    %v2673 = vunpack.c.0.s8 %v2672
    %v2674 = vlaneseq
    %v2675 = vshrl.u32 %v2674, 7
    %v2676 = vsub.s32 %v2673, %v2675
    %v2677 = vrot.slane %v2667, %v2676
    %v2679 = vunpack.c.l.s4 1966171168
    %v2680 = vunpack.c.0.s8 %v2679
    %v2681 = vlaneseq
    %v2682 = vshrl.u32 %v2681, 7
    %v2683 = vsub.s32 %v2680, %v2682
    %v2684 = vrot.slane %v2668, %v2683
    %v2686 = vunpack.c.l.s4 1966171168
    %v2687 = vunpack.c.0.s8 %v2686
    %v2688 = vlaneseq
    %v2689 = vshrl.u32 %v2688, 7
    %v2690 = vsub.s32 %v2687, %v2689
    %v2691 = vrot.slane %v2669, %v2690
    %v2693 = vunpack.c.l.s4 1966171168
    %v2694 = vunpack.c.0.s8 %v2693
    %v2695 = vlaneseq
    %v2696 = vshrl.u32 %v2695, 7
    %v2697 = vsub.s32 %v2694, %v2696
    %v2698 = vrot.slane %v2670, %v2697
    %v2699 = vcombine.low %v2677, %v2684
    %v2700 = vcombine.low %v2691, %v2698
    %v2702 = vunpack.c.l.s4 1966171168
    %v2703 = vunpack.c.0.s8 %v2702
    %v2704 = vlaneseq
    %v2705 = vshrl.u32 %v2704, 7
    %v2706 = vsub.s32 %v2703, %v2705
    %v2707 = vrot.slane %v2699, %v2706
    %v2709 = vunpack.c.l.s4 1966171168
    %v2710 = vunpack.c.0.s8 %v2709
    %v2711 = vlaneseq
    %v2712 = vshrl.u32 %v2711, 7
    %v2713 = vsub.s32 %v2710, %v2712
    %v2714 = vrot.slane %v2700, %v2713
    %v2715 = vcombine.low %v2707, %v2714
    %v2716 = vcombine.low %v2371, %v2373
    %v2717 = vcombine.low %v2398, %v2412
    %v2718 = vcombine.low %v2420, %v2422
    %v2719 = vcombine.low %v2405, %v2419
    %v2721 = vunpack.c.l.s4 1966171168
    %v2722 = vunpack.c.0.s8 %v2721
    %v2723 = vlaneseq
    %v2724 = vshrl.u32 %v2723, 7
    %v2725 = vsub.s32 %v2722, %v2724
    %v2726 = vrot.slane %v2716, %v2725
    %v2728 = vunpack.c.l.s4 1966171168
    %v2729 = vunpack.c.0.s8 %v2728
    %v2730 = vlaneseq
    %v2731 = vshrl.u32 %v2730, 7
    %v2732 = vsub.s32 %v2729, %v2731
    %v2733 = vrot.slane %v2717, %v2732
    %v2735 = vunpack.c.l.s4 1966171168
    %v2736 = vunpack.c.0.s8 %v2735
    %v2737 = vlaneseq
    %v2738 = vshrl.u32 %v2737, 7
    %v2739 = vsub.s32 %v2736, %v2738
    %v2740 = vrot.slane %v2718, %v2739
    %v2742 = vunpack.c.l.s4 1966171168
    %v2743 = vunpack.c.0.s8 %v2742
    %v2744 = vlaneseq
    %v2745 = vshrl.u32 %v2744, 7
    %v2746 = vsub.s32 %v2743, %v2745
    %v2747 = vrot.slane %v2719, %v2746
    %v2748 = vcombine.low %v2726, %v2733
    %v2749 = vcombine.low %v2740, %v2747
    %v2751 = vunpack.c.l.s4 1966171168
    %v2752 = vunpack.c.0.s8 %v2751
    %v2753 = vlaneseq
    %v2754 = vshrl.u32 %v2753, 7
    %v2755 = vsub.s32 %v2752, %v2754
    %v2756 = vrot.slane %v2748, %v2755
    %v2758 = vunpack.c.l.s4 1966171168
    %v2759 = vunpack.c.0.s8 %v2758
    %v2760 = vlaneseq
    %v2761 = vshrl.u32 %v2760, 7
    %v2762 = vsub.s32 %v2759, %v2761
    %v2763 = vrot.slane %v2749, %v2762
    %v2764 = vcombine.low %v2756, %v2763
    %v2765 = vcombine.low %v2421, %v2446
    %v2766 = vcombine.low %v2460, %v2468
    %v2767 = vcombine.low %v2470, %v2453
    %v2768 = vcombine.low %v2467, %v2469
    %v2770 = vunpack.c.l.s4 1966171168
    %v2771 = vunpack.c.0.s8 %v2770
    %v2772 = vlaneseq
    %v2773 = vshrl.u32 %v2772, 7
    %v2774 = vsub.s32 %v2771, %v2773
    %v2775 = vrot.slane %v2765, %v2774
    %v2777 = vunpack.c.l.s4 1966171168
    %v2778 = vunpack.c.0.s8 %v2777
    %v2779 = vlaneseq
    %v2780 = vshrl.u32 %v2779, 7
    %v2781 = vsub.s32 %v2778, %v2780
    %v2782 = vrot.slane %v2766, %v2781
    %v2784 = vunpack.c.l.s4 1966171168
    %v2785 = vunpack.c.0.s8 %v2784
    %v2786 = vlaneseq
    %v2787 = vshrl.u32 %v2786, 7
    %v2788 = vsub.s32 %v2785, %v2787
    %v2789 = vrot.slane %v2767, %v2788
    %v2791 = vunpack.c.l.s4 1966171168
    %v2792 = vunpack.c.0.s8 %v2791
    %v2793 = vlaneseq
    %v2794 = vshrl.u32 %v2793, 7
    %v2795 = vsub.s32 %v2792, %v2794
    %v2796 = vrot.slane %v2768, %v2795
    %v2797 = vcombine.low %v2775, %v2782
    %v2798 = vcombine.low %v2789, %v2796
    %v2800 = vunpack.c.l.s4 1966171168
    %v2801 = vunpack.c.0.s8 %v2800
    %v2802 = vlaneseq
    %v2803 = vshrl.u32 %v2802, 7
    %v2804 = vsub.s32 %v2801, %v2803
    %v2805 = vrot.slane %v2797, %v2804
    %v2807 = vunpack.c.l.s4 1966171168
    %v2808 = vunpack.c.0.s8 %v2807
    %v2809 = vlaneseq
    %v2810 = vshrl.u32 %v2809, 7
    %v2811 = vsub.s32 %v2808, %v2810
    %v2812 = vrot.slane %v2798, %v2811
    %v2813 = vcombine.low %v2805, %v2812
    %v2821 = vpack.c.bf16 %v2568, %v2519
    %v2822 = vpack.c.bf16 %v2666, %v2617
    %v2823 = vpack.c.bf16 %v2764, %v2715
    %v2824 = vpack.c.bf16 %v2813, %v2813
    %v2825 = vld [vmem:[%s9] sm:$0xf]
    %v2826 = vld [vmem:[%s9 + $0x4] sm:$0xf]
    %v2827 = vld [vmem:[%s9 + $0x8] sm:$0xf]
    %v2828 = vld [vmem:[%s9 + $0xc] sm:$0xf]
    %v2829 = vld [vmem:[%s10] sm:$0x1]
    %v2831 = vlaneseq
    %v2832 = vshrl.u32 %v2831, 7
    %v2833 = vsub.s32 0, %v2832
    %v2834 = vrot.slane %v2829, %v2833
    %v2840 = vunpack.c.l.b16 %v2825
    %v2841 = vunpack.c.l.b16 %v2826
    %v2842 = vunpack.c.l.b16 %v2827
    %v2843 = vunpack.c.l.b16 %v2828
    %v2844 = vpack.c.b16 %v2841, %v2840
    %v2845 = vpack.c.b16 %v2843, %v2842
    %v2849 = vsel %vm179, %v2821, 0
    %v2852 = vsel %vm179, %v2822, 0
    %v2855 = vsel %vm179, %v2823, 0
    %v2858 = vsel %vm179, %v2824, 0
    %2860 = vmatprep.subr.bf16.mxu0 0
    %2861 = vmatpush1.bf16.msra.mxu0 %v2844
    %2862 = vmatprep.subr.bf16.mxu0 0
    %2863 = vmatpush1.bf16.msra.mxu0 %v2845
    %2864 = vmatprep.subr.bf16.mxu0 0
    %2865 = vmatpush1.bf16.msra.mxu0 0
    %2866 = vmatprep.subr.bf16.mxu0 0
    %2867 = vmatpush1.bf16.msra.mxu0 0
    %2868 = vmatprep.subr.bf16.mxu0 0
    %2869 = vmatpush1.bf16.msra.mxu0 0
    %2870 = vmatprep.subr.bf16.mxu0 0
    %2871 = vmatpush1.bf16.msra.mxu0 0
    %2872 = vmatprep.subr.bf16.mxu0 0
    %2873 = vmatpush1.bf16.msra.mxu0 0
    %2874 = vmatprep.subr.bf16.mxu0 0
    %2875 = vmatpush1.bf16.msra.mxu0 0
    %2876 = vmatprep.subr.bf16.mxu0 0
    %2877 = vmatpush1.bf16.msra.mxu0 0
    %2878 = vmatprep.subr.bf16.mxu0 0
    %2879 = vmatpush1.bf16.msra.mxu0 0
    %2880 = vmatprep.subr.bf16.mxu0 0
    %2881 = vmatpush1.bf16.msra.mxu0 0
    %2882 = vmatprep.subr.bf16.mxu0 0
    %2883 = vmatpush1.bf16.msra.mxu0 0
    %2884 = vmatprep.subr.bf16.mxu0 0
    %2885 = vmatpush1.bf16.msra.mxu0 0
    %2886 = vmatprep.subr.bf16.mxu0 0
    %2887 = vmatpush1.bf16.msra.mxu0 0
    %2888 = vmatprep.subr.bf16.mxu0 0
    %2889 = vmatpush1.bf16.msra.mxu0 0
    %2890 = vmatprep.subr.bf16.mxu0 0
    %2891 = vmatpush1.bf16.msra.mxu0 0
    %2892 = vmatprep.mubr.bf16.mxu0 0
    %2893 = vmatmul.mubr.bf16.gmra.mrb[0].mxu0 %v2849
    %v2894 = vpop.f32.mrb[0].mxu0
    %v2895 = vadd.f32 %v2834, %v2894
    %v2896 = vpop.f32.mrb[0].mxu0
    %v2897 = vpop.f32.mrb[0].mxu0
    %v2898 = vadd.f32 %v2834, %v2897
    %v2899 = vpop.f32.mrb[0].mxu0
    %2900 = vmatprep.mubr.bf16.mxu0 0
    %2901 = vmatmul.mubr.bf16.gmra.mrb[0].mxu0 %v2852
    %v2902 = vpop.f32.mrb[0].mxu0
    %v2903 = vadd.f32 %v2834, %v2902
    %v2904 = vpop.f32.mrb[0].mxu0
    %v2905 = vpop.f32.mrb[0].mxu0
    %v2906 = vadd.f32 %v2834, %v2905
    %v2907 = vpop.f32.mrb[0].mxu0
    %2908 = vmatprep.mubr.bf16.mxu0 0
    %2909 = vmatmul.mubr.bf16.gmra.mrb[0].mxu0 %v2855
    %v2910 = vpop.f32.mrb[0].mxu0
    %v2911 = vadd.f32 %v2834, %v2910
    %v2912 = vpop.f32.mrb[0].mxu0
    %v2913 = vpop.f32.mrb[0].mxu0
    %v2914 = vadd.f32 %v2834, %v2913
    %v2915 = vpop.f32.mrb[0].mxu0
    %2916 = vmatprep.mubr.bf16.mxu0 0
    %2917 = vmatmul.mubr.bf16.gmra.mrb[0].mxu0 %v2858
    %v2918 = vpop.f32.mrb[0].mxu0
    %v2919 = vadd.f32 %v2834, %v2918
    %v2920 = vpop.f32.mrb[0].mxu0
    %v2921 = vpop.f32.mrb[0].mxu0
    %v2922 = vpop.f32.mrb[0].mxu0
    %2923 = vdwg.mxu0
    %v2931 = vcombine.high %v2895, %v2895
    %v2933 = vunpack.c.l.s4 1966171168
    %v2934 = vunpack.c.0.s8 %v2933
    %v2935 = vlaneseq
    %v2936 = vshrl.u32 %v2935, 7
    %v2937 = vsub.s32 %v2934, %v2936
    %v2938 = vrot.slane %v2895, %v2937
    %v2940 = vunpack.c.l.s4 1966171168
    %v2941 = vunpack.c.0.s8 %v2940
    %v2942 = vlaneseq
    %v2943 = vshrl.u32 %v2942, 7
    %v2944 = vsub.s32 %v2941, %v2943
    %v2945 = vrot.slane %v2931, %v2944
    %v2946 = vcombine.high %v2938, %v2938
    %v2947 = vcombine.high %v2945, %v2945
    %v2949 = vunpack.c.l.s4 1966171168
    %v2950 = vunpack.c.0.s8 %v2949
    %v2951 = vlaneseq
    %v2952 = vshrl.u32 %v2951, 7
    %v2953 = vsub.s32 %v2950, %v2952
    %v2954 = vrot.slane %v2938, %v2953
    %v2956 = vunpack.c.l.s4 1966171168
    %v2957 = vunpack.c.0.s8 %v2956
    %v2958 = vlaneseq
    %v2959 = vshrl.u32 %v2958, 7
    %v2960 = vsub.s32 %v2957, %v2959
    %v2961 = vrot.slane %v2945, %v2960
    %v2963 = vunpack.c.l.s4 1966171168
    %v2964 = vunpack.c.0.s8 %v2963
    %v2965 = vlaneseq
    %v2966 = vshrl.u32 %v2965, 7
    %v2967 = vsub.s32 %v2964, %v2966
    %v2968 = vrot.slane %v2946, %v2967
    %v2970 = vunpack.c.l.s4 1966171168
    %v2971 = vunpack.c.0.s8 %v2970
    %v2972 = vlaneseq
    %v2973 = vshrl.u32 %v2972, 7
    %v2974 = vsub.s32 %v2971, %v2973
    %v2975 = vrot.slane %v2947, %v2974
    %v2976 = vcombine.high %v2954, %v2954
    %v2977 = vcombine.high %v2961, %v2961
    %v2978 = vcombine.high %v2968, %v2968
    %v2979 = vcombine.high %v2975, %v2975
    %v2980 = vcombine.high %v2898, %v2898
    %v2982 = vunpack.c.l.s4 1966171168
    %v2983 = vunpack.c.0.s8 %v2982
    %v2984 = vlaneseq
    %v2985 = vshrl.u32 %v2984, 7
    %v2986 = vsub.s32 %v2983, %v2985
    %v2987 = vrot.slane %v2898, %v2986
    %v2989 = vunpack.c.l.s4 1966171168
    %v2990 = vunpack.c.0.s8 %v2989
    %v2991 = vlaneseq
    %v2992 = vshrl.u32 %v2991, 7
    %v2993 = vsub.s32 %v2990, %v2992
    %v2994 = vrot.slane %v2980, %v2993
    %v2995 = vcombine.high %v2987, %v2987
    %v2996 = vcombine.high %v2994, %v2994
    %v2998 = vunpack.c.l.s4 1966171168
    %v2999 = vunpack.c.0.s8 %v2998
    %v3000 = vlaneseq
    %v3001 = vshrl.u32 %v3000, 7
    %v3002 = vsub.s32 %v2999, %v3001
    %v3003 = vrot.slane %v2987, %v3002
    %v3005 = vunpack.c.l.s4 1966171168
    %v3006 = vunpack.c.0.s8 %v3005
    %v3007 = vlaneseq
    %v3008 = vshrl.u32 %v3007, 7
    %v3009 = vsub.s32 %v3006, %v3008
    %v3010 = vrot.slane %v2994, %v3009
    %v3012 = vunpack.c.l.s4 1966171168
    %v3013 = vunpack.c.0.s8 %v3012
    %v3014 = vlaneseq
    %v3015 = vshrl.u32 %v3014, 7
    %v3016 = vsub.s32 %v3013, %v3015
    %v3017 = vrot.slane %v2995, %v3016
    %v3019 = vunpack.c.l.s4 1966171168
    %v3020 = vunpack.c.0.s8 %v3019
    %v3021 = vlaneseq
    %v3022 = vshrl.u32 %v3021, 7
    %v3023 = vsub.s32 %v3020, %v3022
    %v3024 = vrot.slane %v2996, %v3023
    %v3025 = vcombine.high %v3003, %v3003
    %v3026 = vcombine.high %v3010, %v3010
    %v3027 = vcombine.high %v3017, %v3017
    %v3028 = vcombine.high %v3024, %v3024
    %v3029 = vcombine.high %v2903, %v2903
    %v3031 = vunpack.c.l.s4 1966171168
    %v3032 = vunpack.c.0.s8 %v3031
    %v3033 = vlaneseq
    %v3034 = vshrl.u32 %v3033, 7
    %v3035 = vsub.s32 %v3032, %v3034
    %v3036 = vrot.slane %v2903, %v3035
    %v3038 = vunpack.c.l.s4 1966171168
    %v3039 = vunpack.c.0.s8 %v3038
    %v3040 = vlaneseq
    %v3041 = vshrl.u32 %v3040, 7
    %v3042 = vsub.s32 %v3039, %v3041
    %v3043 = vrot.slane %v3029, %v3042
    %v3044 = vcombine.high %v3036, %v3036
    %v3045 = vcombine.high %v3043, %v3043
    %v3047 = vunpack.c.l.s4 1966171168
    %v3048 = vunpack.c.0.s8 %v3047
    %v3049 = vlaneseq
    %v3050 = vshrl.u32 %v3049, 7
    %v3051 = vsub.s32 %v3048, %v3050
    %v3052 = vrot.slane %v3036, %v3051
    %v3054 = vunpack.c.l.s4 1966171168
    %v3055 = vunpack.c.0.s8 %v3054
    %v3056 = vlaneseq
    %v3057 = vshrl.u32 %v3056, 7
    %v3058 = vsub.s32 %v3055, %v3057
    %v3059 = vrot.slane %v3043, %v3058
    %v3061 = vunpack.c.l.s4 1966171168
    %v3062 = vunpack.c.0.s8 %v3061
    %v3063 = vlaneseq
    %v3064 = vshrl.u32 %v3063, 7
    %v3065 = vsub.s32 %v3062, %v3064
    %v3066 = vrot.slane %v3044, %v3065
    %v3068 = vunpack.c.l.s4 1966171168
    %v3069 = vunpack.c.0.s8 %v3068
    %v3070 = vlaneseq
    %v3071 = vshrl.u32 %v3070, 7
    %v3072 = vsub.s32 %v3069, %v3071
    %v3073 = vrot.slane %v3045, %v3072
    %v3074 = vcombine.high %v3052, %v3052
    %v3075 = vcombine.high %v3059, %v3059
    %v3076 = vcombine.high %v3066, %v3066
    %v3077 = vcombine.high %v3073, %v3073
    %v3078 = vcombine.high %v2906, %v2906
    %v3080 = vunpack.c.l.s4 1966171168
    %v3081 = vunpack.c.0.s8 %v3080
    %v3082 = vlaneseq
    %v3083 = vshrl.u32 %v3082, 7
    %v3084 = vsub.s32 %v3081, %v3083
    %v3085 = vrot.slane %v2906, %v3084
    %v3087 = vunpack.c.l.s4 1966171168
    %v3088 = vunpack.c.0.s8 %v3087
    %v3089 = vlaneseq
    %v3090 = vshrl.u32 %v3089, 7
    %v3091 = vsub.s32 %v3088, %v3090
    %v3092 = vrot.slane %v3078, %v3091
    %v3093 = vcombine.high %v3085, %v3085
    %v3094 = vcombine.high %v3092, %v3092
    %v3096 = vunpack.c.l.s4 1966171168
    %v3097 = vunpack.c.0.s8 %v3096
    %v3098 = vlaneseq
    %v3099 = vshrl.u32 %v3098, 7
    %v3100 = vsub.s32 %v3097, %v3099
    %v3101 = vrot.slane %v3085, %v3100
    %v3103 = vunpack.c.l.s4 1966171168
    %v3104 = vunpack.c.0.s8 %v3103
    %v3105 = vlaneseq
    %v3106 = vshrl.u32 %v3105, 7
    %v3107 = vsub.s32 %v3104, %v3106
    %v3108 = vrot.slane %v3092, %v3107
    %v3110 = vunpack.c.l.s4 1966171168
    %v3111 = vunpack.c.0.s8 %v3110
    %v3112 = vlaneseq
    %v3113 = vshrl.u32 %v3112, 7
    %v3114 = vsub.s32 %v3111, %v3113
    %v3115 = vrot.slane %v3093, %v3114
    %v3117 = vunpack.c.l.s4 1966171168
    %v3118 = vunpack.c.0.s8 %v3117
    %v3119 = vlaneseq
    %v3120 = vshrl.u32 %v3119, 7
    %v3121 = vsub.s32 %v3118, %v3120
    %v3122 = vrot.slane %v3094, %v3121
    %v3123 = vcombine.high %v3101, %v3101
    %v3124 = vcombine.high %v3108, %v3108
    %v3125 = vcombine.high %v3115, %v3115
    %v3126 = vcombine.high %v3122, %v3122
    %v3127 = vcombine.high %v2911, %v2911
    %v3129 = vunpack.c.l.s4 1966171168
    %v3130 = vunpack.c.0.s8 %v3129
    %v3131 = vlaneseq
    %v3132 = vshrl.u32 %v3131, 7
    %v3133 = vsub.s32 %v3130, %v3132
    %v3134 = vrot.slane %v2911, %v3133
    %v3136 = vunpack.c.l.s4 1966171168
    %v3137 = vunpack.c.0.s8 %v3136
    %v3138 = vlaneseq
    %v3139 = vshrl.u32 %v3138, 7
    %v3140 = vsub.s32 %v3137, %v3139
    %v3141 = vrot.slane %v3127, %v3140
    %v3142 = vcombine.high %v3134, %v3134
    %v3143 = vcombine.high %v3141, %v3141
    %v3145 = vunpack.c.l.s4 1966171168
    %v3146 = vunpack.c.0.s8 %v3145
    %v3147 = vlaneseq
    %v3148 = vshrl.u32 %v3147, 7
    %v3149 = vsub.s32 %v3146, %v3148
    %v3150 = vrot.slane %v3134, %v3149
    %v3152 = vunpack.c.l.s4 1966171168
    %v3153 = vunpack.c.0.s8 %v3152
    %v3154 = vlaneseq
    %v3155 = vshrl.u32 %v3154, 7
    %v3156 = vsub.s32 %v3153, %v3155
    %v3157 = vrot.slane %v3141, %v3156
    %v3159 = vunpack.c.l.s4 1966171168
    %v3160 = vunpack.c.0.s8 %v3159
    %v3161 = vlaneseq
    %v3162 = vshrl.u32 %v3161, 7
    %v3163 = vsub.s32 %v3160, %v3162
    %v3164 = vrot.slane %v3142, %v3163
    %v3166 = vunpack.c.l.s4 1966171168
    %v3167 = vunpack.c.0.s8 %v3166
    %v3168 = vlaneseq
    %v3169 = vshrl.u32 %v3168, 7
    %v3170 = vsub.s32 %v3167, %v3169
    %v3171 = vrot.slane %v3143, %v3170
    %v3172 = vcombine.high %v3150, %v3150
    %v3173 = vcombine.high %v3157, %v3157
    %v3174 = vcombine.high %v3164, %v3164
    %v3175 = vcombine.high %v3171, %v3171
    %v3176 = vcombine.high %v2914, %v2914
    %v3178 = vunpack.c.l.s4 1966171168
    %v3179 = vunpack.c.0.s8 %v3178
    %v3180 = vlaneseq
    %v3181 = vshrl.u32 %v3180, 7
    %v3182 = vsub.s32 %v3179, %v3181
    %v3183 = vrot.slane %v2914, %v3182
    %v3185 = vunpack.c.l.s4 1966171168
    %v3186 = vunpack.c.0.s8 %v3185
    %v3187 = vlaneseq
    %v3188 = vshrl.u32 %v3187, 7
    %v3189 = vsub.s32 %v3186, %v3188
    %v3190 = vrot.slane %v3176, %v3189
    %v3191 = vcombine.high %v3183, %v3183
    %v3192 = vcombine.high %v3190, %v3190
    %v3194 = vunpack.c.l.s4 1966171168
    %v3195 = vunpack.c.0.s8 %v3194
    %v3196 = vlaneseq
    %v3197 = vshrl.u32 %v3196, 7
    %v3198 = vsub.s32 %v3195, %v3197
    %v3199 = vrot.slane %v3183, %v3198
    %v3201 = vunpack.c.l.s4 1966171168
    %v3202 = vunpack.c.0.s8 %v3201
    %v3203 = vlaneseq
    %v3204 = vshrl.u32 %v3203, 7
    %v3205 = vsub.s32 %v3202, %v3204
    %v3206 = vrot.slane %v3190, %v3205
    %v3208 = vunpack.c.l.s4 1966171168
    %v3209 = vunpack.c.0.s8 %v3208
    %v3210 = vlaneseq
    %v3211 = vshrl.u32 %v3210, 7
    %v3212 = vsub.s32 %v3209, %v3211
    %v3213 = vrot.slane %v3191, %v3212
    %v3215 = vunpack.c.l.s4 1966171168
    %v3216 = vunpack.c.0.s8 %v3215
    %v3217 = vlaneseq
    %v3218 = vshrl.u32 %v3217, 7
    %v3219 = vsub.s32 %v3216, %v3218
    %v3220 = vrot.slane %v3192, %v3219
    %v3221 = vcombine.high %v3199, %v3199
    %v3222 = vcombine.high %v3206, %v3206
    %v3223 = vcombine.high %v3213, %v3213
    %v3224 = vcombine.high %v3220, %v3220
    %v3225 = vcombine.high %v2919, %v2919
    %v3227 = vunpack.c.l.s4 1966171168
    %v3228 = vunpack.c.0.s8 %v3227
    %v3229 = vlaneseq
    %v3230 = vshrl.u32 %v3229, 7
    %v3231 = vsub.s32 %v3228, %v3230
    %v3232 = vrot.slane %v2919, %v3231
    %v3234 = vunpack.c.l.s4 1966171168
    %v3235 = vunpack.c.0.s8 %v3234
    %v3236 = vlaneseq
    %v3237 = vshrl.u32 %v3236, 7
    %v3238 = vsub.s32 %v3235, %v3237
    %v3239 = vrot.slane %v3225, %v3238
    %v3240 = vcombine.high %v3232, %v3232
    %v3241 = vcombine.high %v3239, %v3239
    %v3243 = vunpack.c.l.s4 1966171168
    %v3244 = vunpack.c.0.s8 %v3243
    %v3245 = vlaneseq
    %v3246 = vshrl.u32 %v3245, 7
    %v3247 = vsub.s32 %v3244, %v3246
    %v3248 = vrot.slane %v3232, %v3247
    %v3250 = vunpack.c.l.s4 1966171168
    %v3251 = vunpack.c.0.s8 %v3250
    %v3252 = vlaneseq
    %v3253 = vshrl.u32 %v3252, 7
    %v3254 = vsub.s32 %v3251, %v3253
    %v3255 = vrot.slane %v3239, %v3254
    %v3257 = vunpack.c.l.s4 1966171168
    %v3258 = vunpack.c.0.s8 %v3257
    %v3259 = vlaneseq
    %v3260 = vshrl.u32 %v3259, 7
    %v3261 = vsub.s32 %v3258, %v3260
    %v3262 = vrot.slane %v3240, %v3261
    %v3264 = vunpack.c.l.s4 1966171168
    %v3265 = vunpack.c.0.s8 %v3264
    %v3266 = vlaneseq
    %v3267 = vshrl.u32 %v3266, 7
    %v3268 = vsub.s32 %v3265, %v3267
    %v3269 = vrot.slane %v3241, %v3268
    %v3270 = vcombine.high %v3248, %v3248
    %v3271 = vcombine.high %v3255, %v3255
    %v3272 = vcombine.high %v3262, %v3262
    %v3273 = vcombine.high %v3269, %v3269
    %v3274 = vcombine.low %v2954, %v2968
    %v3275 = vcombine.low %v2976, %v2978
    %v3276 = vcombine.low %v2961, %v2975
    %v3278 = vunpack.c.l.s4 1966171168
    %v3279 = vunpack.c.0.s8 %v3278
    %v3280 = vlaneseq
    %v3281 = vshrl.u32 %v3280, 7
    %v3282 = vsub.s32 %v3279, %v3281
    %v3283 = vrot.slane %v3274, %v3282
    %v3285 = vunpack.c.l.s4 1966171168
    %v3286 = vunpack.c.0.s8 %v3285
    %v3287 = vlaneseq
    %v3288 = vshrl.u32 %v3287, 7
    %v3289 = vsub.s32 %v3286, %v3288
    %v3290 = vrot.slane %v3275, %v3289
    %v3292 = vunpack.c.l.s4 1966171168
    %v3293 = vunpack.c.0.s8 %v3292
    %v3294 = vlaneseq
    %v3295 = vshrl.u32 %v3294, 7
    %v3296 = vsub.s32 %v3293, %v3295
    %v3297 = vrot.slane %v3276, %v3296
    %v3299 = vunpack.c.l.s4 1966171168
    %v3300 = vunpack.c.0.s8 %v3299
    %v3301 = vlaneseq
    %v3302 = vshrl.u32 %v3301, 7
    %v3303 = vsub.s32 %v3300, %v3302
    %v3304 = vrot.slane %v2977, %v3303
    %v3305 = vcombine.low %v3283, %v3290
    %v3306 = vcombine.low %v3297, %v3304
    %v3308 = vunpack.c.l.s4 1966171168
    %v3309 = vunpack.c.0.s8 %v3308
    %v3310 = vlaneseq
    %v3311 = vshrl.u32 %v3310, 7
    %v3312 = vsub.s32 %v3309, %v3311
    %v3313 = vrot.slane %v3305, %v3312
    %v3315 = vunpack.c.l.s4 1966171168
    %v3316 = vunpack.c.0.s8 %v3315
    %v3317 = vlaneseq
    %v3318 = vshrl.u32 %v3317, 7
    %v3319 = vsub.s32 %v3316, %v3318
    %v3320 = vrot.slane %v3306, %v3319
    %v3321 = vcombine.low %v3313, %v3320
    %v3322 = vcombine.low %v2979, %v3003
    %v3323 = vcombine.low %v3017, %v3025
    %v3324 = vcombine.low %v3027, %v3010
    %v3326 = vunpack.c.l.s4 1966171168
    %v3327 = vunpack.c.0.s8 %v3326
    %v3328 = vlaneseq
    %v3329 = vshrl.u32 %v3328, 7
    %v3330 = vsub.s32 %v3327, %v3329
    %v3331 = vrot.slane %v3322, %v3330
    %v3333 = vunpack.c.l.s4 1966171168
    %v3334 = vunpack.c.0.s8 %v3333
    %v3335 = vlaneseq
    %v3336 = vshrl.u32 %v3335, 7
    %v3337 = vsub.s32 %v3334, %v3336
    %v3338 = vrot.slane %v3323, %v3337
    %v3340 = vunpack.c.l.s4 1966171168
    %v3341 = vunpack.c.0.s8 %v3340
    %v3342 = vlaneseq
    %v3343 = vshrl.u32 %v3342, 7
    %v3344 = vsub.s32 %v3341, %v3343
    %v3345 = vrot.slane %v3324, %v3344
    %v3347 = vunpack.c.l.s4 1966171168
    %v3348 = vunpack.c.0.s8 %v3347
    %v3349 = vlaneseq
    %v3350 = vshrl.u32 %v3349, 7
    %v3351 = vsub.s32 %v3348, %v3350
    %v3352 = vrot.slane %v3024, %v3351
    %v3353 = vcombine.low %v3331, %v3338
    %v3354 = vcombine.low %v3345, %v3352
    %v3356 = vunpack.c.l.s4 1966171168
    %v3357 = vunpack.c.0.s8 %v3356
    %v3358 = vlaneseq
    %v3359 = vshrl.u32 %v3358, 7
    %v3360 = vsub.s32 %v3357, %v3359
    %v3361 = vrot.slane %v3353, %v3360
    %v3363 = vunpack.c.l.s4 1966171168
    %v3364 = vunpack.c.0.s8 %v3363
    %v3365 = vlaneseq
    %v3366 = vshrl.u32 %v3365, 7
    %v3367 = vsub.s32 %v3364, %v3366
    %v3368 = vrot.slane %v3354, %v3367
    %v3369 = vcombine.low %v3361, %v3368
    %v3370 = vcombine.low %v3026, %v3028
    %v3371 = vcombine.low %v3052, %v3066
    %v3372 = vcombine.low %v3074, %v3076
    %v3374 = vunpack.c.l.s4 1966171168
    %v3375 = vunpack.c.0.s8 %v3374
    %v3376 = vlaneseq
    %v3377 = vshrl.u32 %v3376, 7
    %v3378 = vsub.s32 %v3375, %v3377
    %v3379 = vrot.slane %v3370, %v3378
    %v3381 = vunpack.c.l.s4 1966171168
    %v3382 = vunpack.c.0.s8 %v3381
    %v3383 = vlaneseq
    %v3384 = vshrl.u32 %v3383, 7
    %v3385 = vsub.s32 %v3382, %v3384
    %v3386 = vrot.slane %v3371, %v3385
    %v3388 = vunpack.c.l.s4 1966171168
    %v3389 = vunpack.c.0.s8 %v3388
    %v3390 = vlaneseq
    %v3391 = vshrl.u32 %v3390, 7
    %v3392 = vsub.s32 %v3389, %v3391
    %v3393 = vrot.slane %v3372, %v3392
    %v3395 = vunpack.c.l.s4 1966171168
    %v3396 = vunpack.c.0.s8 %v3395
    %v3397 = vlaneseq
    %v3398 = vshrl.u32 %v3397, 7
    %v3399 = vsub.s32 %v3396, %v3398
    %v3400 = vrot.slane %v3059, %v3399
    %v3401 = vcombine.low %v3379, %v3386
    %v3402 = vcombine.low %v3393, %v3400
    %v3404 = vunpack.c.l.s4 1966171168
    %v3405 = vunpack.c.0.s8 %v3404
    %v3406 = vlaneseq
    %v3407 = vshrl.u32 %v3406, 7
    %v3408 = vsub.s32 %v3405, %v3407
    %v3409 = vrot.slane %v3401, %v3408
    %v3411 = vunpack.c.l.s4 1966171168
    %v3412 = vunpack.c.0.s8 %v3411
    %v3413 = vlaneseq
    %v3414 = vshrl.u32 %v3413, 7
    %v3415 = vsub.s32 %v3412, %v3414
    %v3416 = vrot.slane %v3402, %v3415
    %v3417 = vcombine.low %v3409, %v3416
    %v3418 = vcombine.low %v3073, %v3075
    %v3419 = vcombine.low %v3077, %v3101
    %v3420 = vcombine.low %v3115, %v3123
    %v3422 = vunpack.c.l.s4 1966171168
    %v3423 = vunpack.c.0.s8 %v3422
    %v3424 = vlaneseq
    %v3425 = vshrl.u32 %v3424, 7
    %v3426 = vsub.s32 %v3423, %v3425
    %v3427 = vrot.slane %v3418, %v3426
    %v3429 = vunpack.c.l.s4 1966171168
    %v3430 = vunpack.c.0.s8 %v3429
    %v3431 = vlaneseq
    %v3432 = vshrl.u32 %v3431, 7
    %v3433 = vsub.s32 %v3430, %v3432
    %v3434 = vrot.slane %v3419, %v3433
    %v3436 = vunpack.c.l.s4 1966171168
    %v3437 = vunpack.c.0.s8 %v3436
    %v3438 = vlaneseq
    %v3439 = vshrl.u32 %v3438, 7
    %v3440 = vsub.s32 %v3437, %v3439
    %v3441 = vrot.slane %v3420, %v3440
    %v3443 = vunpack.c.l.s4 1966171168
    %v3444 = vunpack.c.0.s8 %v3443
    %v3445 = vlaneseq
    %v3446 = vshrl.u32 %v3445, 7
    %v3447 = vsub.s32 %v3444, %v3446
    %v3448 = vrot.slane %v3125, %v3447
    %v3449 = vcombine.low %v3427, %v3434
    %v3450 = vcombine.low %v3441, %v3448
    %v3452 = vunpack.c.l.s4 1966171168
    %v3453 = vunpack.c.0.s8 %v3452
    %v3454 = vlaneseq
    %v3455 = vshrl.u32 %v3454, 7
    %v3456 = vsub.s32 %v3453, %v3455
    %v3457 = vrot.slane %v3449, %v3456
    %v3459 = vunpack.c.l.s4 1966171168
    %v3460 = vunpack.c.0.s8 %v3459
    %v3461 = vlaneseq
    %v3462 = vshrl.u32 %v3461, 7
    %v3463 = vsub.s32 %v3460, %v3462
    %v3464 = vrot.slane %v3450, %v3463
    %v3465 = vcombine.low %v3457, %v3464
    %v3466 = vcombine.low %v3108, %v3122
    %v3467 = vcombine.low %v3124, %v3126
    %v3468 = vcombine.low %v3150, %v3164
    %v3470 = vunpack.c.l.s4 1966171168
    %v3471 = vunpack.c.0.s8 %v3470
    %v3472 = vlaneseq
    %v3473 = vshrl.u32 %v3472, 7
    %v3474 = vsub.s32 %v3471, %v3473
    %v3475 = vrot.slane %v3466, %v3474
    %v3477 = vunpack.c.l.s4 1966171168
    %v3478 = vunpack.c.0.s8 %v3477
    %v3479 = vlaneseq
    %v3480 = vshrl.u32 %v3479, 7
    %v3481 = vsub.s32 %v3478, %v3480
    %v3482 = vrot.slane %v3467, %v3481
    %v3484 = vunpack.c.l.s4 1966171168
    %v3485 = vunpack.c.0.s8 %v3484
    %v3486 = vlaneseq
    %v3487 = vshrl.u32 %v3486, 7
    %v3488 = vsub.s32 %v3485, %v3487
    %v3489 = vrot.slane %v3468, %v3488
    %v3491 = vunpack.c.l.s4 1966171168
    %v3492 = vunpack.c.0.s8 %v3491
    %v3493 = vlaneseq
    %v3494 = vshrl.u32 %v3493, 7
    %v3495 = vsub.s32 %v3492, %v3494
    %v3496 = vrot.slane %v3172, %v3495
    %v3497 = vcombine.low %v3475, %v3482
    %v3498 = vcombine.low %v3489, %v3496
    %v3500 = vunpack.c.l.s4 1966171168
    %v3501 = vunpack.c.0.s8 %v3500
    %v3502 = vlaneseq
    %v3503 = vshrl.u32 %v3502, 7
    %v3504 = vsub.s32 %v3501, %v3503
    %v3505 = vrot.slane %v3497, %v3504
    %v3507 = vunpack.c.l.s4 1966171168
    %v3508 = vunpack.c.0.s8 %v3507
    %v3509 = vlaneseq
    %v3510 = vshrl.u32 %v3509, 7
    %v3511 = vsub.s32 %v3508, %v3510
    %v3512 = vrot.slane %v3498, %v3511
    %v3513 = vcombine.low %v3505, %v3512
    %v3514 = vcombine.low %v3174, %v3157
    %v3515 = vcombine.low %v3171, %v3173
    %v3516 = vcombine.low %v3175, %v3199
    %v3518 = vunpack.c.l.s4 1966171168
    %v3519 = vunpack.c.0.s8 %v3518
    %v3520 = vlaneseq
    %v3521 = vshrl.u32 %v3520, 7
    %v3522 = vsub.s32 %v3519, %v3521
    %v3523 = vrot.slane %v3514, %v3522
    %v3525 = vunpack.c.l.s4 1966171168
    %v3526 = vunpack.c.0.s8 %v3525
    %v3527 = vlaneseq
    %v3528 = vshrl.u32 %v3527, 7
    %v3529 = vsub.s32 %v3526, %v3528
    %v3530 = vrot.slane %v3515, %v3529
    %v3532 = vunpack.c.l.s4 1966171168
    %v3533 = vunpack.c.0.s8 %v3532
    %v3534 = vlaneseq
    %v3535 = vshrl.u32 %v3534, 7
    %v3536 = vsub.s32 %v3533, %v3535
    %v3537 = vrot.slane %v3516, %v3536
    %v3539 = vunpack.c.l.s4 1966171168
    %v3540 = vunpack.c.0.s8 %v3539
    %v3541 = vlaneseq
    %v3542 = vshrl.u32 %v3541, 7
    %v3543 = vsub.s32 %v3540, %v3542
    %v3544 = vrot.slane %v3213, %v3543
    %v3545 = vcombine.low %v3523, %v3530
    %v3546 = vcombine.low %v3537, %v3544
    %v3548 = vunpack.c.l.s4 1966171168
    %v3549 = vunpack.c.0.s8 %v3548
    %v3550 = vlaneseq
    %v3551 = vshrl.u32 %v3550, 7
    %v3552 = vsub.s32 %v3549, %v3551
    %v3553 = vrot.slane %v3545, %v3552
    %v3555 = vunpack.c.l.s4 1966171168
    %v3556 = vunpack.c.0.s8 %v3555
    %v3557 = vlaneseq
    %v3558 = vshrl.u32 %v3557, 7
    %v3559 = vsub.s32 %v3556, %v3558
    %v3560 = vrot.slane %v3546, %v3559
    %v3561 = vcombine.low %v3553, %v3560
    %v3562 = vcombine.low %v3221, %v3223
    %v3563 = vcombine.low %v3206, %v3220
    %v3564 = vcombine.low %v3222, %v3224
    %v3566 = vunpack.c.l.s4 1966171168
    %v3567 = vunpack.c.0.s8 %v3566
    %v3568 = vlaneseq
    %v3569 = vshrl.u32 %v3568, 7
    %v3570 = vsub.s32 %v3567, %v3569
    %v3571 = vrot.slane %v3562, %v3570
    %v3573 = vunpack.c.l.s4 1966171168
    %v3574 = vunpack.c.0.s8 %v3573
    %v3575 = vlaneseq
    %v3576 = vshrl.u32 %v3575, 7
    %v3577 = vsub.s32 %v3574, %v3576
    %v3578 = vrot.slane %v3563, %v3577
    %v3580 = vunpack.c.l.s4 1966171168
    %v3581 = vunpack.c.0.s8 %v3580
    %v3582 = vlaneseq
    %v3583 = vshrl.u32 %v3582, 7
    %v3584 = vsub.s32 %v3581, %v3583
    %v3585 = vrot.slane %v3564, %v3584
    %v3587 = vunpack.c.l.s4 1966171168
    %v3588 = vunpack.c.0.s8 %v3587
    %v3589 = vlaneseq
    %v3590 = vshrl.u32 %v3589, 7
    %v3591 = vsub.s32 %v3588, %v3590
    %v3592 = vrot.slane %v3248, %v3591
    %v3593 = vcombine.low %v3571, %v3578
    %v3594 = vcombine.low %v3585, %v3592
    %v3596 = vunpack.c.l.s4 1966171168
    %v3597 = vunpack.c.0.s8 %v3596
    %v3598 = vlaneseq
    %v3599 = vshrl.u32 %v3598, 7
    %v3600 = vsub.s32 %v3597, %v3599
    %v3601 = vrot.slane %v3593, %v3600
    %v3603 = vunpack.c.l.s4 1966171168
    %v3604 = vunpack.c.0.s8 %v3603
    %v3605 = vlaneseq
    %v3606 = vshrl.u32 %v3605, 7
    %v3607 = vsub.s32 %v3604, %v3606
    %v3608 = vrot.slane %v3594, %v3607
    %v3609 = vcombine.low %v3601, %v3608
    %v3610 = vcombine.low %v3262, %v3270
    %v3611 = vcombine.low %v3272, %v3255
    %v3612 = vcombine.low %v3269, %v3271
    %v3614 = vunpack.c.l.s4 1966171168
    %v3615 = vunpack.c.0.s8 %v3614
    %v3616 = vlaneseq
    %v3617 = vshrl.u32 %v3616, 7
    %v3618 = vsub.s32 %v3615, %v3617
    %v3619 = vrot.slane %v3610, %v3618
    %v3621 = vunpack.c.l.s4 1966171168
    %v3622 = vunpack.c.0.s8 %v3621
    %v3623 = vlaneseq
    %v3624 = vshrl.u32 %v3623, 7
    %v3625 = vsub.s32 %v3622, %v3624
    %v3626 = vrot.slane %v3611, %v3625
    %v3628 = vunpack.c.l.s4 1966171168
    %v3629 = vunpack.c.0.s8 %v3628
    %v3630 = vlaneseq
    %v3631 = vshrl.u32 %v3630, 7
    %v3632 = vsub.s32 %v3629, %v3631
    %v3633 = vrot.slane %v3612, %v3632
    %v3635 = vunpack.c.l.s4 1966171168
    %v3636 = vunpack.c.0.s8 %v3635
    %v3637 = vlaneseq
    %v3638 = vshrl.u32 %v3637, 7
    %v3639 = vsub.s32 %v3636, %v3638
    %v3640 = vrot.slane %v3273, %v3639
    %v3641 = vcombine.low %v3619, %v3626
    %v3642 = vcombine.low %v3633, %v3640
    %v3644 = vunpack.c.l.s4 1966171168
    %v3645 = vunpack.c.0.s8 %v3644
    %v3646 = vlaneseq
    %v3647 = vshrl.u32 %v3646, 7
    %v3648 = vsub.s32 %v3645, %v3647
    %v3649 = vrot.slane %v3641, %v3648
    %v3651 = vunpack.c.l.s4 1966171168
    %v3652 = vunpack.c.0.s8 %v3651
    %v3653 = vlaneseq
    %v3654 = vshrl.u32 %v3653, 7
    %v3655 = vsub.s32 %v3652, %v3654
    %v3656 = vrot.slane %v3642, %v3655
    %v3657 = vcombine.low %v3649, %v3656
    %3666 = vst [vmem:[%s11] sm:$0x7f] %v3321
    %3667 = vst [vmem:[%s11 + $0x8] sm:$0x7f] %v3369
    %3668 = vst [vmem:[%s11 + $0x10] sm:$0x7f] %v3417
    %3669 = vst [vmem:[%s11 + $0x18] sm:$0x7f] %v3465
    %3670 = vst [vmem:[%s11 + $0x20] sm:$0x7f] %v3513
    %3671 = vst [vmem:[%s11 + $0x28] sm:$0x7f] %v3561
    %3672 = vst [vmem:[%s11 + $0x30] sm:$0x7f] %v3609
    %3673 = vst [vmem:[%s11 + $0x38] sm:$0x7f] %v3657
    // Predicated region
    $region70: #{tpu_custom_call.1} parent=1 // pred_check
      _
    $region71: #{tpu_custom_call.1} parent=1 // pred_check_branch
      %3675 = sbr.rel (0) target = $region73
    $region72: #{tpu_custom_call.1} parent=1 // pred_region
      _
    $region73: #{tpu_custom_call.1} parent=1 // pred_fallthru
      _
    // Predicated region
    $region74: #{tpu_custom_call.1} parent=1 // pred_check
      _
    $region75: #{tpu_custom_call.1} parent=1 // pred_check_branch
      %3677 = sbr.rel (0) target = $region77
    $region76: #{tpu_custom_call.1} parent=1 // pred_region
      _
    $region77: #{tpu_custom_call.1} parent=1 // pred_fallthru
      _
    %3678 = vsyncpa [#allocation6], 1
    %3679 = vsyncpa [#allocation8], 1
    %3680 = vsyncpa [#allocation11], 1
    %3681 = vsyncpa [#allocation14], 1

</llo_original>
